<compile_context>
chip_gen: v7x
topology: tpu7x:2x2x1
jax: 0.10.0
libtpu: 0.0.40
codegen_flags: <defaults>
</compile_context>

<pallas_src>
import math

import jax
import jax.numpy as jnp
from jax.experimental import pallas as pl
from jax.experimental.pallas import tpu as pltpu

EPS = 1e-5
TM_MAX = 512                 # max row tile for the fused matmul
DTYPE_ACT = jnp.bfloat16     # inter-layer activation / MXU operand dtype


def _round_up(x, m):
    return ((x + m - 1) // m) * m


def _gelu_exact(x):
    # PyTorch nn.GELU() default (approximate='none'): 0.5*x*(1+erf(x/sqrt(2)))
    return 0.5 * x * (1.0 + jax.lax.erf(x * (1.0 / math.sqrt(2.0))))


# ---------------- Pallas kernels ----------------

def _make_kernel(use_res: bool, use_gelu: bool):
    """out = [gelu]( a @ w + bias [+ residual] ), f32 accumulate/epilogue."""
    def kernel(a_ref, w_ref, b_ref, *rest):
        if use_res:
            r_ref, o_ref = rest
        else:
            (o_ref,) = rest
        acc = jnp.dot(a_ref[...], w_ref[...], preferred_element_type=jnp.float32)
        y = acc + b_ref[...]
        if use_res:
            y = y + r_ref[...].astype(jnp.float32)
        if use_gelu:
            y = _gelu_exact(y)
        o_ref[...] = y.astype(o_ref.dtype)
    return kernel


def _dual_kernel(a_ref, w1_ref, b1_ref, w2_ref, b2_ref, o1_ref, o2_ref):
    """Two matmuls sharing the same activation rows (conv1+GELU and 1x1 downsample)."""
    a = a_ref[...]
    acc1 = jnp.dot(a, w1_ref[...], preferred_element_type=jnp.float32)
    o1_ref[...] = _gelu_exact(acc1 + b1_ref[...]).astype(o1_ref.dtype)
    acc2 = jnp.dot(a, w2_ref[...], preferred_element_type=jnp.float32)
    o2_ref[...] = (acc2 + b2_ref[...]).astype(o2_ref.dtype)


def _row_tile(M):
    return max(8, min(TM_MAX, _round_up(M, 8)))


def fused_matmul_bias(a, w, bias, residual=None, *, gelu: bool):
    """out = [gelu](a @ w + bias [+ residual]); a:(M,K) bf16, w:(K,N) bf16, bias:(1,N) f32."""
    M, K = a.shape
    N = w.shape[1]
    tm = _row_tile(M)
    grid = (pl.cdiv(M, tm),)

    args = [a, w, bias]
    in_specs = [
        pl.BlockSpec((tm, K), lambda i: (i, 0)),
        pl.BlockSpec((K, N), lambda i: (0, 0)),
        pl.BlockSpec((1, N), lambda i: (0, 0)),
    ]
    use_res = residual is not None
    if use_res:
        args.append(residual)
        in_specs.append(pl.BlockSpec((tm, N), lambda i: (i, 0)))

    bytes_accessed = 2 * (M * K + K * N + M * N) + 4 * N + (2 * M * N if use_res else 0)
    cost = pl.CostEstimate(flops=2 * M * K * N,
                           transcendentals=(M * N if gelu else 0),
                           bytes_accessed=int(bytes_accessed))

    out = pl.pallas_call(
        _make_kernel(use_res, gelu),
        out_shape=jax.ShapeDtypeStruct((M, N), DTYPE_ACT),
        grid=grid,
        in_specs=in_specs,
        out_specs=pl.BlockSpec((tm, N), lambda i: (i, 0)),
        compiler_params=pltpu.CompilerParams(dimension_semantics=("parallel",)),
        cost_estimate=cost,
    )(*args)
    return out


def fused_dual_matmul(a, w1, b1, w2, b2):
    """(gelu(a@w1+b1), a@w2+b2) with a single read of the activation rows."""
    M, K = a.shape
    N1 = w1.shape[1]
    N2 = w2.shape[1]
    tm = _row_tile(M)
    grid = (pl.cdiv(M, tm),)

    in_specs = [
        pl.BlockSpec((tm, K), lambda i: (i, 0)),
        pl.BlockSpec((K, N1), lambda i: (0, 0)),
        pl.BlockSpec((1, N1), lambda i: (0, 0)),
        pl.BlockSpec((K, N2), lambda i: (0, 0)),
        pl.BlockSpec((1, N2), lambda i: (0, 0)),
    ]
    out_specs = (
        pl.BlockSpec((tm, N1), lambda i: (i, 0)),
        pl.BlockSpec((tm, N2), lambda i: (i, 0)),
    )
    bytes_accessed = 2 * (M * K + K * (N1 + N2) + M * (N1 + N2)) + 4 * (N1 + N2)
    cost = pl.CostEstimate(flops=2 * M * K * (N1 + N2),
                           transcendentals=M * N1,
                           bytes_accessed=int(bytes_accessed))

    o1, o2 = pl.pallas_call(
        _dual_kernel,
        out_shape=(jax.ShapeDtypeStruct((M, N1), DTYPE_ACT),
                   jax.ShapeDtypeStruct((M, N2), DTYPE_ACT)),
        grid=grid,
        in_specs=in_specs,
        out_specs=out_specs,
        compiler_params=pltpu.CompilerParams(dimension_semantics=("parallel",)),
        cost_estimate=cost,
    )(a, w1, b1, w2, b2)
    return o1, o2


# ---------------- im2col (NHWC, bf16) ----------------

def _im2col_nhwc(x, kh, kw, sh, sw, ph, pw):
    """x: (B,H,W,C) -> rows (B*Ho*Wo, kh*kw*C); K ordering is (i, j, c) which matches
    the weight prep below."""
    B, H, W, C = x.shape
    Ho = (H + 2 * ph - kh) // sh + 1
    Wo = (W + 2 * pw - kw) // sw + 1
    xp = jnp.pad(x, ((0, 0), (ph, ph), (pw, pw), (0, 0)))
    cols = []
    for i in range(kh):
        for j in range(kw):
            cols.append(xp[:, i:i + sh * (Ho - 1) + 1:sh,
                           j:j + sw * (Wo - 1) + 1:sw, :])     # (B,Ho,Wo,C)
    col = jnp.concatenate(cols, axis=-1)                        # (B,Ho,Wo,kh*kw*C)
    return col.reshape(B * Ho * Wo, kh * kw * C), Ho, Wo


def apply_time_mask(x, x_length):
    """MaskConv: zero out time steps (W axis of NHWC) >= x_length[b]."""
    B, H, W, C = x.shape
    mask = (jnp.arange(W)[None, :] < x_length[:, None]).astype(x.dtype)   # (B, W)
    return x * mask[:, None, :, None]


# ---------------- parameter init (deterministic, synthetic) ----------------

def _init_bn(key, c):
    k1, k2, k3, k4 = jax.random.split(key, 4)
    gamma = 1.0 + 0.1 * jax.random.normal(k1, (c,), jnp.float32)
    beta = 0.1 * jax.random.normal(k2, (c,), jnp.float32)
    mean = 0.1 * jax.random.normal(k3, (c,), jnp.float32)
    var = 1.0 + 0.1 * jax.random.uniform(k4, (c,), jnp.float32)
    return (gamma, beta, mean, var)


def _init_block(key, cin, cout, stride):
    ks = jax.random.split(key, 6)
    p = {
        "stride": stride,
        "conv1_w": 0.1 * jax.random.normal(ks[0], (cout, cin, 3, 3), jnp.float32),
        "bn1": _init_bn(ks[1], cout),
        "conv2_w": 0.1 * jax.random.normal(ks[2], (cout, cout, 3, 3), jnp.float32),
        "bn2": _init_bn(ks[3], cout),
    }
    if stride != (1, 1) or cin != cout:
        p["ds_w"] = 0.1 * jax.random.normal(ks[4], (cout, cin, 1, 1), jnp.float32)
        p["ds_bn"] = _init_bn(ks[5], cout)
    return p


def init_resnet(key, block_nums=(1, 1, 1, 1)):
    params = {}
    ks = jax.random.split(key, 8)
    params["stem_w"] = 0.1 * jax.random.normal(ks[0], (32, 1, 7, 7), jnp.float32)
    params["stem_bn"] = _init_bn(ks[1], 32)
    in_c = 32
    stage_channels = (32, 32, 64, 64)
    for si, (c_out, n) in enumerate(zip(stage_channels, block_nums)):
        blocks = []
        stride = (2, 1)
        for i in range(n):
            if i >= 1:
                stride = (1, 1)
            bkey = jax.random.fold_in(ks[2 + si], i)
            blocks.append(_init_block(bkey, in_c, c_out, stride))
            in_c = c_out  # BasicBlock.expansion == 1
        params[f"stage{si + 1}"] = blocks
    return params


# ---------------- parameter prep: fold BN scale into weights, bf16 matrices ----------------

def _fold_bn(w, bn):
    """(Cout,Cin,kh,kw) conv weight + eval BN -> (kh*kw*Cin, Cout) bf16 matrix + (1,Cout) f32 bias."""
    gamma, beta, mean, var = bn
    scale = gamma / jnp.sqrt(var + EPS)
    cout, cin, kh, kw = w.shape
    w_mat = w.transpose(2, 3, 1, 0).reshape(kh * kw * cin, cout) * scale[None, :]
    bias = (beta - mean * scale).reshape(1, cout)
    return w_mat.astype(DTYPE_ACT), bias.astype(jnp.float32)


def _embed_1x1_in_3x3(w1):
    """1x1 conv (pad 0) == 3x3 conv with only the centre tap (pad 1): same outputs."""
    cout, cin = w1.shape[:2]
    return jnp.zeros((cout, cin, 3, 3), w1.dtype).at[:, :, 1, 1].set(w1[:, :, 0, 0])


def prepare_params(raw):
    prep = {}
    prep["stem_w_mat"], prep["stem_bias"] = _fold_bn(raw["stem_w"], raw["stem_bn"])
    for name in ("stage1", "stage2", "stage3", "stage4"):
        blocks = []
        for bp in raw[name]:
            q = {"stride": bp["stride"]}
            q["conv1_w_mat"], q["conv1_bias"] = _fold_bn(bp["conv1_w"], bp["bn1"])
            q["conv2_w_mat"], q["conv2_bias"] = _fold_bn(bp["conv2_w"], bp["bn2"])
            if "ds_w" in bp:
                q["ds_w_mat"], q["ds_bias"] = _fold_bn(_embed_1x1_in_3x3(bp["ds_w"]),
                                                       bp["ds_bn"])
            blocks.append(q)
        prep[name] = blocks
    return prep


# ---------------- forward ----------------

def basic_block_forward(x, p):
    """x: NHWC bf16.  conv1/ds share one dual kernel; conv2 fuses BN+residual+GELU."""
    B, H, W, Cin = x.shape
    sh, sw = p["stride"]
    rows, Ho, Wo = _im2col_nhwc(x, 3, 3, sh, sw, 1, 1)
    if "ds_w_mat" in p:
        out1, identity = fused_dual_matmul(rows, p["conv1_w_mat"], p["conv1_bias"],
                                           p["ds_w_mat"], p["ds_bias"])
    else:
        out1 = fused_matmul_bias(rows, p["conv1_w_mat"], p["conv1_bias"], gelu=True)
        identity = x.reshape(B * Ho * Wo, Cin)      # stride 1, cin == cout -> same rows
    out1 = out1.reshape(B, Ho, Wo, -1)
    rows2, _, _ = _im2col_nhwc(out1, 3, 3, 1, 1, 1, 1)
    out2 = fused_matmul_bias(rows2, p["conv2_w_mat"], p["conv2_bias"],
                             residual=identity, gelu=True)
    return out2.reshape(B, Ho, Wo, -1)


def resnet_forward(prep, x, x_length):
    """x: NCHW (B,1,H,W) f32 -> NCHW (B,64,Ho,W) f32."""
    B = x.shape[0]
    out = x.transpose(0, 2, 3, 1).astype(DTYPE_ACT)            # NCHW -> NHWC, once

    # stem: Conv(1->32, k7, stride=(4,1), pad=3) + BN + GELU, wrapped in MaskConv
    rows, Ho, Wo = _im2col_nhwc(out, 7, 7, 4, 1, 3, 3)
    out = fused_matmul_bias(rows, prep["stem_w_mat"], prep["stem_bias"], gelu=True)
    out = out.reshape(B, Ho, Wo, -1)
    out = apply_time_mask(out, x_length)    # time stride is 1 everywhere -> lengths unchanged

    for name in ("stage1", "stage2", "stage3", "stage4"):
        for blk in prep[name]:
            out = basic_block_forward(out, blk)
            out = apply_time_mask(out, x_length)   # MaskConv masks after each block
    return out.transpose(0, 3, 1, 2).astype(jnp.float32)        # NHWC -> NCHW, once


if __name__ == "__main__":
    key = jax.random.PRNGKey(0)
    pkey, xkey = jax.random.split(key)

    raw_params = init_resnet(pkey, block_nums=(1, 1, 1, 1))
    params = prepare_params(raw_params)

    B, C, H, W = 2, 1, 32, 8            # (batch, 1, freq, time) NCHW
    x = jax.random.normal(xkey, (B, C, H, W), jnp.float32)
    x_length = jnp.array([8, 5], dtype=jnp.int32)   # valid time steps per batch item

    fwd = jax.jit(lambda xx, ll: resnet_forward(params, xx, ll))
    out = fwd(x, x_length)
    out = jax.block_until_ready(out)

    # H: 32 -> /4 (stem) -> /2 -> /2 -> /2 -> /2 = 1 ; W (time) unchanged ; channels = 64
    assert out.shape == (B, 64, 1, W), out.shape
    assert bool(jnp.all(jnp.isfinite(out)))
    # masked time steps must be exactly zero
    assert bool(jnp.all(out[1, :, :, 5:] == 0.0))
    print("KERNEL_OK")
</pallas_src>

<mosaic_0001>
module attributes {stable_mosaic.version = 11 : i64} {
  func.func @kernel(%arg0: i32, %arg1: memref<128x49xbf16, #tpu.memory_space<vmem>>, %arg2: memref<49x32xbf16, #tpu.memory_space<vmem>>, %arg3: memref<1x32xf32, #tpu.memory_space<vmem>>, %arg4: memref<128x32xbf16, #tpu.memory_space<vmem>>) attributes {dimension_semantics = [#tpu.dimension_semantics<parallel>], iteration_bounds = array<i64: 1>, scalar_prefetch = 0 : i64, scratch_operands = 0 : i64, tpu.core_type = #tpu.core_type<tc>, window_params = [{transform_indices = @transform_0, window_bounds = array<i64: 128, 49>}, {pipeline_mode = #tpu.pipeline_mode<synchronous>, transform_indices = @transform_1, window_bounds = array<i64: 49, 32>}, {pipeline_mode = #tpu.pipeline_mode<synchronous>, transform_indices = @transform_2, window_bounds = array<i64: 1, 32>}, {transform_indices = @transform_3, window_bounds = array<i64: 128, 32>}]} {
    %c0 = arith.constant 0 : index
    %c0_0 = arith.constant 0 : index
    %0 = vector.load %arg1[%c0, %c0_0] : memref<128x49xbf16, #tpu.memory_space<vmem>>, vector<128x49xbf16>
    %c0_1 = arith.constant 0 : index
    %c0_2 = arith.constant 0 : index
    %1 = vector.load %arg2[%c0_1, %c0_2] : memref<49x32xbf16, #tpu.memory_space<vmem>>, vector<49x32xbf16>
    %cst = arith.constant dense<0.000000e+00> : vector<128x32xf32>
    %2 = tpu.matmul %0, %1, %cst {dimension_numbers = #tpu.dot_dimension_numbers<[1], [0], [0], [1], [0, 0, 1, 1], [], []>} : vector<128x49xbf16>, vector<49x32xbf16>, vector<128x32xf32> -> vector<128x32xf32>
    %c0_3 = arith.constant 0 : index
    %c0_4 = arith.constant 0 : index
    %3 = vector.load %arg3[%c0_3, %c0_4] : memref<1x32xf32, #tpu.memory_space<vmem>>, vector<1x32xf32>
    %4 = vector.broadcast %3 : vector<1x32xf32> to vector<128x32xf32>
    %5 = arith.addf %2, %4 : vector<128x32xf32>
    %cst_5 = arith.constant 5.000000e-01 : f32
    %6 = vector.broadcast %cst_5 : f32 to vector<128x32xf32>
    %7 = arith.mulf %6, %5 : vector<128x32xf32>
    %cst_6 = arith.constant 0.707106769 : f32
    %8 = vector.broadcast %cst_6 : f32 to vector<128x32xf32>
    %9 = arith.mulf %5, %8 : vector<128x32xf32>
    %10 = math.erf %9 : vector<128x32xf32>
    %cst_7 = arith.constant 1.000000e+00 : f32
    %11 = vector.broadcast %cst_7 : f32 to vector<128x32xf32>
    %12 = arith.addf %11, %10 : vector<128x32xf32>
    %13 = arith.mulf %7, %12 : vector<128x32xf32>
    %14 = arith.truncf %13 : vector<128x32xf32> to vector<128x32xbf16>
    %c0_8 = arith.constant 0 : index
    %c0_9 = arith.constant 0 : index
    %15 = vector.load %arg4[%c0_8, %c0_9] : memref<128x32xbf16, #tpu.memory_space<vmem>>, vector<128x32xbf16>
    tpu.vector_store %arg4[%c0_8, %c0_9], %14 {strides = array<i32>} : memref<128x32xbf16, #tpu.memory_space<vmem>>, vector<128x32xbf16>,
    return
  }
  func.func @transform_0(%arg0: i32) -> (i32, i32) {
    %c0_i32 = arith.constant 0 : i32
    %c0_i32_0 = arith.constant 0 : i32
    return %arg0, %c0_i32 : i32, i32
  }
  func.func @transform_1(%arg0: i32) -> (i32, i32) {
    %c0_i32 = arith.constant 0 : i32
    %c0_i32_0 = arith.constant 0 : i32
    %c0_i32_1 = arith.constant 0 : i32
    return %c0_i32, %c0_i32_0 : i32, i32
  }
  func.func @transform_2(%arg0: i32) -> (i32, i32) {
    %c0_i32 = arith.constant 0 : i32
    %c0_i32_0 = arith.constant 0 : i32
    %c0_i32_1 = arith.constant 0 : i32
    return %c0_i32, %c0_i32_0 : i32, i32
  }
  func.func @transform_3(%arg0: i32) -> (i32, i32) {
    %c0_i32 = arith.constant 0 : i32
    %c0_i32_0 = arith.constant 0 : i32
    return %arg0, %c0_i32 : i32, i32
  }
}

module attributes {stable_mosaic.version = 11 : i64} {
  func.func @_dual_kernel(%arg0: i32, %arg1: memref<64x288xbf16, #tpu.memory_space<vmem>>, %arg2: memref<288x32xbf16, #tpu.memory_space<vmem>>, %arg3: memref<1x32xf32, #tpu.memory_space<vmem>>, %arg4: memref<288x32xbf16, #tpu.memory_space<vmem>>, %arg5: memref<1x32xf32, #tpu.memory_space<vmem>>, %arg6: memref<64x32xbf16, #tpu.memory_space<vmem>>, %arg7: memref<64x32xbf16, #tpu.memory_space<vmem>>) attributes {dimension_semantics = [#tpu.dimension_semantics<parallel>], iteration_bounds = array<i64: 1>, scalar_prefetch = 0 : i64, scratch_operands = 0 : i64, tpu.core_type = #tpu.core_type<tc>, window_params = [{transform_indices = @transform_0, window_bounds = array<i64: 64, 288>}, {pipeline_mode = #tpu.pipeline_mode<synchronous>, transform_indices = @transform_1, window_bounds = array<i64: 288, 32>}, {pipeline_mode = #tpu.pipeline_mode<synchronous>, transform_indices = @transform_2, window_bounds = array<i64: 1, 32>}, {pipeline_mode = #tpu.pipeline_mode<synchronous>, transform_indices = @transform_3, window_bounds = array<i64: 288, 32>}, {pipeline_mode = #tpu.pipeline_mode<synchronous>, transform_indices = @transform_4, window_bounds = array<i64: 1, 32>}, {transform_indices = @transform_5, window_bounds = array<i64: 64, 32>}, {transform_indices = @transform_6, window_bounds = array<i64: 64, 32>}]} {
    %c0 = arith.constant 0 : index
    %c0_0 = arith.constant 0 : index
    %0 = vector.load %arg1[%c0, %c0_0] : memref<64x288xbf16, #tpu.memory_space<vmem>>, vector<64x288xbf16>
    %c0_1 = arith.constant 0 : index
    %c0_2 = arith.constant 0 : index
    %1 = vector.load %arg2[%c0_1, %c0_2] : memref<288x32xbf16, #tpu.memory_space<vmem>>, vector<288x32xbf16>
    %cst = arith.constant dense<0.000000e+00> : vector<64x32xf32>
    %2 = tpu.matmul %0, %1, %cst {dimension_numbers = #tpu.dot_dimension_numbers<[1], [0], [0], [1], [0, 0, 1, 1], [], []>} : vector<64x288xbf16>, vector<288x32xbf16>, vector<64x32xf32> -> vector<64x32xf32>
    %c0_3 = arith.constant 0 : index
    %c0_4 = arith.constant 0 : index
    %3 = vector.load %arg3[%c0_3, %c0_4] : memref<1x32xf32, #tpu.memory_space<vmem>>, vector<1x32xf32>
    %4 = vector.broadcast %3 : vector<1x32xf32> to vector<64x32xf32>
    %5 = arith.addf %2, %4 : vector<64x32xf32>
    %cst_5 = arith.constant 5.000000e-01 : f32
    %6 = vector.broadcast %cst_5 : f32 to vector<64x32xf32>
    %7 = arith.mulf %6, %5 : vector<64x32xf32>
    %cst_6 = arith.constant 0.707106769 : f32
    %8 = vector.broadcast %cst_6 : f32 to vector<64x32xf32>
    %9 = arith.mulf %5, %8 : vector<64x32xf32>
    %10 = math.erf %9 : vector<64x32xf32>
    %cst_7 = arith.constant 1.000000e+00 : f32
    %11 = vector.broadcast %cst_7 : f32 to vector<64x32xf32>
    %12 = arith.addf %11, %10 : vector<64x32xf32>
    %13 = arith.mulf %7, %12 : vector<64x32xf32>
    %14 = arith.truncf %13 : vector<64x32xf32> to vector<64x32xbf16>
    %c0_8 = arith.constant 0 : index
    %c0_9 = arith.constant 0 : index
    %15 = vector.load %arg6[%c0_8, %c0_9] : memref<64x32xbf16, #tpu.memory_space<vmem>>, vector<64x32xbf16>
    tpu.vector_store %arg6[%c0_8, %c0_9], %14 {strides = array<i32>} : memref<64x32xbf16, #tpu.memory_space<vmem>>, vector<64x32xbf16>,
    %c0_10 = arith.constant 0 : index
    %c0_11 = arith.constant 0 : index
    %16 = vector.load %arg4[%c0_10, %c0_11] : memref<288x32xbf16, #tpu.memory_space<vmem>>, vector<288x32xbf16>
    %cst_12 = arith.constant dense<0.000000e+00> : vector<64x32xf32>
    %17 = tpu.matmul %0, %16, %cst_12 {dimension_numbers = #tpu.dot_dimension_numbers<[1], [0], [0], [1], [0, 0, 1, 1], [], []>} : vector<64x288xbf16>, vector<288x32xbf16>, vector<64x32xf32> -> vector<64x32xf32>
    %c0_13 = arith.constant 0 : index
    %c0_14 = arith.constant 0 : index
    %18 = vector.load %arg5[%c0_13, %c0_14] : memref<1x32xf32, #tpu.memory_space<vmem>>, vector<1x32xf32>
    %19 = vector.broadcast %18 : vector<1x32xf32> to vector<64x32xf32>
    %20 = arith.addf %17, %19 : vector<64x32xf32>
    %21 = arith.truncf %20 : vector<64x32xf32> to vector<64x32xbf16>
    %c0_15 = arith.constant 0 : index
    %c0_16 = arith.constant 0 : index
    %22 = vector.load %arg7[%c0_15, %c0_16] : memref<64x32xbf16, #tpu.memory_space<vmem>>, vector<64x32xbf16>
    tpu.vector_store %arg7[%c0_15, %c0_16], %21 {strides = array<i32>} : memref<64x32xbf16, #tpu.memory_space<vmem>>, vector<64x32xbf16>,
    return
  }
  func.func @transform_0(%arg0: i32) -> (i32, i32) {
    %c0_i32 = arith.constant 0 : i32
    %c0_i32_0 = arith.constant 0 : i32
    return %arg0, %c0_i32 : i32, i32
  }
  func.func @transform_1(%arg0: i32) -> (i32, i32) {
    %c0_i32 = arith.constant 0 : i32
    %c0_i32_0 = arith.constant 0 : i32
    %c0_i32_1 = arith.constant 0 : i32
    return %c0_i32, %c0_i32_0 : i32, i32
  }
  func.func @transform_2(%arg0: i32) -> (i32, i32) {
    %c0_i32 = arith.constant 0 : i32
    %c0_i32_0 = arith.constant 0 : i32
    %c0_i32_1 = arith.constant 0 : i32
    return %c0_i32, %c0_i32_0 : i32, i32
  }
  func.func @transform_3(%arg0: i32) -> (i32, i32) {
    %c0_i32 = arith.constant 0 : i32
    %c0_i32_0 = arith.constant 0 : i32
    %c0_i32_1 = arith.constant 0 : i32
    return %c0_i32, %c0_i32_0 : i32, i32
  }
  func.func @transform_4(%arg0: i32) -> (i32, i32) {
    %c0_i32 = arith.constant 0 : i32
    %c0_i32_0 = arith.constant 0 : i32
    %c0_i32_1 = arith.constant 0 : i32
    return %c0_i32, %c0_i32_0 : i32, i32
  }
  func.func @transform_5(%arg0: i32) -> (i32, i32) {
    %c0_i32 = arith.constant 0 : i32
    %c0_i32_0 = arith.constant 0 : i32
    return %arg0, %c0_i32 : i32, i32
  }
  func.func @transform_6(%arg0: i32) -> (i32, i32) {
    %c0_i32 = arith.constant 0 : i32
    %c0_i32_0 = arith.constant 0 : i32
    return %arg0, %c0_i32 : i32, i32
  }
}

module attributes {stable_mosaic.version = 11 : i64} {
  func.func @kernel(%arg0: i32, %arg1: memref<64x288xbf16, #tpu.memory_space<vmem>>, %arg2: memref<288x32xbf16, #tpu.memory_space<vmem>>, %arg3: memref<1x32xf32, #tpu.memory_space<vmem>>, %arg4: memref<64x32xbf16, #tpu.memory_space<vmem>>, %arg5: memref<64x32xbf16, #tpu.memory_space<vmem>>) attributes {dimension_semantics = [#tpu.dimension_semantics<parallel>], iteration_bounds = array<i64: 1>, scalar_prefetch = 0 : i64, scratch_operands = 0 : i64, tpu.core_type = #tpu.core_type<tc>, window_params = [{transform_indices = @transform_0, window_bounds = array<i64: 64, 288>}, {pipeline_mode = #tpu.pipeline_mode<synchronous>, transform_indices = @transform_1, window_bounds = array<i64: 288, 32>}, {pipeline_mode = #tpu.pipeline_mode<synchronous>, transform_indices = @transform_2, window_bounds = array<i64: 1, 32>}, {transform_indices = @transform_3, window_bounds = array<i64: 64, 32>}, {transform_indices = @transform_4, window_bounds = array<i64: 64, 32>}]} {
    %c0 = arith.constant 0 : index
    %c0_0 = arith.constant 0 : index
    %0 = vector.load %arg1[%c0, %c0_0] : memref<64x288xbf16, #tpu.memory_space<vmem>>, vector<64x288xbf16>
    %c0_1 = arith.constant 0 : index
    %c0_2 = arith.constant 0 : index
    %1 = vector.load %arg2[%c0_1, %c0_2] : memref<288x32xbf16, #tpu.memory_space<vmem>>, vector<288x32xbf16>
    %cst = arith.constant dense<0.000000e+00> : vector<64x32xf32>
    %2 = tpu.matmul %0, %1, %cst {dimension_numbers = #tpu.dot_dimension_numbers<[1], [0], [0], [1], [0, 0, 1, 1], [], []>} : vector<64x288xbf16>, vector<288x32xbf16>, vector<64x32xf32> -> vector<64x32xf32>
    %c0_3 = arith.constant 0 : index
    %c0_4 = arith.constant 0 : index
    %3 = vector.load %arg3[%c0_3, %c0_4] : memref<1x32xf32, #tpu.memory_space<vmem>>, vector<1x32xf32>
    %4 = vector.broadcast %3 : vector<1x32xf32> to vector<64x32xf32>
    %5 = arith.addf %2, %4 : vector<64x32xf32>
    %c0_5 = arith.constant 0 : index
    %c0_6 = arith.constant 0 : index
    %6 = vector.load %arg4[%c0_5, %c0_6] : memref<64x32xbf16, #tpu.memory_space<vmem>>, vector<64x32xbf16>
    %7 = arith.extf %6 : vector<64x32xbf16> to vector<64x32xf32>
    %8 = arith.addf %5, %7 : vector<64x32xf32>
    %cst_7 = arith.constant 5.000000e-01 : f32
    %9 = vector.broadcast %cst_7 : f32 to vector<64x32xf32>
    %10 = arith.mulf %9, %8 : vector<64x32xf32>
    %cst_8 = arith.constant 0.707106769 : f32
    %11 = vector.broadcast %cst_8 : f32 to vector<64x32xf32>
    %12 = arith.mulf %8, %11 : vector<64x32xf32>
    %13 = math.erf %12 : vector<64x32xf32>
    %cst_9 = arith.constant 1.000000e+00 : f32
    %14 = vector.broadcast %cst_9 : f32 to vector<64x32xf32>
    %15 = arith.addf %14, %13 : vector<64x32xf32>
    %16 = arith.mulf %10, %15 : vector<64x32xf32>
    %17 = arith.truncf %16 : vector<64x32xf32> to vector<64x32xbf16>
    %c0_10 = arith.constant 0 : index
    %c0_11 = arith.constant 0 : index
    %18 = vector.load %arg5[%c0_10, %c0_11] : memref<64x32xbf16, #tpu.memory_space<vmem>>, vector<64x32xbf16>
    tpu.vector_store %arg5[%c0_10, %c0_11], %17 {strides = array<i32>} : memref<64x32xbf16, #tpu.memory_space<vmem>>, vector<64x32xbf16>,
    return
  }
  func.func @transform_0(%arg0: i32) -> (i32, i32) {
    %c0_i32 = arith.constant 0 : i32
    %c0_i32_0 = arith.constant 0 : i32
    return %arg0, %c0_i32 : i32, i32
  }
  func.func @transform_1(%arg0: i32) -> (i32, i32) {
    %c0_i32 = arith.constant 0 : i32
    %c0_i32_0 = arith.constant 0 : i32
    %c0_i32_1 = arith.constant 0 : i32
    return %c0_i32, %c0_i32_0 : i32, i32
  }
  func.func @transform_2(%arg0: i32) -> (i32, i32) {
    %c0_i32 = arith.constant 0 : i32
    %c0_i32_0 = arith.constant 0 : i32
    %c0_i32_1 = arith.constant 0 : i32
    return %c0_i32, %c0_i32_0 : i32, i32
  }
  func.func @transform_3(%arg0: i32) -> (i32, i32) {
    %c0_i32 = arith.constant 0 : i32
    %c0_i32_0 = arith.constant 0 : i32
    return %arg0, %c0_i32 : i32, i32
  }
  func.func @transform_4(%arg0: i32) -> (i32, i32) {
    %c0_i32 = arith.constant 0 : i32
    %c0_i32_0 = arith.constant 0 : i32
    return %arg0, %c0_i32 : i32, i32
  }
}

module attributes {stable_mosaic.version = 11 : i64} {
  func.func @_dual_kernel(%arg0: i32, %arg1: memref<32x288xbf16, #tpu.memory_space<vmem>>, %arg2: memref<288x32xbf16, #tpu.memory_space<vmem>>, %arg3: memref<1x32xf32, #tpu.memory_space<vmem>>, %arg4: memref<288x32xbf16, #tpu.memory_space<vmem>>, %arg5: memref<1x32xf32, #tpu.memory_space<vmem>>, %arg6: memref<32x32xbf16, #tpu.memory_space<vmem>>, %arg7: memref<32x32xbf16, #tpu.memory_space<vmem>>) attributes {dimension_semantics = [#tpu.dimension_semantics<parallel>], iteration_bounds = array<i64: 1>, scalar_prefetch = 0 : i64, scratch_operands = 0 : i64, tpu.core_type = #tpu.core_type<tc>, window_params = [{transform_indices = @transform_0, window_bounds = array<i64: 32, 288>}, {pipeline_mode = #tpu.pipeline_mode<synchronous>, transform_indices = @transform_1, window_bounds = array<i64: 288, 32>}, {pipeline_mode = #tpu.pipeline_mode<synchronous>, transform_indices = @transform_2, window_bounds = array<i64: 1, 32>}, {pipeline_mode = #tpu.pipeline_mode<synchronous>, transform_indices = @transform_3, window_bounds = array<i64: 288, 32>}, {pipeline_mode = #tpu.pipeline_mode<synchronous>, transform_indices = @transform_4, window_bounds = array<i64: 1, 32>}, {transform_indices = @transform_5, window_bounds = array<i64: 32, 32>}, {transform_indices = @transform_6, window_bounds = array<i64: 32, 32>}]} {
    %c0 = arith.constant 0 : index
    %c0_0 = arith.constant 0 : index
    %0 = vector.load %arg1[%c0, %c0_0] : memref<32x288xbf16, #tpu.memory_space<vmem>>, vector<32x288xbf16>
    %c0_1 = arith.constant 0 : index
    %c0_2 = arith.constant 0 : index
    %1 = vector.load %arg2[%c0_1, %c0_2] : memref<288x32xbf16, #tpu.memory_space<vmem>>, vector<288x32xbf16>
    %cst = arith.constant dense<0.000000e+00> : vector<32x32xf32>
    %2 = tpu.matmul %0, %1, %cst {dimension_numbers = #tpu.dot_dimension_numbers<[1], [0], [0], [1], [0, 0, 1, 1], [], []>} : vector<32x288xbf16>, vector<288x32xbf16>, vector<32x32xf32> -> vector<32x32xf32>
    %c0_3 = arith.constant 0 : index
    %c0_4 = arith.constant 0 : index
    %3 = vector.load %arg3[%c0_3, %c0_4] : memref<1x32xf32, #tpu.memory_space<vmem>>, vector<1x32xf32>
    %4 = vector.broadcast %3 : vector<1x32xf32> to vector<32x32xf32>
    %5 = arith.addf %2, %4 : vector<32x32xf32>
    %cst_5 = arith.constant 5.000000e-01 : f32
    %6 = vector.broadcast %cst_5 : f32 to vector<32x32xf32>
    %7 = arith.mulf %6, %5 : vector<32x32xf32>
    %cst_6 = arith.constant 0.707106769 : f32
    %8 = vector.broadcast %cst_6 : f32 to vector<32x32xf32>
    %9 = arith.mulf %5, %8 : vector<32x32xf32>
    %10 = math.erf %9 : vector<32x32xf32>
    %cst_7 = arith.constant 1.000000e+00 : f32
    %11 = vector.broadcast %cst_7 : f32 to vector<32x32xf32>
    %12 = arith.addf %11, %10 : vector<32x32xf32>
    %13 = arith.mulf %7, %12 : vector<32x32xf32>
    %14 = arith.truncf %13 : vector<32x32xf32> to vector<32x32xbf16>
    %c0_8 = arith.constant 0 : index
    %c0_9 = arith.constant 0 : index
    %15 = vector.load %arg6[%c0_8, %c0_9] : memref<32x32xbf16, #tpu.memory_space<vmem>>, vector<32x32xbf16>
    tpu.vector_store %arg6[%c0_8, %c0_9], %14 {strides = array<i32>} : memref<32x32xbf16, #tpu.memory_space<vmem>>, vector<32x32xbf16>,
    %c0_10 = arith.constant 0 : index
    %c0_11 = arith.constant 0 : index
    %16 = vector.load %arg4[%c0_10, %c0_11] : memref<288x32xbf16, #tpu.memory_space<vmem>>, vector<288x32xbf16>
    %cst_12 = arith.constant dense<0.000000e+00> : vector<32x32xf32>
    %17 = tpu.matmul %0, %16, %cst_12 {dimension_numbers = #tpu.dot_dimension_numbers<[1], [0], [0], [1], [0, 0, 1, 1], [], []>} : vector<32x288xbf16>, vector<288x32xbf16>, vector<32x32xf32> -> vector<32x32xf32>
    %c0_13 = arith.constant 0 : index
    %c0_14 = arith.constant 0 : index
    %18 = vector.load %arg5[%c0_13, %c0_14] : memref<1x32xf32, #tpu.memory_space<vmem>>, vector<1x32xf32>
    %19 = vector.broadcast %18 : vector<1x32xf32> to vector<32x32xf32>
    %20 = arith.addf %17, %19 : vector<32x32xf32>
    %21 = arith.truncf %20 : vector<32x32xf32> to vector<32x32xbf16>
    %c0_15 = arith.constant 0 : index
    %c0_16 = arith.constant 0 : index
    %22 = vector.load %arg7[%c0_15, %c0_16] : memref<32x32xbf16, #tpu.memory_space<vmem>>, vector<32x32xbf16>
    tpu.vector_store %arg7[%c0_15, %c0_16], %21 {strides = array<i32>} : memref<32x32xbf16, #tpu.memory_space<vmem>>, vector<32x32xbf16>,
    return
  }
  func.func @transform_0(%arg0: i32) -> (i32, i32) {
    %c0_i32 = arith.constant 0 : i32
    %c0_i32_0 = arith.constant 0 : i32
    return %arg0, %c0_i32 : i32, i32
  }
  func.func @transform_1(%arg0: i32) -> (i32, i32) {
    %c0_i32 = arith.constant 0 : i32
    %c0_i32_0 = arith.constant 0 : i32
    %c0_i32_1 = arith.constant 0 : i32
    return %c0_i32, %c0_i32_0 : i32, i32
  }
  func.func @transform_2(%arg0: i32) -> (i32, i32) {
    %c0_i32 = arith.constant 0 : i32
    %c0_i32_0 = arith.constant 0 : i32
    %c0_i32_1 = arith.constant 0 : i32
    return %c0_i32, %c0_i32_0 : i32, i32
  }
  func.func @transform_3(%arg0: i32) -> (i32, i32) {
    %c0_i32 = arith.constant 0 : i32
    %c0_i32_0 = arith.constant 0 : i32
    %c0_i32_1 = arith.constant 0 : i32
    return %c0_i32, %c0_i32_0 : i32, i32
  }
  func.func @transform_4(%arg0: i32) -> (i32, i32) {
    %c0_i32 = arith.constant 0 : i32
    %c0_i32_0 = arith.constant 0 : i32
    %c0_i32_1 = arith.constant 0 : i32
    return %c0_i32, %c0_i32_0 : i32, i32
  }
  func.func @transform_5(%arg0: i32) -> (i32, i32) {
    %c0_i32 = arith.constant 0 : i32
    %c0_i32_0 = arith.constant 0 : i32
    return %arg0, %c0_i32 : i32, i32
  }
  func.func @transform_6(%arg0: i32) -> (i32, i32) {
    %c0_i32 = arith.constant 0 : i32
    %c0_i32_0 = arith.constant 0 : i32
    return %arg0, %c0_i32 : i32, i32
  }
}

module attributes {stable_mosaic.version = 11 : i64} {
  func.func @_dual_kernel(%arg0: i32, %arg1: memref<16x288xbf16, #tpu.memory_space<vmem>>, %arg2: memref<288x64xbf16, #tpu.memory_space<vmem>>, %arg3: memref<1x64xf32, #tpu.memory_space<vmem>>, %arg4: memref<288x64xbf16, #tpu.memory_space<vmem>>, %arg5: memref<1x64xf32, #tpu.memory_space<vmem>>, %arg6: memref<16x64xbf16, #tpu.memory_space<vmem>>, %arg7: memref<16x64xbf16, #tpu.memory_space<vmem>>) attributes {dimension_semantics = [#tpu.dimension_semantics<parallel>], iteration_bounds = array<i64: 1>, scalar_prefetch = 0 : i64, scratch_operands = 0 : i64, tpu.core_type = #tpu.core_type<tc>, window_params = [{transform_indices = @transform_0, window_bounds = array<i64: 16, 288>}, {pipeline_mode = #tpu.pipeline_mode<synchronous>, transform_indices = @transform_1, window_bounds = array<i64: 288, 64>}, {pipeline_mode = #tpu.pipeline_mode<synchronous>, transform_indices = @transform_2, window_bounds = array<i64: 1, 64>}, {pipeline_mode = #tpu.pipeline_mode<synchronous>, transform_indices = @transform_3, window_bounds = array<i64: 288, 64>}, {pipeline_mode = #tpu.pipeline_mode<synchronous>, transform_indices = @transform_4, window_bounds = array<i64: 1, 64>}, {transform_indices = @transform_5, window_bounds = array<i64: 16, 64>}, {transform_indices = @transform_6, window_bounds = array<i64: 16, 64>}]} {
    %c0 = arith.constant 0 : index
    %c0_0 = arith.constant 0 : index
    %0 = vector.load %arg1[%c0, %c0_0] : memref<16x288xbf16, #tpu.memory_space<vmem>>, vector<16x288xbf16>
    %c0_1 = arith.constant 0 : index
    %c0_2 = arith.constant 0 : index
    %1 = vector.load %arg2[%c0_1, %c0_2] : memref<288x64xbf16, #tpu.memory_space<vmem>>, vector<288x64xbf16>
    %cst = arith.constant dense<0.000000e+00> : vector<16x64xf32>
    %2 = tpu.matmul %0, %1, %cst {dimension_numbers = #tpu.dot_dimension_numbers<[1], [0], [0], [1], [0, 0, 1, 1], [], []>} : vector<16x288xbf16>, vector<288x64xbf16>, vector<16x64xf32> -> vector<16x64xf32>
    %c0_3 = arith.constant 0 : index
    %c0_4 = arith.constant 0 : index
    %3 = vector.load %arg3[%c0_3, %c0_4] : memref<1x64xf32, #tpu.memory_space<vmem>>, vector<1x64xf32>
    %4 = vector.broadcast %3 : vector<1x64xf32> to vector<16x64xf32>
    %5 = arith.addf %2, %4 : vector<16x64xf32>
    %cst_5 = arith.constant 5.000000e-01 : f32
    %6 = vector.broadcast %cst_5 : f32 to vector<16x64xf32>
    %7 = arith.mulf %6, %5 : vector<16x64xf32>
    %cst_6 = arith.constant 0.707106769 : f32
    %8 = vector.broadcast %cst_6 : f32 to vector<16x64xf32>
    %9 = arith.mulf %5, %8 : vector<16x64xf32>
    %10 = math.erf %9 : vector<16x64xf32>
    %cst_7 = arith.constant 1.000000e+00 : f32
    %11 = vector.broadcast %cst_7 : f32 to vector<16x64xf32>
    %12 = arith.addf %11, %10 : vector<16x64xf32>
    %13 = arith.mulf %7, %12 : vector<16x64xf32>
    %14 = arith.truncf %13 : vector<16x64xf32> to vector<16x64xbf16>
    %c0_8 = arith.constant 0 : index
    %c0_9 = arith.constant 0 : index
    %15 = vector.load %arg6[%c0_8, %c0_9] : memref<16x64xbf16, #tpu.memory_space<vmem>>, vector<16x64xbf16>
    tpu.vector_store %arg6[%c0_8, %c0_9], %14 {strides = array<i32>} : memref<16x64xbf16, #tpu.memory_space<vmem>>, vector<16x64xbf16>,
    %c0_10 = arith.constant 0 : index
    %c0_11 = arith.constant 0 : index
    %16 = vector.load %arg4[%c0_10, %c0_11] : memref<288x64xbf16, #tpu.memory_space<vmem>>, vector<288x64xbf16>
    %cst_12 = arith.constant dense<0.000000e+00> : vector<16x64xf32>
    %17 = tpu.matmul %0, %16, %cst_12 {dimension_numbers = #tpu.dot_dimension_numbers<[1], [0], [0], [1], [0, 0, 1, 1], [], []>} : vector<16x288xbf16>, vector<288x64xbf16>, vector<16x64xf32> -> vector<16x64xf32>
    %c0_13 = arith.constant 0 : index
    %c0_14 = arith.constant 0 : index
    %18 = vector.load %arg5[%c0_13, %c0_14] : memref<1x64xf32, #tpu.memory_space<vmem>>, vector<1x64xf32>
    %19 = vector.broadcast %18 : vector<1x64xf32> to vector<16x64xf32>
    %20 = arith.addf %17, %19 : vector<16x64xf32>
    %21 = arith.truncf %20 : vector<16x64xf32> to vector<16x64xbf16>
    %c0_15 = arith.constant 0 : index
    %c0_16 = arith.constant 0 : index
    %22 = vector.load %arg7[%c0_15, %c0_16] : memref<16x64xbf16, #tpu.memory_space<vmem>>, vector<16x64xbf16>
    tpu.vector_store %arg7[%c0_15, %c0_16], %21 {strides = array<i32>} : memref<16x64xbf16, #tpu.memory_space<vmem>>, vector<16x64xbf16>,
    return
  }
  func.func @transform_0(%arg0: i32) -> (i32, i32) {
    %c0_i32 = arith.constant 0 : i32
    %c0_i32_0 = arith.constant 0 : i32
    return %arg0, %c0_i32 : i32, i32
  }
  func.func @transform_1(%arg0: i32) -> (i32, i32) {
    %c0_i32 = arith.constant 0 : i32
    %c0_i32_0 = arith.constant 0 : i32
    %c0_i32_1 = arith.constant 0 : i32
    return %c0_i32, %c0_i32_0 : i32, i32
  }
  func.func @transform_2(%arg0: i32) -> (i32, i32) {
    %c0_i32 = arith.constant 0 : i32
    %c0_i32_0 = arith.constant 0 : i32
    %c0_i32_1 = arith.constant 0 : i32
    return %c0_i32, %c0_i32_0 : i32, i32
  }
  func.func @transform_3(%arg0: i32) -> (i32, i32) {
    %c0_i32 = arith.constant 0 : i32
    %c0_i32_0 = arith.constant 0 : i32
    %c0_i32_1 = arith.constant 0 : i32
    return %c0_i32, %c0_i32_0 : i32, i32
  }
  func.func @transform_4(%arg0: i32) -> (i32, i32) {
    %c0_i32 = arith.constant 0 : i32
    %c0_i32_0 = arith.constant 0 : i32
    %c0_i32_1 = arith.constant 0 : i32
    return %c0_i32, %c0_i32_0 : i32, i32
  }
  func.func @transform_5(%arg0: i32) -> (i32, i32) {
    %c0_i32 = arith.constant 0 : i32
    %c0_i32_0 = arith.constant 0 : i32
    return %arg0, %c0_i32 : i32, i32
  }
  func.func @transform_6(%arg0: i32) -> (i32, i32) {
    %c0_i32 = arith.constant 0 : i32
    %c0_i32_0 = arith.constant 0 : i32
    return %arg0, %c0_i32 : i32, i32
  }
}

module attributes {stable_mosaic.version = 11 : i64} {
  func.func @kernel(%arg0: i32, %arg1: memref<32x288xbf16, #tpu.memory_space<vmem>>, %arg2: memref<288x32xbf16, #tpu.memory_space<vmem>>, %arg3: memref<1x32xf32, #tpu.memory_space<vmem>>, %arg4: memref<32x32xbf16, #tpu.memory_space<vmem>>, %arg5: memref<32x32xbf16, #tpu.memory_space<vmem>>) attributes {dimension_semantics = [#tpu.dimension_semantics<parallel>], iteration_bounds = array<i64: 1>, scalar_prefetch = 0 : i64, scratch_operands = 0 : i64, tpu.core_type = #tpu.core_type<tc>, window_params = [{transform_indices = @transform_0, window_bounds = array<i64: 32, 288>}, {pipeline_mode = #tpu.pipeline_mode<synchronous>, transform_indices = @transform_1, window_bounds = array<i64: 288, 32>}, {pipeline_mode = #tpu.pipeline_mode<synchronous>, transform_indices = @transform_2, window_bounds = array<i64: 1, 32>}, {transform_indices = @transform_3, window_bounds = array<i64: 32, 32>}, {transform_indices = @transform_4, window_bounds = array<i64: 32, 32>}]} {
    %c0 = arith.constant 0 : index
    %c0_0 = arith.constant 0 : index
    %0 = vector.load %arg1[%c0, %c0_0] : memref<32x288xbf16, #tpu.memory_space<vmem>>, vector<32x288xbf16>
    %c0_1 = arith.constant 0 : index
    %c0_2 = arith.constant 0 : index
    %1 = vector.load %arg2[%c0_1, %c0_2] : memref<288x32xbf16, #tpu.memory_space<vmem>>, vector<288x32xbf16>
    %cst = arith.constant dense<0.000000e+00> : vector<32x32xf32>
    %2 = tpu.matmul %0, %1, %cst {dimension_numbers = #tpu.dot_dimension_numbers<[1], [0], [0], [1], [0, 0, 1, 1], [], []>} : vector<32x288xbf16>, vector<288x32xbf16>, vector<32x32xf32> -> vector<32x32xf32>
    %c0_3 = arith.constant 0 : index
    %c0_4 = arith.constant 0 : index
    %3 = vector.load %arg3[%c0_3, %c0_4] : memref<1x32xf32, #tpu.memory_space<vmem>>, vector<1x32xf32>
    %4 = vector.broadcast %3 : vector<1x32xf32> to vector<32x32xf32>
    %5 = arith.addf %2, %4 : vector<32x32xf32>
    %c0_5 = arith.constant 0 : index
    %c0_6 = arith.constant 0 : index
    %6 = vector.load %arg4[%c0_5, %c0_6] : memref<32x32xbf16, #tpu.memory_space<vmem>>, vector<32x32xbf16>
    %7 = arith.extf %6 : vector<32x32xbf16> to vector<32x32xf32>
    %8 = arith.addf %5, %7 : vector<32x32xf32>
    %cst_7 = arith.constant 5.000000e-01 : f32
    %9 = vector.broadcast %cst_7 : f32 to vector<32x32xf32>
    %10 = arith.mulf %9, %8 : vector<32x32xf32>
    %cst_8 = arith.constant 0.707106769 : f32
    %11 = vector.broadcast %cst_8 : f32 to vector<32x32xf32>
    %12 = arith.mulf %8, %11 : vector<32x32xf32>
    %13 = math.erf %12 : vector<32x32xf32>
    %cst_9 = arith.constant 1.000000e+00 : f32
    %14 = vector.broadcast %cst_9 : f32 to vector<32x32xf32>
    %15 = arith.addf %14, %13 : vector<32x32xf32>
    %16 = arith.mulf %10, %15 : vector<32x32xf32>
    %17 = arith.truncf %16 : vector<32x32xf32> to vector<32x32xbf16>
    %c0_10 = arith.constant 0 : index
    %c0_11 = arith.constant 0 : index
    %18 = vector.load %arg5[%c0_10, %c0_11] : memref<32x32xbf16, #tpu.memory_space<vmem>>, vector<32x32xbf16>
    tpu.vector_store %arg5[%c0_10, %c0_11], %17 {strides = array<i32>} : memref<32x32xbf16, #tpu.memory_space<vmem>>, vector<32x32xbf16>,
    return
  }
  func.func @transform_0(%arg0: i32) -> (i32, i32) {
    %c0_i32 = arith.constant 0 : i32
    %c0_i32_0 = arith.constant 0 : i32
    return %arg0, %c0_i32 : i32, i32
  }
  func.func @transform_1(%arg0: i32) -> (i32, i32) {
    %c0_i32 = arith.constant 0 : i32
    %c0_i32_0 = arith.constant 0 : i32
    %c0_i32_1 = arith.constant 0 : i32
    return %c0_i32, %c0_i32_0 : i32, i32
  }
  func.func @transform_2(%arg0: i32) -> (i32, i32) {
    %c0_i32 = arith.constant 0 : i32
    %c0_i32_0 = arith.constant 0 : i32
    %c0_i32_1 = arith.constant 0 : i32
    return %c0_i32, %c0_i32_0 : i32, i32
  }
  func.func @transform_3(%arg0: i32) -> (i32, i32) {
    %c0_i32 = arith.constant 0 : i32
    %c0_i32_0 = arith.constant 0 : i32
    return %arg0, %c0_i32 : i32, i32
  }
  func.func @transform_4(%arg0: i32) -> (i32, i32) {
    %c0_i32 = arith.constant 0 : i32
    %c0_i32_0 = arith.constant 0 : i32
    return %arg0, %c0_i32 : i32, i32
  }
}

module attributes {stable_mosaic.version = 11 : i64} {
  func.func @kernel(%arg0: i32, %arg1: memref<16x576xbf16, #tpu.memory_space<vmem>>, %arg2: memref<576x64xbf16, #tpu.memory_space<vmem>>, %arg3: memref<1x64xf32, #tpu.memory_space<vmem>>, %arg4: memref<16x64xbf16, #tpu.memory_space<vmem>>, %arg5: memref<16x64xbf16, #tpu.memory_space<vmem>>) attributes {dimension_semantics = [#tpu.dimension_semantics<parallel>], iteration_bounds = array<i64: 1>, scalar_prefetch = 0 : i64, scratch_operands = 0 : i64, tpu.core_type = #tpu.core_type<tc>, window_params = [{transform_indices = @transform_0, window_bounds = array<i64: 16, 576>}, {pipeline_mode = #tpu.pipeline_mode<synchronous>, transform_indices = @transform_1, window_bounds = array<i64: 576, 64>}, {pipeline_mode = #tpu.pipeline_mode<synchronous>, transform_indices = @transform_2, window_bounds = array<i64: 1, 64>}, {transform_indices = @transform_3, window_bounds = array<i64: 16, 64>}, {transform_indices = @transform_4, window_bounds = array<i64: 16, 64>}]} {
    %c0 = arith.constant 0 : index
    %c0_0 = arith.constant 0 : index
    %0 = vector.load %arg1[%c0, %c0_0] : memref<16x576xbf16, #tpu.memory_space<vmem>>, vector<16x576xbf16>
    %c0_1 = arith.constant 0 : index
    %c0_2 = arith.constant 0 : index
    %1 = vector.load %arg2[%c0_1, %c0_2] : memref<576x64xbf16, #tpu.memory_space<vmem>>, vector<576x64xbf16>
    %cst = arith.constant dense<0.000000e+00> : vector<16x64xf32>
    %2 = tpu.matmul %0, %1, %cst {dimension_numbers = #tpu.dot_dimension_numbers<[1], [0], [0], [1], [0, 0, 1, 1], [], []>} : vector<16x576xbf16>, vector<576x64xbf16>, vector<16x64xf32> -> vector<16x64xf32>
    %c0_3 = arith.constant 0 : index
    %c0_4 = arith.constant 0 : index
    %3 = vector.load %arg3[%c0_3, %c0_4] : memref<1x64xf32, #tpu.memory_space<vmem>>, vector<1x64xf32>
    %4 = vector.broadcast %3 : vector<1x64xf32> to vector<16x64xf32>
    %5 = arith.addf %2, %4 : vector<16x64xf32>
    %c0_5 = arith.constant 0 : index
    %c0_6 = arith.constant 0 : index
    %6 = vector.load %arg4[%c0_5, %c0_6] : memref<16x64xbf16, #tpu.memory_space<vmem>>, vector<16x64xbf16>
    %7 = arith.extf %6 : vector<16x64xbf16> to vector<16x64xf32>
    %8 = arith.addf %5, %7 : vector<16x64xf32>
    %cst_7 = arith.constant 5.000000e-01 : f32
    %9 = vector.broadcast %cst_7 : f32 to vector<16x64xf32>
    %10 = arith.mulf %9, %8 : vector<16x64xf32>
    %cst_8 = arith.constant 0.707106769 : f32
    %11 = vector.broadcast %cst_8 : f32 to vector<16x64xf32>
    %12 = arith.mulf %8, %11 : vector<16x64xf32>
    %13 = math.erf %12 : vector<16x64xf32>
    %cst_9 = arith.constant 1.000000e+00 : f32
    %14 = vector.broadcast %cst_9 : f32 to vector<16x64xf32>
    %15 = arith.addf %14, %13 : vector<16x64xf32>
    %16 = arith.mulf %10, %15 : vector<16x64xf32>
    %17 = arith.truncf %16 : vector<16x64xf32> to vector<16x64xbf16>
    %c0_10 = arith.constant 0 : index
    %c0_11 = arith.constant 0 : index
    %18 = vector.load %arg5[%c0_10, %c0_11] : memref<16x64xbf16, #tpu.memory_space<vmem>>, vector<16x64xbf16>
    tpu.vector_store %arg5[%c0_10, %c0_11], %17 {strides = array<i32>} : memref<16x64xbf16, #tpu.memory_space<vmem>>, vector<16x64xbf16>,
    return
  }
  func.func @transform_0(%arg0: i32) -> (i32, i32) {
    %c0_i32 = arith.constant 0 : i32
    %c0_i32_0 = arith.constant 0 : i32
    return %arg0, %c0_i32 : i32, i32
  }
  func.func @transform_1(%arg0: i32) -> (i32, i32) {
    %c0_i32 = arith.constant 0 : i32
    %c0_i32_0 = arith.constant 0 : i32
    %c0_i32_1 = arith.constant 0 : i32
    return %c0_i32, %c0_i32_0 : i32, i32
  }
  func.func @transform_2(%arg0: i32) -> (i32, i32) {
    %c0_i32 = arith.constant 0 : i32
    %c0_i32_0 = arith.constant 0 : i32
    %c0_i32_1 = arith.constant 0 : i32
    return %c0_i32, %c0_i32_0 : i32, i32
  }
  func.func @transform_3(%arg0: i32) -> (i32, i32) {
    %c0_i32 = arith.constant 0 : i32
    %c0_i32_0 = arith.constant 0 : i32
    return %arg0, %c0_i32 : i32, i32
  }
  func.func @transform_4(%arg0: i32) -> (i32, i32) {
    %c0_i32 = arith.constant 0 : i32
    %c0_i32_0 = arith.constant 0 : i32
    return %arg0, %c0_i32 : i32, i32
  }
}

module attributes {stable_mosaic.version = 11 : i64} {
  func.func @_dual_kernel(%arg0: i32, %arg1: memref<16x576xbf16, #tpu.memory_space<vmem>>, %arg2: memref<576x64xbf16, #tpu.memory_space<vmem>>, %arg3: memref<1x64xf32, #tpu.memory_space<vmem>>, %arg4: memref<576x64xbf16, #tpu.memory_space<vmem>>, %arg5: memref<1x64xf32, #tpu.memory_space<vmem>>, %arg6: memref<16x64xbf16, #tpu.memory_space<vmem>>, %arg7: memref<16x64xbf16, #tpu.memory_space<vmem>>) attributes {dimension_semantics = [#tpu.dimension_semantics<parallel>], iteration_bounds = array<i64: 1>, scalar_prefetch = 0 : i64, scratch_operands = 0 : i64, tpu.core_type = #tpu.core_type<tc>, window_params = [{transform_indices = @transform_0, window_bounds = array<i64: 16, 576>}, {pipeline_mode = #tpu.pipeline_mode<synchronous>, transform_indices = @transform_1, window_bounds = array<i64: 576, 64>}, {pipeline_mode = #tpu.pipeline_mode<synchronous>, transform_indices = @transform_2, window_bounds = array<i64: 1, 64>}, {pipeline_mode = #tpu.pipeline_mode<synchronous>, transform_indices = @transform_3, window_bounds = array<i64: 576, 64>}, {pipeline_mode = #tpu.pipeline_mode<synchronous>, transform_indices = @transform_4, window_bounds = array<i64: 1, 64>}, {transform_indices = @transform_5, window_bounds = array<i64: 16, 64>}, {transform_indices = @transform_6, window_bounds = array<i64: 16, 64>}]} {
    %c0 = arith.constant 0 : index
    %c0_0 = arith.constant 0 : index
    %0 = vector.load %arg1[%c0, %c0_0] : memref<16x576xbf16, #tpu.memory_space<vmem>>, vector<16x576xbf16>
    %c0_1 = arith.constant 0 : index
    %c0_2 = arith.constant 0 : index
    %1 = vector.load %arg2[%c0_1, %c0_2] : memref<576x64xbf16, #tpu.memory_space<vmem>>, vector<576x64xbf16>
    %cst = arith.constant dense<0.000000e+00> : vector<16x64xf32>
    %2 = tpu.matmul %0, %1, %cst {dimension_numbers = #tpu.dot_dimension_numbers<[1], [0], [0], [1], [0, 0, 1, 1], [], []>} : vector<16x576xbf16>, vector<576x64xbf16>, vector<16x64xf32> -> vector<16x64xf32>
    %c0_3 = arith.constant 0 : index
    %c0_4 = arith.constant 0 : index
    %3 = vector.load %arg3[%c0_3, %c0_4] : memref<1x64xf32, #tpu.memory_space<vmem>>, vector<1x64xf32>
    %4 = vector.broadcast %3 : vector<1x64xf32> to vector<16x64xf32>
    %5 = arith.addf %2, %4 : vector<16x64xf32>
    %cst_5 = arith.constant 5.000000e-01 : f32
    %6 = vector.broadcast %cst_5 : f32 to vector<16x64xf32>
    %7 = arith.mulf %6, %5 : vector<16x64xf32>
    %cst_6 = arith.constant 0.707106769 : f32
    %8 = vector.broadcast %cst_6 : f32 to vector<16x64xf32>
    %9 = arith.mulf %5, %8 : vector<16x64xf32>
    %10 = math.erf %9 : vector<16x64xf32>
    %cst_7 = arith.constant 1.000000e+00 : f32
    %11 = vector.broadcast %cst_7 : f32 to vector<16x64xf32>
    %12 = arith.addf %11, %10 : vector<16x64xf32>
    %13 = arith.mulf %7, %12 : vector<16x64xf32>
    %14 = arith.truncf %13 : vector<16x64xf32> to vector<16x64xbf16>
    %c0_8 = arith.constant 0 : index
    %c0_9 = arith.constant 0 : index
    %15 = vector.load %arg6[%c0_8, %c0_9] : memref<16x64xbf16, #tpu.memory_space<vmem>>, vector<16x64xbf16>
    tpu.vector_store %arg6[%c0_8, %c0_9], %14 {strides = array<i32>} : memref<16x64xbf16, #tpu.memory_space<vmem>>, vector<16x64xbf16>,
    %c0_10 = arith.constant 0 : index
    %c0_11 = arith.constant 0 : index
    %16 = vector.load %arg4[%c0_10, %c0_11] : memref<576x64xbf16, #tpu.memory_space<vmem>>, vector<576x64xbf16>
    %cst_12 = arith.constant dense<0.000000e+00> : vector<16x64xf32>
    %17 = tpu.matmul %0, %16, %cst_12 {dimension_numbers = #tpu.dot_dimension_numbers<[1], [0], [0], [1], [0, 0, 1, 1], [], []>} : vector<16x576xbf16>, vector<576x64xbf16>, vector<16x64xf32> -> vector<16x64xf32>
    %c0_13 = arith.constant 0 : index
    %c0_14 = arith.constant 0 : index
    %18 = vector.load %arg5[%c0_13, %c0_14] : memref<1x64xf32, #tpu.memory_space<vmem>>, vector<1x64xf32>
    %19 = vector.broadcast %18 : vector<1x64xf32> to vector<16x64xf32>
    %20 = arith.addf %17, %19 : vector<16x64xf32>
    %21 = arith.truncf %20 : vector<16x64xf32> to vector<16x64xbf16>
    %c0_15 = arith.constant 0 : index
    %c0_16 = arith.constant 0 : index
    %22 = vector.load %arg7[%c0_15, %c0_16] : memref<16x64xbf16, #tpu.memory_space<vmem>>, vector<16x64xbf16>
    tpu.vector_store %arg7[%c0_15, %c0_16], %21 {strides = array<i32>} : memref<16x64xbf16, #tpu.memory_space<vmem>>, vector<16x64xbf16>,
    return
  }
  func.func @transform_0(%arg0: i32) -> (i32, i32) {
    %c0_i32 = arith.constant 0 : i32
    %c0_i32_0 = arith.constant 0 : i32
    return %arg0, %c0_i32 : i32, i32
  }
  func.func @transform_1(%arg0: i32) -> (i32, i32) {
    %c0_i32 = arith.constant 0 : i32
    %c0_i32_0 = arith.constant 0 : i32
    %c0_i32_1 = arith.constant 0 : i32
    return %c0_i32, %c0_i32_0 : i32, i32
  }
  func.func @transform_2(%arg0: i32) -> (i32, i32) {
    %c0_i32 = arith.constant 0 : i32
    %c0_i32_0 = arith.constant 0 : i32
    %c0_i32_1 = arith.constant 0 : i32
    return %c0_i32, %c0_i32_0 : i32, i32
  }
  func.func @transform_3(%arg0: i32) -> (i32, i32) {
    %c0_i32 = arith.constant 0 : i32
    %c0_i32_0 = arith.constant 0 : i32
    %c0_i32_1 = arith.constant 0 : i32
    return %c0_i32, %c0_i32_0 : i32, i32
  }
  func.func @transform_4(%arg0: i32) -> (i32, i32) {
    %c0_i32 = arith.constant 0 : i32
    %c0_i32_0 = arith.constant 0 : i32
    %c0_i32_1 = arith.constant 0 : i32
    return %c0_i32, %c0_i32_0 : i32, i32
  }
  func.func @transform_5(%arg0: i32) -> (i32, i32) {
    %c0_i32 = arith.constant 0 : i32
    %c0_i32_0 = arith.constant 0 : i32
    return %arg0, %c0_i32 : i32, i32
  }
  func.func @transform_6(%arg0: i32) -> (i32, i32) {
    %c0_i32 = arith.constant 0 : i32
    %c0_i32_0 = arith.constant 0 : i32
    return %arg0, %c0_i32 : i32, i32
  }
}

</mosaic_0001>

<llo_original>
// kernel: _lambda_.9
$region0: #{_lambda_.9}
  #allocation0 [shape = 'u32[]', space=smem, size = 0x4, offset = 0x4, fixed_abs, tag = 'smem constant byte address 0x4 - core index']
  #allocation1 [shape = 'u32[144,128]{1,0:T(1,128)}', space=vmem, size = 0x12000, scoped, tag = 'internal scratch']
  %s0 = inlined_call_operand.vmem [shape: bf16[128,49], index: 0, kind: input, shape index: {}]
  %s1 = inlined_call_operand.vmem [shape: bf16[49,32], index: 1, kind: input, shape index: {}]
  %s2 = inlined_call_operand.vmem [shape: f32[1,32], index: 2, kind: input, shape index: {}]
  %s3 = inlined_call_operand.vmem [shape: bf16[128,32], index: 3, kind: output, shape index: {}]
  %s4 = sld [smem:[#allocation0]]
  $region22: #{_lambda_.9} parent=0
    _
  %s6 = ssub.s32 1, %s4
  %s7 = scalar_select 0, %s6, %s4
  // Predicated region
  $region2: #{_lambda_.9} parent=0 // pred_check
    _
  $region3: #{_lambda_.9} parent=0 // pred_check_branch
    %9 = sbr.rel (0) target = $region5
  $region4: #{_lambda_.9} parent=0 // pred_region
    _
  $region5: #{_lambda_.9} parent=0 // pred_fallthru
    _
  // Predicated region
  $region6: #{_lambda_.9} parent=0 // pred_check
    _
  $region7: #{_lambda_.9} parent=0 // pred_check_branch
    %11 = sbr.rel (0) target = $region9
  $region8: #{_lambda_.9} parent=0 // pred_region
    _
  $region9: #{_lambda_.9} parent=0 // pred_fallthru
    _
  // Predicated region
  $region10: #{_lambda_.9} parent=0 // pred_check
    _
  $region11: #{_lambda_.9} parent=0 // pred_check_branch
    %13 = sbr.rel (0) target = $region13
  $region12: #{_lambda_.9} parent=0 // pred_region
    _
  $region13: #{_lambda_.9} parent=0 // pred_fallthru
    _
  %v15 = vld [vmem:[%s0] sm:$0xf]
  %v16 = vld [vmem:[%s0 + $0x4] sm:$0xf]
  %v17 = vld [vmem:[%s0 + $0x8] sm:$0xf]
  %v18 = vld [vmem:[%s0 + $0xc] sm:$0xf]
  %v19 = vld [vmem:[%s0 + $0x10] sm:$0xf]
  %v20 = vld [vmem:[%s0 + $0x14] sm:$0xf]
  %v21 = vld [vmem:[%s0 + $0x18] sm:$0xf]
  %v22 = vld [vmem:[%s0 + $0x1c] sm:$0xf]
  %v23 = vld [vmem:[%s0 + $0x20] sm:$0xf]
  %v24 = vld [vmem:[%s0 + $0x24] sm:$0xf]
  %v25 = vld [vmem:[%s0 + $0x28] sm:$0xf]
  %v26 = vld [vmem:[%s0 + $0x2c] sm:$0xf]
  %v27 = vld [vmem:[%s0 + $0x30] sm:$0xf]
  %v28 = vld [vmem:[%s0 + $0x34] sm:$0xf]
  %v29 = vld [vmem:[%s0 + $0x38] sm:$0xf]
  %v30 = vld [vmem:[%s0 + $0x3c] sm:$0xf]
  %v31 = vld [vmem:[%s1] sm:$0xf]
  %v32 = vld [vmem:[%s1 + $0x4] sm:$0xf]
  %v33 = vld [vmem:[%s1 + $0x8] sm:$0xf]
  %v34 = vld [vmem:[%s1 + $0xc] sm:$0xf]
  %v35 = vld [vmem:[%s1 + $0x10] sm:$0xf]
  %v36 = vld [vmem:[%s1 + $0x14] sm:$0xf]
  %v37 = vld [vmem:[%s1 + $0x18] sm:$0x1]
  %v38 = vld [vmem:[%s2] sm:$0x1]
  %v40 = vlaneseq
  %v41 = vshrl.u32 %v40, 7
  %v42 = vsub.s32 0, %v41
  %v43 = vrot.slane %v38, %v42
  %v61 = vunpack.c.l.b16 %v15
  %v62 = vunpack.c.l.b16 %v16
  %v63 = vunpack.c.l.b16 %v17
  %v64 = vunpack.c.l.b16 %v18
  %v65 = vunpack.c.l.b16 %v19
  %v66 = vunpack.c.l.b16 %v20
  %v67 = vunpack.c.l.b16 %v21
  %v68 = vunpack.c.l.b16 %v22
  %v69 = vunpack.c.l.b16 %v23
  %v70 = vunpack.c.l.b16 %v24
  %v71 = vunpack.c.l.b16 %v25
  %v72 = vunpack.c.l.b16 %v26
  %v73 = vunpack.c.l.b16 %v27
  %v74 = vunpack.c.l.b16 %v28
  %v75 = vunpack.c.l.b16 %v29
  %v76 = vunpack.c.l.b16 %v30
  %v77 = vpack.c.b16 %v62, %v61
  %v78 = vpack.c.b16 %v64, %v63
  %v79 = vpack.c.b16 %v66, %v65
  %v80 = vpack.c.b16 %v68, %v67
  %v81 = vpack.c.b16 %v70, %v69
  %v82 = vpack.c.b16 %v72, %v71
  %v83 = vpack.c.b16 %v74, %v73
  %v84 = vpack.c.b16 %v76, %v75
  %v92 = vunpack.c.l.b16 %v31
  %v93 = vunpack.c.l.b16 %v32
  %v94 = vunpack.c.l.b16 %v33
  %v95 = vunpack.c.l.b16 %v34
  %v96 = vunpack.c.l.b16 %v35
  %v97 = vunpack.c.l.b16 %v36
  %v98 = vunpack.c.l.b16 %v37
  %v99 = vpack.c.b16 %v93, %v92
  %v100 = vpack.c.b16 %v95, %v94
  %v101 = vpack.c.b16 %v97, %v96
  %v102 = vpack.c.b16 %v98, %v98
  %vm106 = vcmask 400384
  %v108 = vsel %vm106, %v77, 0
  %v111 = vsel %vm106, %v78, 0
  %v114 = vsel %vm106, %v79, 0
  %v117 = vsel %vm106, %v80, 0
  %v120 = vsel %vm106, %v81, 0
  %v123 = vsel %vm106, %v82, 0
  %v126 = vsel %vm106, %v83, 0
  %v129 = vsel %vm106, %v84, 0
  %vm131 = vcmask 1040384
  %v132 = vsel 0, 4294967295, 65535
  %v133 = vsel %vm131, %v132, 0
  %v135 = vand.u32 %v102, %v133
  %137 = vmatprep.subr.bf16.mxu0 0
  %138 = vmatpush1.bf16.msra.mxu0 %v99
  %139 = vmatprep.subr.bf16.mxu0 0
  %140 = vmatpush1.bf16.msra.mxu0 %v100
  %141 = vmatprep.subr.bf16.mxu0 0
  %142 = vmatpush1.bf16.msra.mxu0 %v101
  %143 = vmatprep.subr.bf16.mxu0 0
  %144 = vmatpush1.bf16.msra.mxu0 %v135
  %145 = vmatprep.subr.bf16.mxu0 0
  %146 = vmatpush1.bf16.msra.mxu0 0
  %147 = vmatprep.subr.bf16.mxu0 0
  %148 = vmatpush1.bf16.msra.mxu0 0
  %149 = vmatprep.subr.bf16.mxu0 0
  %150 = vmatpush1.bf16.msra.mxu0 0
  %151 = vmatprep.subr.bf16.mxu0 0
  %152 = vmatpush1.bf16.msra.mxu0 0
  %153 = vmatprep.subr.bf16.mxu0 0
  %154 = vmatpush1.bf16.msra.mxu0 0
  %155 = vmatprep.subr.bf16.mxu0 0
  %156 = vmatpush1.bf16.msra.mxu0 0
  %157 = vmatprep.subr.bf16.mxu0 0
  %158 = vmatpush1.bf16.msra.mxu0 0
  %159 = vmatprep.subr.bf16.mxu0 0
  %160 = vmatpush1.bf16.msra.mxu0 0
  %161 = vmatprep.subr.bf16.mxu0 0
  %162 = vmatpush1.bf16.msra.mxu0 0
  %163 = vmatprep.subr.bf16.mxu0 0
  %164 = vmatpush1.bf16.msra.mxu0 0
  %165 = vmatprep.subr.bf16.mxu0 0
  %166 = vmatpush1.bf16.msra.mxu0 0
  %167 = vmatprep.subr.bf16.mxu0 0
  %168 = vmatpush1.bf16.msra.mxu0 0
  %169 = vmatprep.mubr.bf16.mxu0 0
  %170 = vmatmul.mubr.bf16.gmra.mrb[0].mxu0 %v108
  %v171 = vpop.f32.mrb[0].mxu0
  %v172 = vadd.f32 %v43, %v171
  %v173 = vpop.f32.mrb[0].mxu0
  %v174 = vpop.f32.mrb[0].mxu0
  %v175 = vadd.f32 %v43, %v174
  %v176 = vpop.f32.mrb[0].mxu0
  %177 = vmatprep.mubr.bf16.mxu0 0
  %178 = vmatmul.mubr.bf16.gmra.mrb[0].mxu0 %v111
  %v179 = vpop.f32.mrb[0].mxu0
  %v180 = vadd.f32 %v43, %v179
  %v181 = vpop.f32.mrb[0].mxu0
  %v182 = vpop.f32.mrb[0].mxu0
  %v183 = vadd.f32 %v43, %v182
  %v184 = vpop.f32.mrb[0].mxu0
  %185 = vmatprep.mubr.bf16.mxu0 0
  %186 = vmatmul.mubr.bf16.gmra.mrb[0].mxu0 %v114
  %v187 = vpop.f32.mrb[0].mxu0
  %v188 = vadd.f32 %v43, %v187
  %v189 = vpop.f32.mrb[0].mxu0
  %v190 = vpop.f32.mrb[0].mxu0
  %v191 = vadd.f32 %v43, %v190
  %v192 = vpop.f32.mrb[0].mxu0
  %193 = vmatprep.mubr.bf16.mxu0 0
  %194 = vmatmul.mubr.bf16.gmra.mrb[0].mxu0 %v117
  %v195 = vpop.f32.mrb[0].mxu0
  %v196 = vadd.f32 %v43, %v195
  %v197 = vpop.f32.mrb[0].mxu0
  %v198 = vpop.f32.mrb[0].mxu0
  %v199 = vadd.f32 %v43, %v198
  %v200 = vpop.f32.mrb[0].mxu0
  %201 = vmatprep.mubr.bf16.mxu0 0
  %202 = vmatmul.mubr.bf16.gmra.mrb[0].mxu0 %v120
  %v203 = vpop.f32.mrb[0].mxu0
  %v204 = vadd.f32 %v43, %v203
  %v205 = vpop.f32.mrb[0].mxu0
  %v206 = vpop.f32.mrb[0].mxu0
  %v207 = vadd.f32 %v43, %v206
  %v208 = vpop.f32.mrb[0].mxu0
  %209 = vmatprep.mubr.bf16.mxu0 0
  %210 = vmatmul.mubr.bf16.gmra.mrb[0].mxu0 %v123
  %v211 = vpop.f32.mrb[0].mxu0
  %v212 = vadd.f32 %v43, %v211
  %v213 = vpop.f32.mrb[0].mxu0
  %v214 = vpop.f32.mrb[0].mxu0
  %v215 = vadd.f32 %v43, %v214
  %v216 = vpop.f32.mrb[0].mxu0
  %217 = vmatprep.mubr.bf16.mxu0 0
  %218 = vmatmul.mubr.bf16.gmra.mrb[0].mxu0 %v126
  %v219 = vpop.f32.mrb[0].mxu0
  %v220 = vadd.f32 %v43, %v219
  %v221 = vpop.f32.mrb[0].mxu0
  %v222 = vpop.f32.mrb[0].mxu0
  %v223 = vadd.f32 %v43, %v222
  %v224 = vpop.f32.mrb[0].mxu0
  %225 = vmatprep.mubr.bf16.mxu0 0
  %226 = vmatmul.mubr.bf16.gmra.mrb[0].mxu0 %v129
  %v227 = vpop.f32.mrb[0].mxu0
  %v228 = vadd.f32 %v43, %v227
  %v229 = vpop.f32.mrb[0].mxu0
  %v230 = vpop.f32.mrb[0].mxu0
  %v231 = vadd.f32 %v43, %v230
  %v232 = vpop.f32.mrb[0].mxu0
  %233 = vdwg.mxu0
  %v234 = vmul.f32 %v172, 0.5
  %v235 = vmul.f32 %v175, 0.5
  %v236 = vmul.f32 %v180, 0.5
  %v237 = vmul.f32 %v183, 0.5
  %v238 = vmul.f32 %v188, 0.5
  %v239 = vmul.f32 %v191, 0.5
  %v240 = vmul.f32 %v196, 0.5
  %v241 = vmul.f32 %v199, 0.5
  %v242 = vmul.f32 %v204, 0.5
  %v243 = vmul.f32 %v207, 0.5
  %v244 = vmul.f32 %v212, 0.5
  %v245 = vmul.f32 %v215, 0.5
  %v246 = vmul.f32 %v220, 0.5
  %v247 = vmul.f32 %v223, 0.5
  %v248 = vmul.f32 %v228, 0.5
  %v249 = vmul.f32 %v231, 0.5
  %v250 = vmul.f32 %v172, 0.70710677
  %v251 = vmul.f32 %v175, 0.70710677
  %v252 = vmul.f32 %v180, 0.70710677
  %v253 = vmul.f32 %v183, 0.70710677
  %v254 = vmul.f32 %v188, 0.70710677
  %v255 = vmul.f32 %v191, 0.70710677
  %v256 = vmul.f32 %v196, 0.70710677
  %v257 = vmul.f32 %v199, 0.70710677
  %v258 = vmul.f32 %v204, 0.70710677
  %v259 = vmul.f32 %v207, 0.70710677
  %v260 = vmul.f32 %v212, 0.70710677
  %v261 = vmul.f32 %v215, 0.70710677
  %v262 = vmul.f32 %v220, 0.70710677
  %v263 = vmul.f32 %v223, 0.70710677
  %v264 = vmul.f32 %v228, 0.70710677
  %v265 = vmul.f32 %v231, 0.70710677
  %v266 = verf.f32.pop %v250
  %v267 = verf.f32.pop %v251
  %v268 = verf.f32.pop %v252
  %v269 = verf.f32.pop %v253
  %v270 = verf.f32.pop %v254
  %v271 = verf.f32.pop %v255
  %v272 = verf.f32.pop %v256
  %v273 = verf.f32.pop %v257
  %v274 = verf.f32.pop %v258
  %v275 = verf.f32.pop %v259
  %v276 = verf.f32.pop %v260
  %v277 = verf.f32.pop %v261
  %v278 = verf.f32.pop %v262
  %v279 = verf.f32.pop %v263
  %v280 = verf.f32.pop %v264
  %v281 = verf.f32.pop %v265
  %v282 = vadd.f32 %v266, 1.0
  %v283 = vadd.f32 %v267, 1.0
  %v284 = vadd.f32 %v268, 1.0
  %v285 = vadd.f32 %v269, 1.0
  %v286 = vadd.f32 %v270, 1.0
  %v287 = vadd.f32 %v271, 1.0
  %v288 = vadd.f32 %v272, 1.0
  %v289 = vadd.f32 %v273, 1.0
  %v290 = vadd.f32 %v274, 1.0
  %v291 = vadd.f32 %v275, 1.0
  %v292 = vadd.f32 %v276, 1.0
  %v293 = vadd.f32 %v277, 1.0
  %v294 = vadd.f32 %v278, 1.0
  %v295 = vadd.f32 %v279, 1.0
  %v296 = vadd.f32 %v280, 1.0
  %v297 = vadd.f32 %v281, 1.0
  %v298 = vmul.f32 %v234, %v282
  %v299 = vmul.f32 %v235, %v283
  %v300 = vmul.f32 %v236, %v284
  %v301 = vmul.f32 %v237, %v285
  %v302 = vmul.f32 %v238, %v286
  %v303 = vmul.f32 %v239, %v287
  %v304 = vmul.f32 %v240, %v288
  %v305 = vmul.f32 %v241, %v289
  %v306 = vmul.f32 %v242, %v290
  %v307 = vmul.f32 %v243, %v291
  %v308 = vmul.f32 %v244, %v292
  %v309 = vmul.f32 %v245, %v293
  %v310 = vmul.f32 %v246, %v294
  %v311 = vmul.f32 %v247, %v295
  %v312 = vmul.f32 %v248, %v296
  %v313 = vmul.f32 %v249, %v297
  %v314 = vpack.c.bf16 %v299, %v298
  %v315 = vpack.c.bf16 %v301, %v300
  %v316 = vpack.c.bf16 %v303, %v302
  %v317 = vpack.c.bf16 %v305, %v304
  %v318 = vpack.c.bf16 %v307, %v306
  %v319 = vpack.c.bf16 %v309, %v308
  %v320 = vpack.c.bf16 %v311, %v310
  %v321 = vpack.c.bf16 %v313, %v312
  %v330 = vunpack.c.l.b16 %v314
  %v331 = vunpack.c.h.b16 %v314
  %v332 = vunpack.c.l.b16 %v315
  %v333 = vunpack.c.h.b16 %v315
  %v334 = vunpack.c.l.b16 %v316
  %v335 = vunpack.c.h.b16 %v316
  %v336 = vunpack.c.l.b16 %v317
  %v337 = vunpack.c.h.b16 %v317
  %v338 = vunpack.c.l.b16 %v318
  %v339 = vunpack.c.h.b16 %v318
  %v340 = vunpack.c.l.b16 %v319
  %v341 = vunpack.c.h.b16 %v319
  %v342 = vunpack.c.l.b16 %v320
  %v343 = vunpack.c.h.b16 %v320
  %v344 = vunpack.c.l.b16 %v321
  %v345 = vunpack.c.h.b16 %v321
  %v346 = vpack.c.b16 %v330, %v330
  %v347 = vpack.c.b16 %v331, %v331
  %v348 = vpack.c.b16 %v332, %v332
  %v349 = vpack.c.b16 %v333, %v333
  %v350 = vpack.c.b16 %v334, %v334
  %v351 = vpack.c.b16 %v335, %v335
  %v352 = vpack.c.b16 %v336, %v336
  %v353 = vpack.c.b16 %v337, %v337
  %v354 = vpack.c.b16 %v338, %v338
  %v355 = vpack.c.b16 %v339, %v339
  %v356 = vpack.c.b16 %v340, %v340
  %v357 = vpack.c.b16 %v341, %v341
  %v358 = vpack.c.b16 %v342, %v342
  %v359 = vpack.c.b16 %v343, %v343
  %v360 = vpack.c.b16 %v344, %v344
  %v361 = vpack.c.b16 %v345, %v345
  %vm378 = vcmask 257024
  %379 = vst.msk [vmem:[%s3] sm:$0xf] %vm378, %v346
  %380 = vst.msk [vmem:[%s3 + $0x4] sm:$0xf] %vm378, %v347
  %381 = vst.msk [vmem:[%s3 + $0x8] sm:$0xf] %vm378, %v348
  %382 = vst.msk [vmem:[%s3 + $0xc] sm:$0xf] %vm378, %v349
  %383 = vst.msk [vmem:[%s3 + $0x10] sm:$0xf] %vm378, %v350
  %384 = vst.msk [vmem:[%s3 + $0x14] sm:$0xf] %vm378, %v351
  %385 = vst.msk [vmem:[%s3 + $0x18] sm:$0xf] %vm378, %v352
  %386 = vst.msk [vmem:[%s3 + $0x1c] sm:$0xf] %vm378, %v353
  %387 = vst.msk [vmem:[%s3 + $0x20] sm:$0xf] %vm378, %v354
  %388 = vst.msk [vmem:[%s3 + $0x24] sm:$0xf] %vm378, %v355
  %389 = vst.msk [vmem:[%s3 + $0x28] sm:$0xf] %vm378, %v356
  %390 = vst.msk [vmem:[%s3 + $0x2c] sm:$0xf] %vm378, %v357
  %391 = vst.msk [vmem:[%s3 + $0x30] sm:$0xf] %vm378, %v358
  %392 = vst.msk [vmem:[%s3 + $0x34] sm:$0xf] %vm378, %v359
  %393 = vst.msk [vmem:[%s3 + $0x38] sm:$0xf] %vm378, %v360
  %394 = vst.msk [vmem:[%s3 + $0x3c] sm:$0xf] %vm378, %v361
  // Predicated region
  $region14: #{_lambda_.9} parent=0 // pred_check
    _
  $region15: #{_lambda_.9} parent=0 // pred_check_branch
    %396 = sbr.rel (0) target = $region17
  $region16: #{_lambda_.9} parent=0 // pred_region
    _
  $region17: #{_lambda_.9} parent=0 // pred_fallthru
    _
  // Predicated region
  $region18: #{_lambda_.9} parent=0 // pred_check
    _
  $region19: #{_lambda_.9} parent=0 // pred_check_branch
    %398 = sbr.rel (0) target = $region21
  $region20: #{_lambda_.9} parent=0 // pred_region
    _
  $region21: #{_lambda_.9} parent=0 // pred_fallthru
    _

// kernel: _lambda_.10
$region0: #{_lambda_.10}
  #allocation0 [shape = 'u32[]', space=smem, size = 0x4, offset = 0x4, fixed_abs, tag = 'smem constant byte address 0x4 - core index']
  #allocation1 [shape = 'u32[144,128]{1,0:T(1,128)}', space=vmem, size = 0x12000, scoped, tag = 'internal scratch']
  %s0 = inlined_call_operand.vmem [shape: bf16[64,288], index: 0, kind: input, shape index: {}]
  %s1 = inlined_call_operand.vmem [shape: bf16[288,32], index: 1, kind: input, shape index: {}]
  %s2 = inlined_call_operand.vmem [shape: f32[1,32], index: 2, kind: input, shape index: {}]
  %s3 = inlined_call_operand.vmem [shape: bf16[288,32], index: 3, kind: input, shape index: {}]
  %s4 = inlined_call_operand.vmem [shape: f32[1,32], index: 4, kind: input, shape index: {}]
  %s5 = inlined_call_operand.vmem [shape: bf16[64,32], index: 5, kind: output, shape index: {0}]
  %s6 = inlined_call_operand.vmem [shape: bf16[64,32], index: 6, kind: output, shape index: {1}]
  %7 = xla_tuple %s5, %s6
  %s8 = sld [smem:[#allocation0]]
  $region38: #{_lambda_.10} parent=0
    _
  %s10 = ssub.s32 1, %s8
  %s11 = scalar_select 0, %s10, %s8
  // Predicated region
  $region2: #{_lambda_.10} parent=0 // pred_check
    _
  $region3: #{_lambda_.10} parent=0 // pred_check_branch
    %13 = sbr.rel (0) target = $region5
  $region4: #{_lambda_.10} parent=0 // pred_region
    _
  $region5: #{_lambda_.10} parent=0 // pred_fallthru
    _
  // Predicated region
  $region6: #{_lambda_.10} parent=0 // pred_check
    _
  $region7: #{_lambda_.10} parent=0 // pred_check_branch
    %15 = sbr.rel (0) target = $region9
  $region8: #{_lambda_.10} parent=0 // pred_region
    _
  $region9: #{_lambda_.10} parent=0 // pred_fallthru
    _
  // Predicated region
  $region10: #{_lambda_.10} parent=0 // pred_check
    _
  $region11: #{_lambda_.10} parent=0 // pred_check_branch
    %17 = sbr.rel (0) target = $region13
  $region12: #{_lambda_.10} parent=0 // pred_region
    _
  $region13: #{_lambda_.10} parent=0 // pred_fallthru
    _
  // Predicated region
  $region14: #{_lambda_.10} parent=0 // pred_check
    _
  $region15: #{_lambda_.10} parent=0 // pred_check_branch
    %19 = sbr.rel (0) target = $region17
  $region16: #{_lambda_.10} parent=0 // pred_region
    _
  $region17: #{_lambda_.10} parent=0 // pred_fallthru
    _
  // Predicated region
  $region18: #{_lambda_.10} parent=0 // pred_check
    _
  $region19: #{_lambda_.10} parent=0 // pred_check_branch
    %21 = sbr.rel (0) target = $region21
  $region20: #{_lambda_.10} parent=0 // pred_region
    _
  $region21: #{_lambda_.10} parent=0 // pred_fallthru
    _
  %v23 = vld [vmem:[%s0] sm:$0xff]
  %v24 = vld [vmem:[%s0 + $0x8] sm:$0xf]
  %v25 = vld [vmem:[%s0 + $0xc] sm:$0xff]
  %v26 = vld [vmem:[%s0 + $0x14] sm:$0xf]
  %v27 = vld [vmem:[%s0 + $0x18] sm:$0xff]
  %v28 = vld [vmem:[%s0 + $0x20] sm:$0xf]
  %v29 = vld [vmem:[%s0 + $0x24] sm:$0xff]
  %v30 = vld [vmem:[%s0 + $0x2c] sm:$0xf]
  %v31 = vld [vmem:[%s0 + $0x30] sm:$0xff]
  %v32 = vld [vmem:[%s0 + $0x38] sm:$0xf]
  %v33 = vld [vmem:[%s0 + $0x3c] sm:$0xff]
  %v34 = vld [vmem:[%s0 + $0x44] sm:$0xf]
  %v35 = vld [vmem:[%s0 + $0x48] sm:$0xff]
  %v36 = vld [vmem:[%s0 + $0x50] sm:$0xf]
  %v37 = vld [vmem:[%s0 + $0x54] sm:$0xff]
  %v38 = vld [vmem:[%s0 + $0x5c] sm:$0xf]
  %v39 = vld [vmem:[%s1] sm:$0xf]
  %v40 = vld [vmem:[%s1 + $0x4] sm:$0xf]
  %v41 = vld [vmem:[%s1 + $0x8] sm:$0xf]
  %v42 = vld [vmem:[%s1 + $0xc] sm:$0xf]
  %v43 = vld [vmem:[%s1 + $0x10] sm:$0xf]
  %v44 = vld [vmem:[%s1 + $0x14] sm:$0xf]
  %v45 = vld [vmem:[%s1 + $0x18] sm:$0xf]
  %v46 = vld [vmem:[%s1 + $0x1c] sm:$0xf]
  %v47 = vld [vmem:[%s1 + $0x20] sm:$0xf]
  %v48 = vld [vmem:[%s1 + $0x24] sm:$0xf]
  %v49 = vld [vmem:[%s1 + $0x28] sm:$0xf]
  %v50 = vld [vmem:[%s1 + $0x2c] sm:$0xf]
  %v51 = vld [vmem:[%s1 + $0x30] sm:$0xf]
  %v52 = vld [vmem:[%s1 + $0x34] sm:$0xf]
  %v53 = vld [vmem:[%s1 + $0x38] sm:$0xf]
  %v54 = vld [vmem:[%s1 + $0x3c] sm:$0xf]
  %v55 = vld [vmem:[%s1 + $0x40] sm:$0xf]
  %v56 = vld [vmem:[%s1 + $0x44] sm:$0xf]
  %v57 = vld [vmem:[%s1 + $0x48] sm:$0xf]
  %v58 = vld [vmem:[%s1 + $0x4c] sm:$0xf]
  %v59 = vld [vmem:[%s1 + $0x50] sm:$0xf]
  %v60 = vld [vmem:[%s1 + $0x54] sm:$0xf]
  %v61 = vld [vmem:[%s1 + $0x58] sm:$0xf]
  %v62 = vld [vmem:[%s1 + $0x5c] sm:$0xf]
  %v63 = vld [vmem:[%s1 + $0x60] sm:$0xf]
  %v64 = vld [vmem:[%s1 + $0x64] sm:$0xf]
  %v65 = vld [vmem:[%s1 + $0x68] sm:$0xf]
  %v66 = vld [vmem:[%s1 + $0x6c] sm:$0xf]
  %v67 = vld [vmem:[%s1 + $0x70] sm:$0xf]
  %v68 = vld [vmem:[%s1 + $0x74] sm:$0xf]
  %v69 = vld [vmem:[%s1 + $0x78] sm:$0xf]
  %v70 = vld [vmem:[%s1 + $0x7c] sm:$0xf]
  %v71 = vld [vmem:[%s1 + $0x80] sm:$0xf]
  %v72 = vld [vmem:[%s1 + $0x84] sm:$0xf]
  %v73 = vld [vmem:[%s1 + $0x88] sm:$0xf]
  %v74 = vld [vmem:[%s1 + $0x8c] sm:$0xf]
  %v75 = vld [vmem:[%s2] sm:$0x1]
  %v77 = vlaneseq
  %v78 = vshrl.u32 %v77, 7
  %v79 = vsub.s32 0, %v78
  %v80 = vrot.slane %v75, %v79
  %v98 = vunpack.c.l.b16 %v23
  %v99 = vunpack.c.h.b16 %v23
  %v100 = vunpack.c.l.b16 %v24
  %v101 = vunpack.c.l.b16 %v25
  %v102 = vunpack.c.h.b16 %v25
  %v103 = vunpack.c.l.b16 %v26
  %v104 = vunpack.c.l.b16 %v27
  %v105 = vunpack.c.h.b16 %v27
  %v106 = vunpack.c.l.b16 %v28
  %v107 = vunpack.c.l.b16 %v29
  %v108 = vunpack.c.h.b16 %v29
  %v109 = vunpack.c.l.b16 %v30
  %v110 = vunpack.c.l.b16 %v31
  %v111 = vunpack.c.h.b16 %v31
  %v112 = vunpack.c.l.b16 %v32
  %v113 = vunpack.c.l.b16 %v33
  %v114 = vunpack.c.h.b16 %v33
  %v115 = vunpack.c.l.b16 %v34
  %v116 = vunpack.c.l.b16 %v35
  %v117 = vunpack.c.h.b16 %v35
  %v118 = vunpack.c.l.b16 %v36
  %v119 = vunpack.c.l.b16 %v37
  %v120 = vunpack.c.h.b16 %v37
  %v121 = vunpack.c.l.b16 %v38
  %v122 = vpack.c.b16 %v101, %v98
  %v123 = vpack.c.b16 %v102, %v99
  %v124 = vpack.c.b16 %v103, %v100
  %v125 = vpack.c.b16 %v107, %v104
  %v126 = vpack.c.b16 %v108, %v105
  %v127 = vpack.c.b16 %v109, %v106
  %v128 = vpack.c.b16 %v113, %v110
  %v129 = vpack.c.b16 %v114, %v111
  %v130 = vpack.c.b16 %v115, %v112
  %v131 = vpack.c.b16 %v119, %v116
  %v132 = vpack.c.b16 %v120, %v117
  %v133 = vpack.c.b16 %v121, %v118
  %v178 = vunpack.c.l.b16 %v39
  %v179 = vunpack.c.l.b16 %v40
  %v180 = vunpack.c.l.b16 %v41
  %v181 = vunpack.c.l.b16 %v42
  %v182 = vunpack.c.l.b16 %v43
  %v183 = vunpack.c.l.b16 %v44
  %v184 = vunpack.c.l.b16 %v45
  %v185 = vunpack.c.l.b16 %v46
  %v186 = vunpack.c.l.b16 %v47
  %v187 = vunpack.c.l.b16 %v48
  %v188 = vunpack.c.l.b16 %v49
  %v189 = vunpack.c.l.b16 %v50
  %v190 = vunpack.c.l.b16 %v51
  %v191 = vunpack.c.l.b16 %v52
  %v192 = vunpack.c.l.b16 %v53
  %v193 = vunpack.c.l.b16 %v54
  %v194 = vunpack.c.l.b16 %v55
  %v195 = vunpack.c.l.b16 %v56
  %v196 = vunpack.c.l.b16 %v57
  %v197 = vunpack.c.l.b16 %v58
  %v198 = vunpack.c.l.b16 %v59
  %v199 = vunpack.c.l.b16 %v60
  %v200 = vunpack.c.l.b16 %v61
  %v201 = vunpack.c.l.b16 %v62
  %v202 = vunpack.c.l.b16 %v63
  %v203 = vunpack.c.l.b16 %v64
  %v204 = vunpack.c.l.b16 %v65
  %v205 = vunpack.c.l.b16 %v66
  %v206 = vunpack.c.l.b16 %v67
  %v207 = vunpack.c.l.b16 %v68
  %v208 = vunpack.c.l.b16 %v69
  %v209 = vunpack.c.l.b16 %v70
  %v210 = vunpack.c.l.b16 %v71
  %v211 = vunpack.c.l.b16 %v72
  %v212 = vunpack.c.l.b16 %v73
  %v213 = vunpack.c.l.b16 %v74
  %v214 = vpack.c.b16 %v179, %v178
  %v215 = vpack.c.b16 %v181, %v180
  %v216 = vpack.c.b16 %v183, %v182
  %v217 = vpack.c.b16 %v185, %v184
  %v218 = vpack.c.b16 %v187, %v186
  %v219 = vpack.c.b16 %v189, %v188
  %v220 = vpack.c.b16 %v191, %v190
  %v221 = vpack.c.b16 %v193, %v192
  %v222 = vpack.c.b16 %v195, %v194
  %v223 = vpack.c.b16 %v197, %v196
  %v224 = vpack.c.b16 %v199, %v198
  %v225 = vpack.c.b16 %v201, %v200
  %v226 = vpack.c.b16 %v203, %v202
  %v227 = vpack.c.b16 %v205, %v204
  %v228 = vpack.c.b16 %v207, %v206
  %v229 = vpack.c.b16 %v209, %v208
  %v230 = vpack.c.b16 %v211, %v210
  %v231 = vpack.c.b16 %v213, %v212
  %vm250 = vcmask 261120
  %v252 = vsel %vm250, %v124, 0
  %v255 = vsel %vm250, %v127, 0
  %v258 = vsel %vm250, %v130, 0
  %v261 = vsel %vm250, %v133, 0
  %263 = vmatprep.subr.bf16.mxu0 0
  %264 = vmatpush1.bf16.msra.mxu0 %v214
  %265 = vmatprep.subr.bf16.mxu0 0
  %266 = vmatpush1.bf16.msra.mxu0 %v215
  %267 = vmatprep.subr.bf16.mxu0 0
  %268 = vmatpush1.bf16.msra.mxu0 %v216
  %269 = vmatprep.subr.bf16.mxu0 0
  %270 = vmatpush1.bf16.msra.mxu0 %v217
  %271 = vmatprep.subr.bf16.mxu0 0
  %272 = vmatpush1.bf16.msra.mxu0 %v218
  %273 = vmatprep.subr.bf16.mxu0 0
  %274 = vmatpush1.bf16.msra.mxu0 %v219
  %275 = vmatprep.subr.bf16.mxu0 0
  %276 = vmatpush1.bf16.msra.mxu0 %v220
  %277 = vmatprep.subr.bf16.mxu0 0
  %278 = vmatpush1.bf16.msra.mxu0 %v221
  %279 = vmatprep.subr.bf16.mxu0 0
  %280 = vmatpush1.bf16.msra.mxu0 %v222
  %281 = vmatprep.subr.bf16.mxu0 0
  %282 = vmatpush1.bf16.msra.mxu0 %v223
  %283 = vmatprep.subr.bf16.mxu0 0
  %284 = vmatpush1.bf16.msra.mxu0 %v224
  %285 = vmatprep.subr.bf16.mxu0 0
  %286 = vmatpush1.bf16.msra.mxu0 %v225
  %287 = vmatprep.subr.bf16.mxu0 0
  %288 = vmatpush1.bf16.msra.mxu0 %v226
  %289 = vmatprep.subr.bf16.mxu0 0
  %290 = vmatpush1.bf16.msra.mxu0 %v227
  %291 = vmatprep.subr.bf16.mxu0 0
  %292 = vmatpush1.bf16.msra.mxu0 %v228
  %293 = vmatprep.subr.bf16.mxu0 0
  %294 = vmatpush1.bf16.msra.mxu0 %v229
  %295 = vmatprep.mubr.bf16.mxu0 %v123
  %296 = vmatmul.mubr.bf16.gmra.mrb[0].mxu0 %v122
  %v297 = vpop.f32.mrb[0].mxu0
  %v298 = vadd.f32 %v80, %v297
  %v299 = vpop.f32.mrb[0].mxu0
  %v300 = vpop.f32.mrb[0].mxu0
  %v301 = vadd.f32 %v80, %v300
  %v302 = vpop.f32.mrb[0].mxu0
  %303 = vmatprep.mubr.bf16.mxu0 %v126
  %304 = vmatmul.mubr.bf16.gmra.mrb[0].mxu0 %v125
  %v305 = vpop.f32.mrb[0].mxu0
  %v306 = vadd.f32 %v80, %v305
  %v307 = vpop.f32.mrb[0].mxu0
  %v308 = vpop.f32.mrb[0].mxu0
  %v309 = vadd.f32 %v80, %v308
  %v310 = vpop.f32.mrb[0].mxu0
  %311 = vmatprep.mubr.bf16.mxu0 %v129
  %312 = vmatmul.mubr.bf16.gmra.mrb[0].mxu0 %v128
  %v313 = vpop.f32.mrb[0].mxu0
  %v314 = vadd.f32 %v80, %v313
  %v315 = vpop.f32.mrb[0].mxu0
  %v316 = vpop.f32.mrb[0].mxu0
  %v317 = vadd.f32 %v80, %v316
  %v318 = vpop.f32.mrb[0].mxu0
  %319 = vmatprep.mubr.bf16.mxu0 %v132
  %320 = vmatmul.mubr.bf16.gmra.mrb[0].mxu0 %v131
  %v321 = vpop.f32.mrb[0].mxu0
  %v322 = vadd.f32 %v80, %v321
  %v323 = vpop.f32.mrb[0].mxu0
  %v324 = vpop.f32.mrb[0].mxu0
  %v325 = vadd.f32 %v80, %v324
  %v326 = vpop.f32.mrb[0].mxu0
  %327 = vdwg.mxu0
  %328 = vmatprep.subr.bf16.mxu0 0
  %329 = vmatpush1.bf16.msra.mxu0 %v230
  %330 = vmatprep.subr.bf16.mxu0 0
  %331 = vmatpush1.bf16.msra.mxu0 %v231
  %332 = vmatprep.subr.bf16.mxu0 0
  %333 = vmatpush1.bf16.msra.mxu0 0
  %334 = vmatprep.subr.bf16.mxu0 0
  %335 = vmatpush1.bf16.msra.mxu0 0
  %336 = vmatprep.subr.bf16.mxu0 0
  %337 = vmatpush1.bf16.msra.mxu0 0
  %338 = vmatprep.subr.bf16.mxu0 0
  %339 = vmatpush1.bf16.msra.mxu0 0
  %340 = vmatprep.subr.bf16.mxu0 0
  %341 = vmatpush1.bf16.msra.mxu0 0
  %342 = vmatprep.subr.bf16.mxu0 0
  %343 = vmatpush1.bf16.msra.mxu0 0
  %344 = vmatprep.subr.bf16.mxu0 0
  %345 = vmatpush1.bf16.msra.mxu0 0
  %346 = vmatprep.subr.bf16.mxu0 0
  %347 = vmatpush1.bf16.msra.mxu0 0
  %348 = vmatprep.subr.bf16.mxu0 0
  %349 = vmatpush1.bf16.msra.mxu0 0
  %350 = vmatprep.subr.bf16.mxu0 0
  %351 = vmatpush1.bf16.msra.mxu0 0
  %352 = vmatprep.subr.bf16.mxu0 0
  %353 = vmatpush1.bf16.msra.mxu0 0
  %354 = vmatprep.subr.bf16.mxu0 0
  %355 = vmatpush1.bf16.msra.mxu0 0
  %356 = vmatprep.subr.bf16.mxu0 0
  %357 = vmatpush1.bf16.msra.mxu0 0
  %358 = vmatprep.subr.bf16.mxu0 0
  %359 = vmatpush1.bf16.msra.mxu0 0
  %360 = vmatprep.mubr.bf16.mxu0 0
  %361 = vmatmul.mubr.bf16.gmra.mrb[0].mxu0 %v252
  %v362 = vpop.f32.mrb[0].mxu0
  %v363 = vadd.f32 %v298, %v362
  %v364 = vpop.f32.mrb[0].mxu0
  %v365 = vpop.f32.mrb[0].mxu0
  %v366 = vadd.f32 %v301, %v365
  %v367 = vpop.f32.mrb[0].mxu0
  %368 = vmatprep.mubr.bf16.mxu0 0
  %369 = vmatmul.mubr.bf16.gmra.mrb[0].mxu0 %v255
  %v370 = vpop.f32.mrb[0].mxu0
  %v371 = vadd.f32 %v306, %v370
  %v372 = vpop.f32.mrb[0].mxu0
  %v373 = vpop.f32.mrb[0].mxu0
  %v374 = vadd.f32 %v309, %v373
  %v375 = vpop.f32.mrb[0].mxu0
  %376 = vmatprep.mubr.bf16.mxu0 0
  %377 = vmatmul.mubr.bf16.gmra.mrb[0].mxu0 %v258
  %v378 = vpop.f32.mrb[0].mxu0
  %v379 = vadd.f32 %v314, %v378
  %v380 = vpop.f32.mrb[0].mxu0
  %v381 = vpop.f32.mrb[0].mxu0
  %v382 = vadd.f32 %v317, %v381
  %v383 = vpop.f32.mrb[0].mxu0
  %384 = vmatprep.mubr.bf16.mxu0 0
  %385 = vmatmul.mubr.bf16.gmra.mrb[0].mxu0 %v261
  %v386 = vpop.f32.mrb[0].mxu0
  %v387 = vadd.f32 %v322, %v386
  %v388 = vpop.f32.mrb[0].mxu0
  %v389 = vpop.f32.mrb[0].mxu0
  %v390 = vadd.f32 %v325, %v389
  %v391 = vpop.f32.mrb[0].mxu0
  %392 = vdwg.mxu0
  %v393 = vmul.f32 %v363, 0.5
  %v394 = vmul.f32 %v366, 0.5
  %v395 = vmul.f32 %v371, 0.5
  %v396 = vmul.f32 %v374, 0.5
  %v397 = vmul.f32 %v379, 0.5
  %v398 = vmul.f32 %v382, 0.5
  %v399 = vmul.f32 %v387, 0.5
  %v400 = vmul.f32 %v390, 0.5
  %v401 = vmul.f32 %v363, 0.70710677
  %v402 = vmul.f32 %v366, 0.70710677
  %v403 = vmul.f32 %v371, 0.70710677
  %v404 = vmul.f32 %v374, 0.70710677
  %v405 = vmul.f32 %v379, 0.70710677
  %v406 = vmul.f32 %v382, 0.70710677
  %v407 = vmul.f32 %v387, 0.70710677
  %v408 = vmul.f32 %v390, 0.70710677
  %v409 = verf.f32.pop %v401
  %v410 = verf.f32.pop %v402
  %v411 = verf.f32.pop %v403
  %v412 = verf.f32.pop %v404
  %v413 = verf.f32.pop %v405
  %v414 = verf.f32.pop %v406
  %v415 = verf.f32.pop %v407
  %v416 = verf.f32.pop %v408
  %v417 = vadd.f32 %v409, 1.0
  %v418 = vadd.f32 %v410, 1.0
  %v419 = vadd.f32 %v411, 1.0
  %v420 = vadd.f32 %v412, 1.0
  %v421 = vadd.f32 %v413, 1.0
  %v422 = vadd.f32 %v414, 1.0
  %v423 = vadd.f32 %v415, 1.0
  %v424 = vadd.f32 %v416, 1.0
  %v425 = vmul.f32 %v393, %v417
  %v426 = vmul.f32 %v394, %v418
  %v427 = vmul.f32 %v395, %v419
  %v428 = vmul.f32 %v396, %v420
  %v429 = vmul.f32 %v397, %v421
  %v430 = vmul.f32 %v398, %v422
  %v431 = vmul.f32 %v399, %v423
  %v432 = vmul.f32 %v400, %v424
  %v433 = vpack.c.bf16 %v426, %v425
  %v434 = vpack.c.bf16 %v428, %v427
  %v435 = vpack.c.bf16 %v430, %v429
  %v436 = vpack.c.bf16 %v432, %v431
  %v441 = vunpack.c.l.b16 %v433
  %v442 = vunpack.c.h.b16 %v433
  %v443 = vunpack.c.l.b16 %v434
  %v444 = vunpack.c.h.b16 %v434
  %v445 = vunpack.c.l.b16 %v435
  %v446 = vunpack.c.h.b16 %v435
  %v447 = vunpack.c.l.b16 %v436
  %v448 = vunpack.c.h.b16 %v436
  %v449 = vpack.c.b16 %v441, %v441
  %v450 = vpack.c.b16 %v442, %v442
  %v451 = vpack.c.b16 %v443, %v443
  %v452 = vpack.c.b16 %v444, %v444
  %v453 = vpack.c.b16 %v445, %v445
  %v454 = vpack.c.b16 %v446, %v446
  %v455 = vpack.c.b16 %v447, %v447
  %v456 = vpack.c.b16 %v448, %v448
  %vm465 = vcmask 257024
  %466 = vst.msk [vmem:[%s5] sm:$0xf] %vm465, %v449
  %467 = vst.msk [vmem:[%s5 + $0x4] sm:$0xf] %vm465, %v450
  %468 = vst.msk [vmem:[%s5 + $0x8] sm:$0xf] %vm465, %v451
  %469 = vst.msk [vmem:[%s5 + $0xc] sm:$0xf] %vm465, %v452
  %470 = vst.msk [vmem:[%s5 + $0x10] sm:$0xf] %vm465, %v453
  %471 = vst.msk [vmem:[%s5 + $0x14] sm:$0xf] %vm465, %v454
  %472 = vst.msk [vmem:[%s5 + $0x18] sm:$0xf] %vm465, %v455
  %473 = vst.msk [vmem:[%s5 + $0x1c] sm:$0xf] %vm465, %v456
  %v474 = vld [vmem:[%s3] sm:$0xf]
  %v475 = vld [vmem:[%s3 + $0x4] sm:$0xf]
  %v476 = vld [vmem:[%s3 + $0x8] sm:$0xf]
  %v477 = vld [vmem:[%s3 + $0xc] sm:$0xf]
  %v478 = vld [vmem:[%s3 + $0x10] sm:$0xf]
  %v479 = vld [vmem:[%s3 + $0x14] sm:$0xf]
  %v480 = vld [vmem:[%s3 + $0x18] sm:$0xf]
  %v481 = vld [vmem:[%s3 + $0x1c] sm:$0xf]
  %v482 = vld [vmem:[%s3 + $0x20] sm:$0xf]
  %v483 = vld [vmem:[%s3 + $0x24] sm:$0xf]
  %v484 = vld [vmem:[%s3 + $0x28] sm:$0xf]
  %v485 = vld [vmem:[%s3 + $0x2c] sm:$0xf]
  %v486 = vld [vmem:[%s3 + $0x30] sm:$0xf]
  %v487 = vld [vmem:[%s3 + $0x34] sm:$0xf]
  %v488 = vld [vmem:[%s3 + $0x38] sm:$0xf]
  %v489 = vld [vmem:[%s3 + $0x3c] sm:$0xf]
  %v490 = vld [vmem:[%s3 + $0x40] sm:$0xf]
  %v491 = vld [vmem:[%s3 + $0x44] sm:$0xf]
  %v492 = vld [vmem:[%s3 + $0x48] sm:$0xf]
  %v493 = vld [vmem:[%s3 + $0x4c] sm:$0xf]
  %v494 = vld [vmem:[%s3 + $0x50] sm:$0xf]
  %v495 = vld [vmem:[%s3 + $0x54] sm:$0xf]
  %v496 = vld [vmem:[%s3 + $0x58] sm:$0xf]
  %v497 = vld [vmem:[%s3 + $0x5c] sm:$0xf]
  %v498 = vld [vmem:[%s3 + $0x60] sm:$0xf]
  %v499 = vld [vmem:[%s3 + $0x64] sm:$0xf]
  %v500 = vld [vmem:[%s3 + $0x68] sm:$0xf]
  %v501 = vld [vmem:[%s3 + $0x6c] sm:$0xf]
  %v502 = vld [vmem:[%s3 + $0x70] sm:$0xf]
  %v503 = vld [vmem:[%s3 + $0x74] sm:$0xf]
  %v504 = vld [vmem:[%s3 + $0x78] sm:$0xf]
  %v505 = vld [vmem:[%s3 + $0x7c] sm:$0xf]
  %v506 = vld [vmem:[%s3 + $0x80] sm:$0xf]
  %v507 = vld [vmem:[%s3 + $0x84] sm:$0xf]
  %v508 = vld [vmem:[%s3 + $0x88] sm:$0xf]
  %v509 = vld [vmem:[%s3 + $0x8c] sm:$0xf]
  %v510 = vld [vmem:[%s4] sm:$0x1]
  %v512 = vlaneseq
  %v513 = vshrl.u32 %v512, 7
  %v514 = vsub.s32 0, %v513
  %v515 = vrot.slane %v510, %v514
  %v553 = vunpack.c.l.b16 %v474
  %v554 = vunpack.c.l.b16 %v475
  %v555 = vunpack.c.l.b16 %v476
  %v556 = vunpack.c.l.b16 %v477
  %v557 = vunpack.c.l.b16 %v478
  %v558 = vunpack.c.l.b16 %v479
  %v559 = vunpack.c.l.b16 %v480
  %v560 = vunpack.c.l.b16 %v481
  %v561 = vunpack.c.l.b16 %v482
  %v562 = vunpack.c.l.b16 %v483
  %v563 = vunpack.c.l.b16 %v484
  %v564 = vunpack.c.l.b16 %v485
  %v565 = vunpack.c.l.b16 %v486
  %v566 = vunpack.c.l.b16 %v487
  %v567 = vunpack.c.l.b16 %v488
  %v568 = vunpack.c.l.b16 %v489
  %v569 = vunpack.c.l.b16 %v490
  %v570 = vunpack.c.l.b16 %v491
  %v571 = vunpack.c.l.b16 %v492
  %v572 = vunpack.c.l.b16 %v493
  %v573 = vunpack.c.l.b16 %v494
  %v574 = vunpack.c.l.b16 %v495
  %v575 = vunpack.c.l.b16 %v496
  %v576 = vunpack.c.l.b16 %v497
  %v577 = vunpack.c.l.b16 %v498
  %v578 = vunpack.c.l.b16 %v499
  %v579 = vunpack.c.l.b16 %v500
  %v580 = vunpack.c.l.b16 %v501
  %v581 = vunpack.c.l.b16 %v502
  %v582 = vunpack.c.l.b16 %v503
  %v583 = vunpack.c.l.b16 %v504
  %v584 = vunpack.c.l.b16 %v505
  %v585 = vunpack.c.l.b16 %v506
  %v586 = vunpack.c.l.b16 %v507
  %v587 = vunpack.c.l.b16 %v508
  %v588 = vunpack.c.l.b16 %v509
  %v589 = vpack.c.b16 %v554, %v553
  %v590 = vpack.c.b16 %v556, %v555
  %v591 = vpack.c.b16 %v558, %v557
  %v592 = vpack.c.b16 %v560, %v559
  %v593 = vpack.c.b16 %v562, %v561
  %v594 = vpack.c.b16 %v564, %v563
  %v595 = vpack.c.b16 %v566, %v565
  %v596 = vpack.c.b16 %v568, %v567
  %v597 = vpack.c.b16 %v570, %v569
  %v598 = vpack.c.b16 %v572, %v571
  %v599 = vpack.c.b16 %v574, %v573
  %v600 = vpack.c.b16 %v576, %v575
  %v601 = vpack.c.b16 %v578, %v577
  %v602 = vpack.c.b16 %v580, %v579
  %v603 = vpack.c.b16 %v582, %v581
  %v604 = vpack.c.b16 %v584, %v583
  %v605 = vpack.c.b16 %v586, %v585
  %v606 = vpack.c.b16 %v588, %v587
  %625 = vmatprep.subr.bf16.mxu0 0
  %626 = vmatpush1.bf16.msra.mxu0 %v589
  %627 = vmatprep.subr.bf16.mxu0 0
  %628 = vmatpush1.bf16.msra.mxu0 %v590
  %629 = vmatprep.subr.bf16.mxu0 0
  %630 = vmatpush1.bf16.msra.mxu0 %v591
  %631 = vmatprep.subr.bf16.mxu0 0
  %632 = vmatpush1.bf16.msra.mxu0 %v592
  %633 = vmatprep.subr.bf16.mxu0 0
  %634 = vmatpush1.bf16.msra.mxu0 %v593
  %635 = vmatprep.subr.bf16.mxu0 0
  %636 = vmatpush1.bf16.msra.mxu0 %v594
  %637 = vmatprep.subr.bf16.mxu0 0
  %638 = vmatpush1.bf16.msra.mxu0 %v595
  %639 = vmatprep.subr.bf16.mxu0 0
  %640 = vmatpush1.bf16.msra.mxu0 %v596
  %641 = vmatprep.subr.bf16.mxu0 0
  %642 = vmatpush1.bf16.msra.mxu0 %v597
  %643 = vmatprep.subr.bf16.mxu0 0
  %644 = vmatpush1.bf16.msra.mxu0 %v598
  %645 = vmatprep.subr.bf16.mxu0 0
  %646 = vmatpush1.bf16.msra.mxu0 %v599
  %647 = vmatprep.subr.bf16.mxu0 0
  %648 = vmatpush1.bf16.msra.mxu0 %v600
  %649 = vmatprep.subr.bf16.mxu0 0
  %650 = vmatpush1.bf16.msra.mxu0 %v601
  %651 = vmatprep.subr.bf16.mxu0 0
  %652 = vmatpush1.bf16.msra.mxu0 %v602
  %653 = vmatprep.subr.bf16.mxu0 0
  %654 = vmatpush1.bf16.msra.mxu0 %v603
  %655 = vmatprep.subr.bf16.mxu0 0
  %656 = vmatpush1.bf16.msra.mxu0 %v604
  %657 = vmatprep.mubr.bf16.mxu0 %v123
  %658 = vmatmul.mubr.bf16.gmra.mrb[0].mxu0 %v122
  %v659 = vpop.f32.mrb[0].mxu0
  %v660 = vadd.f32 %v515, %v659
  %v661 = vpop.f32.mrb[0].mxu0
  %v662 = vpop.f32.mrb[0].mxu0
  %v663 = vadd.f32 %v515, %v662
  %v664 = vpop.f32.mrb[0].mxu0
  %665 = vmatprep.mubr.bf16.mxu0 %v126
  %666 = vmatmul.mubr.bf16.gmra.mrb[0].mxu0 %v125
  %v667 = vpop.f32.mrb[0].mxu0
  %v668 = vadd.f32 %v515, %v667
  %v669 = vpop.f32.mrb[0].mxu0
  %v670 = vpop.f32.mrb[0].mxu0
  %v671 = vadd.f32 %v515, %v670
  %v672 = vpop.f32.mrb[0].mxu0
  %673 = vmatprep.mubr.bf16.mxu0 %v129
  %674 = vmatmul.mubr.bf16.gmra.mrb[0].mxu0 %v128
  %v675 = vpop.f32.mrb[0].mxu0
  %v676 = vadd.f32 %v515, %v675
  %v677 = vpop.f32.mrb[0].mxu0
  %v678 = vpop.f32.mrb[0].mxu0
  %v679 = vadd.f32 %v515, %v678
  %v680 = vpop.f32.mrb[0].mxu0
  %681 = vmatprep.mubr.bf16.mxu0 %v132
  %682 = vmatmul.mubr.bf16.gmra.mrb[0].mxu0 %v131
  %v683 = vpop.f32.mrb[0].mxu0
  %v684 = vadd.f32 %v515, %v683
  %v685 = vpop.f32.mrb[0].mxu0
  %v686 = vpop.f32.mrb[0].mxu0
  %v687 = vadd.f32 %v515, %v686
  %v688 = vpop.f32.mrb[0].mxu0
  %689 = vdwg.mxu0
  %690 = vmatprep.subr.bf16.mxu0 0
  %691 = vmatpush1.bf16.msra.mxu0 %v605
  %692 = vmatprep.subr.bf16.mxu0 0
  %693 = vmatpush1.bf16.msra.mxu0 %v606
  %694 = vmatprep.subr.bf16.mxu0 0
  %695 = vmatpush1.bf16.msra.mxu0 0
  %696 = vmatprep.subr.bf16.mxu0 0
  %697 = vmatpush1.bf16.msra.mxu0 0
  %698 = vmatprep.subr.bf16.mxu0 0
  %699 = vmatpush1.bf16.msra.mxu0 0
  %700 = vmatprep.subr.bf16.mxu0 0
  %701 = vmatpush1.bf16.msra.mxu0 0
  %702 = vmatprep.subr.bf16.mxu0 0
  %703 = vmatpush1.bf16.msra.mxu0 0
  %704 = vmatprep.subr.bf16.mxu0 0
  %705 = vmatpush1.bf16.msra.mxu0 0
  %706 = vmatprep.subr.bf16.mxu0 0
  %707 = vmatpush1.bf16.msra.mxu0 0
  %708 = vmatprep.subr.bf16.mxu0 0
  %709 = vmatpush1.bf16.msra.mxu0 0
  %710 = vmatprep.subr.bf16.mxu0 0
  %711 = vmatpush1.bf16.msra.mxu0 0
  %712 = vmatprep.subr.bf16.mxu0 0
  %713 = vmatpush1.bf16.msra.mxu0 0
  %714 = vmatprep.subr.bf16.mxu0 0
  %715 = vmatpush1.bf16.msra.mxu0 0
  %716 = vmatprep.subr.bf16.mxu0 0
  %717 = vmatpush1.bf16.msra.mxu0 0
  %718 = vmatprep.subr.bf16.mxu0 0
  %719 = vmatpush1.bf16.msra.mxu0 0
  %720 = vmatprep.subr.bf16.mxu0 0
  %721 = vmatpush1.bf16.msra.mxu0 0
  %722 = vmatprep.mubr.bf16.mxu0 0
  %723 = vmatmul.mubr.bf16.gmra.mrb[0].mxu0 %v252
  %v724 = vpop.f32.mrb[0].mxu0
  %v725 = vadd.f32 %v660, %v724
  %v726 = vpop.f32.mrb[0].mxu0
  %v727 = vpop.f32.mrb[0].mxu0
  %v728 = vadd.f32 %v663, %v727
  %v729 = vpop.f32.mrb[0].mxu0
  %730 = vmatprep.mubr.bf16.mxu0 0
  %731 = vmatmul.mubr.bf16.gmra.mrb[0].mxu0 %v255
  %v732 = vpop.f32.mrb[0].mxu0
  %v733 = vadd.f32 %v668, %v732
  %v734 = vpop.f32.mrb[0].mxu0
  %v735 = vpop.f32.mrb[0].mxu0
  %v736 = vadd.f32 %v671, %v735
  %v737 = vpop.f32.mrb[0].mxu0
  %738 = vmatprep.mubr.bf16.mxu0 0
  %739 = vmatmul.mubr.bf16.gmra.mrb[0].mxu0 %v258
  %v740 = vpop.f32.mrb[0].mxu0
  %v741 = vadd.f32 %v676, %v740
  %v742 = vpop.f32.mrb[0].mxu0
  %v743 = vpop.f32.mrb[0].mxu0
  %v744 = vadd.f32 %v679, %v743
  %v745 = vpop.f32.mrb[0].mxu0
  %746 = vmatprep.mubr.bf16.mxu0 0
  %747 = vmatmul.mubr.bf16.gmra.mrb[0].mxu0 %v261
  %v748 = vpop.f32.mrb[0].mxu0
  %v749 = vadd.f32 %v684, %v748
  %v750 = vpop.f32.mrb[0].mxu0
  %v751 = vpop.f32.mrb[0].mxu0
  %v752 = vadd.f32 %v687, %v751
  %v753 = vpop.f32.mrb[0].mxu0
  %754 = vdwg.mxu0
  %v755 = vpack.c.bf16 %v728, %v725
  %v756 = vpack.c.bf16 %v736, %v733
  %v757 = vpack.c.bf16 %v744, %v741
  %v758 = vpack.c.bf16 %v752, %v749
  %v763 = vunpack.c.l.b16 %v755
  %v764 = vunpack.c.h.b16 %v755
  %v765 = vunpack.c.l.b16 %v756
  %v766 = vunpack.c.h.b16 %v756
  %v767 = vunpack.c.l.b16 %v757
  %v768 = vunpack.c.h.b16 %v757
  %v769 = vunpack.c.l.b16 %v758
  %v770 = vunpack.c.h.b16 %v758
  %v771 = vpack.c.b16 %v763, %v763
  %v772 = vpack.c.b16 %v764, %v764
  %v773 = vpack.c.b16 %v765, %v765
  %v774 = vpack.c.b16 %v766, %v766
  %v775 = vpack.c.b16 %v767, %v767
  %v776 = vpack.c.b16 %v768, %v768
  %v777 = vpack.c.b16 %v769, %v769
  %v778 = vpack.c.b16 %v770, %v770
  %787 = vst.msk [vmem:[%s6] sm:$0xf] %vm465, %v771
  %788 = vst.msk [vmem:[%s6 + $0x4] sm:$0xf] %vm465, %v772
  %789 = vst.msk [vmem:[%s6 + $0x8] sm:$0xf] %vm465, %v773
  %790 = vst.msk [vmem:[%s6 + $0xc] sm:$0xf] %vm465, %v774
  %791 = vst.msk [vmem:[%s6 + $0x10] sm:$0xf] %vm465, %v775
  %792 = vst.msk [vmem:[%s6 + $0x14] sm:$0xf] %vm465, %v776
  %793 = vst.msk [vmem:[%s6 + $0x18] sm:$0xf] %vm465, %v777
  %794 = vst.msk [vmem:[%s6 + $0x1c] sm:$0xf] %vm465, %v778
  // Predicated region
  $region22: #{_lambda_.10} parent=0 // pred_check
    _
  $region23: #{_lambda_.10} parent=0 // pred_check_branch
    %796 = sbr.rel (0) target = $region25
  $region24: #{_lambda_.10} parent=0 // pred_region
    _
  $region25: #{_lambda_.10} parent=0 // pred_fallthru
    _
  // Predicated region
  $region26: #{_lambda_.10} parent=0 // pred_check
    _
  $region27: #{_lambda_.10} parent=0 // pred_check_branch
    %798 = sbr.rel (0) target = $region29
  $region28: #{_lambda_.10} parent=0 // pred_region
    _
  $region29: #{_lambda_.10} parent=0 // pred_fallthru
    _
  // Predicated region
  $region30: #{_lambda_.10} parent=0 // pred_check
    _
  $region31: #{_lambda_.10} parent=0 // pred_check_branch
    %800 = sbr.rel (0) target = $region33
  $region32: #{_lambda_.10} parent=0 // pred_region
    _
  $region33: #{_lambda_.10} parent=0 // pred_fallthru
    _
  // Predicated region
  $region34: #{_lambda_.10} parent=0 // pred_check
    _
  $region35: #{_lambda_.10} parent=0 // pred_check_branch
    %802 = sbr.rel (0) target = $region37
  $region36: #{_lambda_.10} parent=0 // pred_region
    _
  $region37: #{_lambda_.10} parent=0 // pred_fallthru
    _

// kernel: _lambda_.11
$region0: #{_lambda_.11}
  #allocation0 [shape = 'u32[]', space=smem, size = 0x4, offset = 0x4, fixed_abs, tag = 'smem constant byte address 0x4 - core index']
  #allocation1 [shape = 'u32[144,128]{1,0:T(1,128)}', space=vmem, size = 0x12000, scoped, tag = 'internal scratch']
  %s0 = inlined_call_operand.vmem [shape: bf16[64,288], index: 0, kind: input, shape index: {}]
  %s1 = inlined_call_operand.vmem [shape: bf16[288,32], index: 1, kind: input, shape index: {}]
  %s2 = inlined_call_operand.vmem [shape: f32[1,32], index: 2, kind: input, shape index: {}]
  %s3 = inlined_call_operand.vmem [shape: bf16[64,32], index: 3, kind: input, shape index: {}]
  %s4 = inlined_call_operand.vmem [shape: bf16[64,32], index: 4, kind: output, shape index: {}]
  %s5 = sld [smem:[#allocation0]]
  $region26: #{_lambda_.11} parent=0
    _
  %s7 = ssub.s32 1, %s5
  %s8 = scalar_select 0, %s7, %s5
  // Predicated region
  $region2: #{_lambda_.11} parent=0 // pred_check
    _
  $region3: #{_lambda_.11} parent=0 // pred_check_branch
    %10 = sbr.rel (0) target = $region5
  $region4: #{_lambda_.11} parent=0 // pred_region
    _
  $region5: #{_lambda_.11} parent=0 // pred_fallthru
    _
  // Predicated region
  $region6: #{_lambda_.11} parent=0 // pred_check
    _
  $region7: #{_lambda_.11} parent=0 // pred_check_branch
    %12 = sbr.rel (0) target = $region9
  $region8: #{_lambda_.11} parent=0 // pred_region
    _
  $region9: #{_lambda_.11} parent=0 // pred_fallthru
    _
  // Predicated region
  $region10: #{_lambda_.11} parent=0 // pred_check
    _
  $region11: #{_lambda_.11} parent=0 // pred_check_branch
    %14 = sbr.rel (0) target = $region13
  $region12: #{_lambda_.11} parent=0 // pred_region
    _
  $region13: #{_lambda_.11} parent=0 // pred_fallthru
    _
  // Predicated region
  $region14: #{_lambda_.11} parent=0 // pred_check
    _
  $region15: #{_lambda_.11} parent=0 // pred_check_branch
    %16 = sbr.rel (0) target = $region17
  $region16: #{_lambda_.11} parent=0 // pred_region
    _
  $region17: #{_lambda_.11} parent=0 // pred_fallthru
    _
  %v18 = vld [vmem:[%s0] sm:$0xff]
  %v19 = vld [vmem:[%s0 + $0x8] sm:$0xf]
  %v20 = vld [vmem:[%s0 + $0xc] sm:$0xff]
  %v21 = vld [vmem:[%s0 + $0x14] sm:$0xf]
  %v22 = vld [vmem:[%s0 + $0x18] sm:$0xff]
  %v23 = vld [vmem:[%s0 + $0x20] sm:$0xf]
  %v24 = vld [vmem:[%s0 + $0x24] sm:$0xff]
  %v25 = vld [vmem:[%s0 + $0x2c] sm:$0xf]
  %v26 = vld [vmem:[%s0 + $0x30] sm:$0xff]
  %v27 = vld [vmem:[%s0 + $0x38] sm:$0xf]
  %v28 = vld [vmem:[%s0 + $0x3c] sm:$0xff]
  %v29 = vld [vmem:[%s0 + $0x44] sm:$0xf]
  %v30 = vld [vmem:[%s0 + $0x48] sm:$0xff]
  %v31 = vld [vmem:[%s0 + $0x50] sm:$0xf]
  %v32 = vld [vmem:[%s0 + $0x54] sm:$0xff]
  %v33 = vld [vmem:[%s0 + $0x5c] sm:$0xf]
  %v34 = vld [vmem:[%s1] sm:$0xf]
  %v35 = vld [vmem:[%s1 + $0x4] sm:$0xf]
  %v36 = vld [vmem:[%s1 + $0x8] sm:$0xf]
  %v37 = vld [vmem:[%s1 + $0xc] sm:$0xf]
  %v38 = vld [vmem:[%s1 + $0x10] sm:$0xf]
  %v39 = vld [vmem:[%s1 + $0x14] sm:$0xf]
  %v40 = vld [vmem:[%s1 + $0x18] sm:$0xf]
  %v41 = vld [vmem:[%s1 + $0x1c] sm:$0xf]
  %v42 = vld [vmem:[%s1 + $0x20] sm:$0xf]
  %v43 = vld [vmem:[%s1 + $0x24] sm:$0xf]
  %v44 = vld [vmem:[%s1 + $0x28] sm:$0xf]
  %v45 = vld [vmem:[%s1 + $0x2c] sm:$0xf]
  %v46 = vld [vmem:[%s1 + $0x30] sm:$0xf]
  %v47 = vld [vmem:[%s1 + $0x34] sm:$0xf]
  %v48 = vld [vmem:[%s1 + $0x38] sm:$0xf]
  %v49 = vld [vmem:[%s1 + $0x3c] sm:$0xf]
  %v50 = vld [vmem:[%s1 + $0x40] sm:$0xf]
  %v51 = vld [vmem:[%s1 + $0x44] sm:$0xf]
  %v52 = vld [vmem:[%s1 + $0x48] sm:$0xf]
  %v53 = vld [vmem:[%s1 + $0x4c] sm:$0xf]
  %v54 = vld [vmem:[%s1 + $0x50] sm:$0xf]
  %v55 = vld [vmem:[%s1 + $0x54] sm:$0xf]
  %v56 = vld [vmem:[%s1 + $0x58] sm:$0xf]
  %v57 = vld [vmem:[%s1 + $0x5c] sm:$0xf]
  %v58 = vld [vmem:[%s1 + $0x60] sm:$0xf]
  %v59 = vld [vmem:[%s1 + $0x64] sm:$0xf]
  %v60 = vld [vmem:[%s1 + $0x68] sm:$0xf]
  %v61 = vld [vmem:[%s1 + $0x6c] sm:$0xf]
  %v62 = vld [vmem:[%s1 + $0x70] sm:$0xf]
  %v63 = vld [vmem:[%s1 + $0x74] sm:$0xf]
  %v64 = vld [vmem:[%s1 + $0x78] sm:$0xf]
  %v65 = vld [vmem:[%s1 + $0x7c] sm:$0xf]
  %v66 = vld [vmem:[%s1 + $0x80] sm:$0xf]
  %v67 = vld [vmem:[%s1 + $0x84] sm:$0xf]
  %v68 = vld [vmem:[%s1 + $0x88] sm:$0xf]
  %v69 = vld [vmem:[%s1 + $0x8c] sm:$0xf]
  %v70 = vld [vmem:[%s2] sm:$0x1]
  %v72 = vlaneseq
  %v73 = vshrl.u32 %v72, 7
  %v74 = vsub.s32 0, %v73
  %v75 = vrot.slane %v70, %v74
  %v93 = vunpack.c.l.b16 %v18
  %v94 = vunpack.c.h.b16 %v18
  %v95 = vunpack.c.l.b16 %v19
  %v96 = vunpack.c.l.b16 %v20
  %v97 = vunpack.c.h.b16 %v20
  %v98 = vunpack.c.l.b16 %v21
  %v99 = vunpack.c.l.b16 %v22
  %v100 = vunpack.c.h.b16 %v22
  %v101 = vunpack.c.l.b16 %v23
  %v102 = vunpack.c.l.b16 %v24
  %v103 = vunpack.c.h.b16 %v24
  %v104 = vunpack.c.l.b16 %v25
  %v105 = vunpack.c.l.b16 %v26
  %v106 = vunpack.c.h.b16 %v26
  %v107 = vunpack.c.l.b16 %v27
  %v108 = vunpack.c.l.b16 %v28
  %v109 = vunpack.c.h.b16 %v28
  %v110 = vunpack.c.l.b16 %v29
  %v111 = vunpack.c.l.b16 %v30
  %v112 = vunpack.c.h.b16 %v30
  %v113 = vunpack.c.l.b16 %v31
  %v114 = vunpack.c.l.b16 %v32
  %v115 = vunpack.c.h.b16 %v32
  %v116 = vunpack.c.l.b16 %v33
  %v117 = vpack.c.b16 %v96, %v93
  %v118 = vpack.c.b16 %v97, %v94
  %v119 = vpack.c.b16 %v98, %v95
  %v120 = vpack.c.b16 %v102, %v99
  %v121 = vpack.c.b16 %v103, %v100
  %v122 = vpack.c.b16 %v104, %v101
  %v123 = vpack.c.b16 %v108, %v105
  %v124 = vpack.c.b16 %v109, %v106
  %v125 = vpack.c.b16 %v110, %v107
  %v126 = vpack.c.b16 %v114, %v111
  %v127 = vpack.c.b16 %v115, %v112
  %v128 = vpack.c.b16 %v116, %v113
  %v173 = vunpack.c.l.b16 %v34
  %v174 = vunpack.c.l.b16 %v35
  %v175 = vunpack.c.l.b16 %v36
  %v176 = vunpack.c.l.b16 %v37
  %v177 = vunpack.c.l.b16 %v38
  %v178 = vunpack.c.l.b16 %v39
  %v179 = vunpack.c.l.b16 %v40
  %v180 = vunpack.c.l.b16 %v41
  %v181 = vunpack.c.l.b16 %v42
  %v182 = vunpack.c.l.b16 %v43
  %v183 = vunpack.c.l.b16 %v44
  %v184 = vunpack.c.l.b16 %v45
  %v185 = vunpack.c.l.b16 %v46
  %v186 = vunpack.c.l.b16 %v47
  %v187 = vunpack.c.l.b16 %v48
  %v188 = vunpack.c.l.b16 %v49
  %v189 = vunpack.c.l.b16 %v50
  %v190 = vunpack.c.l.b16 %v51
  %v191 = vunpack.c.l.b16 %v52
  %v192 = vunpack.c.l.b16 %v53
  %v193 = vunpack.c.l.b16 %v54
  %v194 = vunpack.c.l.b16 %v55
  %v195 = vunpack.c.l.b16 %v56
  %v196 = vunpack.c.l.b16 %v57
  %v197 = vunpack.c.l.b16 %v58
  %v198 = vunpack.c.l.b16 %v59
  %v199 = vunpack.c.l.b16 %v60
  %v200 = vunpack.c.l.b16 %v61
  %v201 = vunpack.c.l.b16 %v62
  %v202 = vunpack.c.l.b16 %v63
  %v203 = vunpack.c.l.b16 %v64
  %v204 = vunpack.c.l.b16 %v65
  %v205 = vunpack.c.l.b16 %v66
  %v206 = vunpack.c.l.b16 %v67
  %v207 = vunpack.c.l.b16 %v68
  %v208 = vunpack.c.l.b16 %v69
  %v209 = vpack.c.b16 %v174, %v173
  %v210 = vpack.c.b16 %v176, %v175
  %v211 = vpack.c.b16 %v178, %v177
  %v212 = vpack.c.b16 %v180, %v179
  %v213 = vpack.c.b16 %v182, %v181
  %v214 = vpack.c.b16 %v184, %v183
  %v215 = vpack.c.b16 %v186, %v185
  %v216 = vpack.c.b16 %v188, %v187
  %v217 = vpack.c.b16 %v190, %v189
  %v218 = vpack.c.b16 %v192, %v191
  %v219 = vpack.c.b16 %v194, %v193
  %v220 = vpack.c.b16 %v196, %v195
  %v221 = vpack.c.b16 %v198, %v197
  %v222 = vpack.c.b16 %v200, %v199
  %v223 = vpack.c.b16 %v202, %v201
  %v224 = vpack.c.b16 %v204, %v203
  %v225 = vpack.c.b16 %v206, %v205
  %v226 = vpack.c.b16 %v208, %v207
  %vm245 = vcmask 261120
  %v247 = vsel %vm245, %v119, 0
  %v250 = vsel %vm245, %v122, 0
  %v253 = vsel %vm245, %v125, 0
  %v256 = vsel %vm245, %v128, 0
  %258 = vmatprep.subr.bf16.mxu0 0
  %259 = vmatpush1.bf16.msra.mxu0 %v209
  %260 = vmatprep.subr.bf16.mxu0 0
  %261 = vmatpush1.bf16.msra.mxu0 %v210
  %262 = vmatprep.subr.bf16.mxu0 0
  %263 = vmatpush1.bf16.msra.mxu0 %v211
  %264 = vmatprep.subr.bf16.mxu0 0
  %265 = vmatpush1.bf16.msra.mxu0 %v212
  %266 = vmatprep.subr.bf16.mxu0 0
  %267 = vmatpush1.bf16.msra.mxu0 %v213
  %268 = vmatprep.subr.bf16.mxu0 0
  %269 = vmatpush1.bf16.msra.mxu0 %v214
  %270 = vmatprep.subr.bf16.mxu0 0
  %271 = vmatpush1.bf16.msra.mxu0 %v215
  %272 = vmatprep.subr.bf16.mxu0 0
  %273 = vmatpush1.bf16.msra.mxu0 %v216
  %274 = vmatprep.subr.bf16.mxu0 0
  %275 = vmatpush1.bf16.msra.mxu0 %v217
  %276 = vmatprep.subr.bf16.mxu0 0
  %277 = vmatpush1.bf16.msra.mxu0 %v218
  %278 = vmatprep.subr.bf16.mxu0 0
  %279 = vmatpush1.bf16.msra.mxu0 %v219
  %280 = vmatprep.subr.bf16.mxu0 0
  %281 = vmatpush1.bf16.msra.mxu0 %v220
  %282 = vmatprep.subr.bf16.mxu0 0
  %283 = vmatpush1.bf16.msra.mxu0 %v221
  %284 = vmatprep.subr.bf16.mxu0 0
  %285 = vmatpush1.bf16.msra.mxu0 %v222
  %286 = vmatprep.subr.bf16.mxu0 0
  %287 = vmatpush1.bf16.msra.mxu0 %v223
  %288 = vmatprep.subr.bf16.mxu0 0
  %289 = vmatpush1.bf16.msra.mxu0 %v224
  %290 = vmatprep.mubr.bf16.mxu0 %v118
  %291 = vmatmul.mubr.bf16.gmra.mrb[0].mxu0 %v117
  %v292 = vpop.f32.mrb[0].mxu0
  %v293 = vadd.f32 %v75, %v292
  %v294 = vpop.f32.mrb[0].mxu0
  %v295 = vpop.f32.mrb[0].mxu0
  %v296 = vadd.f32 %v75, %v295
  %v297 = vpop.f32.mrb[0].mxu0
  %298 = vmatprep.mubr.bf16.mxu0 %v121
  %299 = vmatmul.mubr.bf16.gmra.mrb[0].mxu0 %v120
  %v300 = vpop.f32.mrb[0].mxu0
  %v301 = vadd.f32 %v75, %v300
  %v302 = vpop.f32.mrb[0].mxu0
  %v303 = vpop.f32.mrb[0].mxu0
  %v304 = vadd.f32 %v75, %v303
  %v305 = vpop.f32.mrb[0].mxu0
  %306 = vmatprep.mubr.bf16.mxu0 %v124
  %307 = vmatmul.mubr.bf16.gmra.mrb[0].mxu0 %v123
  %v308 = vpop.f32.mrb[0].mxu0
  %v309 = vadd.f32 %v75, %v308
  %v310 = vpop.f32.mrb[0].mxu0
  %v311 = vpop.f32.mrb[0].mxu0
  %v312 = vadd.f32 %v75, %v311
  %v313 = vpop.f32.mrb[0].mxu0
  %314 = vmatprep.mubr.bf16.mxu0 %v127
  %315 = vmatmul.mubr.bf16.gmra.mrb[0].mxu0 %v126
  %v316 = vpop.f32.mrb[0].mxu0
  %v317 = vadd.f32 %v75, %v316
  %v318 = vpop.f32.mrb[0].mxu0
  %v319 = vpop.f32.mrb[0].mxu0
  %v320 = vadd.f32 %v75, %v319
  %v321 = vpop.f32.mrb[0].mxu0
  %322 = vdwg.mxu0
  %323 = vmatprep.subr.bf16.mxu0 0
  %324 = vmatpush1.bf16.msra.mxu0 %v225
  %325 = vmatprep.subr.bf16.mxu0 0
  %326 = vmatpush1.bf16.msra.mxu0 %v226
  %327 = vmatprep.subr.bf16.mxu0 0
  %328 = vmatpush1.bf16.msra.mxu0 0
  %329 = vmatprep.subr.bf16.mxu0 0
  %330 = vmatpush1.bf16.msra.mxu0 0
  %331 = vmatprep.subr.bf16.mxu0 0
  %332 = vmatpush1.bf16.msra.mxu0 0
  %333 = vmatprep.subr.bf16.mxu0 0
  %334 = vmatpush1.bf16.msra.mxu0 0
  %335 = vmatprep.subr.bf16.mxu0 0
  %336 = vmatpush1.bf16.msra.mxu0 0
  %337 = vmatprep.subr.bf16.mxu0 0
  %338 = vmatpush1.bf16.msra.mxu0 0
  %339 = vmatprep.subr.bf16.mxu0 0
  %340 = vmatpush1.bf16.msra.mxu0 0
  %341 = vmatprep.subr.bf16.mxu0 0
  %342 = vmatpush1.bf16.msra.mxu0 0
  %343 = vmatprep.subr.bf16.mxu0 0
  %344 = vmatpush1.bf16.msra.mxu0 0
  %345 = vmatprep.subr.bf16.mxu0 0
  %346 = vmatpush1.bf16.msra.mxu0 0
  %347 = vmatprep.subr.bf16.mxu0 0
  %348 = vmatpush1.bf16.msra.mxu0 0
  %349 = vmatprep.subr.bf16.mxu0 0
  %350 = vmatpush1.bf16.msra.mxu0 0
  %351 = vmatprep.subr.bf16.mxu0 0
  %352 = vmatpush1.bf16.msra.mxu0 0
  %353 = vmatprep.subr.bf16.mxu0 0
  %354 = vmatpush1.bf16.msra.mxu0 0
  %355 = vmatprep.mubr.bf16.mxu0 0
  %356 = vmatmul.mubr.bf16.gmra.mrb[0].mxu0 %v247
  %v357 = vpop.f32.mrb[0].mxu0
  %v358 = vadd.f32 %v293, %v357
  %v359 = vpop.f32.mrb[0].mxu0
  %v360 = vpop.f32.mrb[0].mxu0
  %v361 = vadd.f32 %v296, %v360
  %v362 = vpop.f32.mrb[0].mxu0
  %363 = vmatprep.mubr.bf16.mxu0 0
  %364 = vmatmul.mubr.bf16.gmra.mrb[0].mxu0 %v250
  %v365 = vpop.f32.mrb[0].mxu0
  %v366 = vadd.f32 %v301, %v365
  %v367 = vpop.f32.mrb[0].mxu0
  %v368 = vpop.f32.mrb[0].mxu0
  %v369 = vadd.f32 %v304, %v368
  %v370 = vpop.f32.mrb[0].mxu0
  %371 = vmatprep.mubr.bf16.mxu0 0
  %372 = vmatmul.mubr.bf16.gmra.mrb[0].mxu0 %v253
  %v373 = vpop.f32.mrb[0].mxu0
  %v374 = vadd.f32 %v309, %v373
  %v375 = vpop.f32.mrb[0].mxu0
  %v376 = vpop.f32.mrb[0].mxu0
  %v377 = vadd.f32 %v312, %v376
  %v378 = vpop.f32.mrb[0].mxu0
  %379 = vmatprep.mubr.bf16.mxu0 0
  %380 = vmatmul.mubr.bf16.gmra.mrb[0].mxu0 %v256
  %v381 = vpop.f32.mrb[0].mxu0
  %v382 = vadd.f32 %v317, %v381
  %v383 = vpop.f32.mrb[0].mxu0
  %v384 = vpop.f32.mrb[0].mxu0
  %v385 = vadd.f32 %v320, %v384
  %v386 = vpop.f32.mrb[0].mxu0
  %387 = vdwg.mxu0
  %v388 = vld [vmem:[%s3] sm:$0xf]
  %v389 = vld [vmem:[%s3 + $0x4] sm:$0xf]
  %v390 = vld [vmem:[%s3 + $0x8] sm:$0xf]
  %v391 = vld [vmem:[%s3 + $0xc] sm:$0xf]
  %v392 = vld [vmem:[%s3 + $0x10] sm:$0xf]
  %v393 = vld [vmem:[%s3 + $0x14] sm:$0xf]
  %v394 = vld [vmem:[%s3 + $0x18] sm:$0xf]
  %v395 = vld [vmem:[%s3 + $0x1c] sm:$0xf]
  %v396 = vunpack.c.l.bf16 %v388
  %v397 = vunpack.c.l.bf16 %v389
  %v398 = vunpack.c.l.bf16 %v390
  %v399 = vunpack.c.l.bf16 %v391
  %v400 = vunpack.c.l.bf16 %v392
  %v401 = vunpack.c.l.bf16 %v393
  %v402 = vunpack.c.l.bf16 %v394
  %v403 = vunpack.c.l.bf16 %v395
  %v404 = vadd.f32 %v358, %v396
  %v405 = vadd.f32 %v361, %v397
  %v406 = vadd.f32 %v366, %v398
  %v407 = vadd.f32 %v369, %v399
  %v408 = vadd.f32 %v374, %v400
  %v409 = vadd.f32 %v377, %v401
  %v410 = vadd.f32 %v382, %v402
  %v411 = vadd.f32 %v385, %v403
  %v412 = vmul.f32 %v404, 0.5
  %v413 = vmul.f32 %v405, 0.5
  %v414 = vmul.f32 %v406, 0.5
  %v415 = vmul.f32 %v407, 0.5
  %v416 = vmul.f32 %v408, 0.5
  %v417 = vmul.f32 %v409, 0.5
  %v418 = vmul.f32 %v410, 0.5
  %v419 = vmul.f32 %v411, 0.5
  %v420 = vmul.f32 %v404, 0.70710677
  %v421 = vmul.f32 %v405, 0.70710677
  %v422 = vmul.f32 %v406, 0.70710677
  %v423 = vmul.f32 %v407, 0.70710677
  %v424 = vmul.f32 %v408, 0.70710677
  %v425 = vmul.f32 %v409, 0.70710677
  %v426 = vmul.f32 %v410, 0.70710677
  %v427 = vmul.f32 %v411, 0.70710677
  %v428 = verf.f32.pop %v420
  %v429 = verf.f32.pop %v421
  %v430 = verf.f32.pop %v422
  %v431 = verf.f32.pop %v423
  %v432 = verf.f32.pop %v424
  %v433 = verf.f32.pop %v425
  %v434 = verf.f32.pop %v426
  %v435 = verf.f32.pop %v427
  %v436 = vadd.f32 %v428, 1.0
  %v437 = vadd.f32 %v429, 1.0
  %v438 = vadd.f32 %v430, 1.0
  %v439 = vadd.f32 %v431, 1.0
  %v440 = vadd.f32 %v432, 1.0
  %v441 = vadd.f32 %v433, 1.0
  %v442 = vadd.f32 %v434, 1.0
  %v443 = vadd.f32 %v435, 1.0
  %v444 = vmul.f32 %v412, %v436
  %v445 = vmul.f32 %v413, %v437
  %v446 = vmul.f32 %v414, %v438
  %v447 = vmul.f32 %v415, %v439
  %v448 = vmul.f32 %v416, %v440
  %v449 = vmul.f32 %v417, %v441
  %v450 = vmul.f32 %v418, %v442
  %v451 = vmul.f32 %v419, %v443
  %v452 = vpack.c.bf16 %v445, %v444
  %v453 = vpack.c.bf16 %v447, %v446
  %v454 = vpack.c.bf16 %v449, %v448
  %v455 = vpack.c.bf16 %v451, %v450
  %v460 = vunpack.c.l.b16 %v452
  %v461 = vunpack.c.h.b16 %v452
  %v462 = vunpack.c.l.b16 %v453
  %v463 = vunpack.c.h.b16 %v453
  %v464 = vunpack.c.l.b16 %v454
  %v465 = vunpack.c.h.b16 %v454
  %v466 = vunpack.c.l.b16 %v455
  %v467 = vunpack.c.h.b16 %v455
  %v468 = vpack.c.b16 %v460, %v460
  %v469 = vpack.c.b16 %v461, %v461
  %v470 = vpack.c.b16 %v462, %v462
  %v471 = vpack.c.b16 %v463, %v463
  %v472 = vpack.c.b16 %v464, %v464
  %v473 = vpack.c.b16 %v465, %v465
  %v474 = vpack.c.b16 %v466, %v466
  %v475 = vpack.c.b16 %v467, %v467
  %vm484 = vcmask 257024
  %485 = vst.msk [vmem:[%s4] sm:$0xf] %vm484, %v468
  %486 = vst.msk [vmem:[%s4 + $0x4] sm:$0xf] %vm484, %v469
  %487 = vst.msk [vmem:[%s4 + $0x8] sm:$0xf] %vm484, %v470
  %488 = vst.msk [vmem:[%s4 + $0xc] sm:$0xf] %vm484, %v471
  %489 = vst.msk [vmem:[%s4 + $0x10] sm:$0xf] %vm484, %v472
  %490 = vst.msk [vmem:[%s4 + $0x14] sm:$0xf] %vm484, %v473
  %491 = vst.msk [vmem:[%s4 + $0x18] sm:$0xf] %vm484, %v474
  %492 = vst.msk [vmem:[%s4 + $0x1c] sm:$0xf] %vm484, %v475
  // Predicated region
  $region18: #{_lambda_.11} parent=0 // pred_check
    _
  $region19: #{_lambda_.11} parent=0 // pred_check_branch
    %494 = sbr.rel (0) target = $region21
  $region20: #{_lambda_.11} parent=0 // pred_region
    _
  $region21: #{_lambda_.11} parent=0 // pred_fallthru
    _
  // Predicated region
  $region22: #{_lambda_.11} parent=0 // pred_check
    _
  $region23: #{_lambda_.11} parent=0 // pred_check_branch
    %496 = sbr.rel (0) target = $region25
  $region24: #{_lambda_.11} parent=0 // pred_region
    _
  $region25: #{_lambda_.11} parent=0 // pred_fallthru
    _

// kernel: _lambda_.12
$region0: #{_lambda_.12}
  #allocation0 [shape = 'u32[]', space=smem, size = 0x4, offset = 0x4, fixed_abs, tag = 'smem constant byte address 0x4 - core index']
  #allocation1 [shape = 'u32[144,128]{1,0:T(1,128)}', space=vmem, size = 0x12000, scoped, tag = 'internal scratch']
  %s0 = inlined_call_operand.vmem [shape: bf16[32,288], index: 0, kind: input, shape index: {}]
  %s1 = inlined_call_operand.vmem [shape: bf16[288,32], index: 1, kind: input, shape index: {}]
  %s2 = inlined_call_operand.vmem [shape: f32[1,32], index: 2, kind: input, shape index: {}]
  %s3 = inlined_call_operand.vmem [shape: bf16[288,32], index: 3, kind: input, shape index: {}]
  %s4 = inlined_call_operand.vmem [shape: f32[1,32], index: 4, kind: input, shape index: {}]
  %s5 = inlined_call_operand.vmem [shape: bf16[32,32], index: 5, kind: output, shape index: {0}]
  %s6 = inlined_call_operand.vmem [shape: bf16[32,32], index: 6, kind: output, shape index: {1}]
  %7 = xla_tuple %s5, %s6
  %s8 = sld [smem:[#allocation0]]
  $region38: #{_lambda_.12} parent=0
    _
  %s10 = ssub.s32 1, %s8
  %s11 = scalar_select 0, %s10, %s8
  // Predicated region
  $region2: #{_lambda_.12} parent=0 // pred_check
    _
  $region3: #{_lambda_.12} parent=0 // pred_check_branch
    %13 = sbr.rel (0) target = $region5
  $region4: #{_lambda_.12} parent=0 // pred_region
    _
  $region5: #{_lambda_.12} parent=0 // pred_fallthru
    _
  // Predicated region
  $region6: #{_lambda_.12} parent=0 // pred_check
    _
  $region7: #{_lambda_.12} parent=0 // pred_check_branch
    %15 = sbr.rel (0) target = $region9
  $region8: #{_lambda_.12} parent=0 // pred_region
    _
  $region9: #{_lambda_.12} parent=0 // pred_fallthru
    _
  // Predicated region
  $region10: #{_lambda_.12} parent=0 // pred_check
    _
  $region11: #{_lambda_.12} parent=0 // pred_check_branch
    %17 = sbr.rel (0) target = $region13
  $region12: #{_lambda_.12} parent=0 // pred_region
    _
  $region13: #{_lambda_.12} parent=0 // pred_fallthru
    _
  // Predicated region
  $region14: #{_lambda_.12} parent=0 // pred_check
    _
  $region15: #{_lambda_.12} parent=0 // pred_check_branch
    %19 = sbr.rel (0) target = $region17
  $region16: #{_lambda_.12} parent=0 // pred_region
    _
  $region17: #{_lambda_.12} parent=0 // pred_fallthru
    _
  // Predicated region
  $region18: #{_lambda_.12} parent=0 // pred_check
    _
  $region19: #{_lambda_.12} parent=0 // pred_check_branch
    %21 = sbr.rel (0) target = $region21
  $region20: #{_lambda_.12} parent=0 // pred_region
    _
  $region21: #{_lambda_.12} parent=0 // pred_fallthru
    _
  %v23 = vld [vmem:[%s0] sm:$0xff]
  %v24 = vld [vmem:[%s0 + $0x8] sm:$0xf]
  %v25 = vld [vmem:[%s0 + $0xc] sm:$0xff]
  %v26 = vld [vmem:[%s0 + $0x14] sm:$0xf]
  %v27 = vld [vmem:[%s0 + $0x18] sm:$0xff]
  %v28 = vld [vmem:[%s0 + $0x20] sm:$0xf]
  %v29 = vld [vmem:[%s0 + $0x24] sm:$0xff]
  %v30 = vld [vmem:[%s0 + $0x2c] sm:$0xf]
  %v31 = vld [vmem:[%s1] sm:$0xf]
  %v32 = vld [vmem:[%s1 + $0x4] sm:$0xf]
  %v33 = vld [vmem:[%s1 + $0x8] sm:$0xf]
  %v34 = vld [vmem:[%s1 + $0xc] sm:$0xf]
  %v35 = vld [vmem:[%s1 + $0x10] sm:$0xf]
  %v36 = vld [vmem:[%s1 + $0x14] sm:$0xf]
  %v37 = vld [vmem:[%s1 + $0x18] sm:$0xf]
  %v38 = vld [vmem:[%s1 + $0x1c] sm:$0xf]
  %v39 = vld [vmem:[%s1 + $0x20] sm:$0xf]
  %v40 = vld [vmem:[%s1 + $0x24] sm:$0xf]
  %v41 = vld [vmem:[%s1 + $0x28] sm:$0xf]
  %v42 = vld [vmem:[%s1 + $0x2c] sm:$0xf]
  %v43 = vld [vmem:[%s1 + $0x30] sm:$0xf]
  %v44 = vld [vmem:[%s1 + $0x34] sm:$0xf]
  %v45 = vld [vmem:[%s1 + $0x38] sm:$0xf]
  %v46 = vld [vmem:[%s1 + $0x3c] sm:$0xf]
  %v47 = vld [vmem:[%s1 + $0x40] sm:$0xf]
  %v48 = vld [vmem:[%s1 + $0x44] sm:$0xf]
  %v49 = vld [vmem:[%s1 + $0x48] sm:$0xf]
  %v50 = vld [vmem:[%s1 + $0x4c] sm:$0xf]
  %v51 = vld [vmem:[%s1 + $0x50] sm:$0xf]
  %v52 = vld [vmem:[%s1 + $0x54] sm:$0xf]
  %v53 = vld [vmem:[%s1 + $0x58] sm:$0xf]
  %v54 = vld [vmem:[%s1 + $0x5c] sm:$0xf]
  %v55 = vld [vmem:[%s1 + $0x60] sm:$0xf]
  %v56 = vld [vmem:[%s1 + $0x64] sm:$0xf]
  %v57 = vld [vmem:[%s1 + $0x68] sm:$0xf]
  %v58 = vld [vmem:[%s1 + $0x6c] sm:$0xf]
  %v59 = vld [vmem:[%s1 + $0x70] sm:$0xf]
  %v60 = vld [vmem:[%s1 + $0x74] sm:$0xf]
  %v61 = vld [vmem:[%s1 + $0x78] sm:$0xf]
  %v62 = vld [vmem:[%s1 + $0x7c] sm:$0xf]
  %v63 = vld [vmem:[%s1 + $0x80] sm:$0xf]
  %v64 = vld [vmem:[%s1 + $0x84] sm:$0xf]
  %v65 = vld [vmem:[%s1 + $0x88] sm:$0xf]
  %v66 = vld [vmem:[%s1 + $0x8c] sm:$0xf]
  %v67 = vld [vmem:[%s2] sm:$0x1]
  %v69 = vlaneseq
  %v70 = vshrl.u32 %v69, 7
  %v71 = vsub.s32 0, %v70
  %v72 = vrot.slane %v67, %v71
  %v82 = vunpack.c.l.b16 %v23
  %v83 = vunpack.c.h.b16 %v23
  %v84 = vunpack.c.l.b16 %v24
  %v85 = vunpack.c.l.b16 %v25
  %v86 = vunpack.c.h.b16 %v25
  %v87 = vunpack.c.l.b16 %v26
  %v88 = vunpack.c.l.b16 %v27
  %v89 = vunpack.c.h.b16 %v27
  %v90 = vunpack.c.l.b16 %v28
  %v91 = vunpack.c.l.b16 %v29
  %v92 = vunpack.c.h.b16 %v29
  %v93 = vunpack.c.l.b16 %v30
  %v94 = vpack.c.b16 %v85, %v82
  %v95 = vpack.c.b16 %v86, %v83
  %v96 = vpack.c.b16 %v87, %v84
  %v97 = vpack.c.b16 %v91, %v88
  %v98 = vpack.c.b16 %v92, %v89
  %v99 = vpack.c.b16 %v93, %v90
  %v140 = vunpack.c.l.b16 %v31
  %v141 = vunpack.c.l.b16 %v32
  %v142 = vunpack.c.l.b16 %v33
  %v143 = vunpack.c.l.b16 %v34
  %v144 = vunpack.c.l.b16 %v35
  %v145 = vunpack.c.l.b16 %v36
  %v146 = vunpack.c.l.b16 %v37
  %v147 = vunpack.c.l.b16 %v38
  %v148 = vunpack.c.l.b16 %v39
  %v149 = vunpack.c.l.b16 %v40
  %v150 = vunpack.c.l.b16 %v41
  %v151 = vunpack.c.l.b16 %v42
  %v152 = vunpack.c.l.b16 %v43
  %v153 = vunpack.c.l.b16 %v44
  %v154 = vunpack.c.l.b16 %v45
  %v155 = vunpack.c.l.b16 %v46
  %v156 = vunpack.c.l.b16 %v47
  %v157 = vunpack.c.l.b16 %v48
  %v158 = vunpack.c.l.b16 %v49
  %v159 = vunpack.c.l.b16 %v50
  %v160 = vunpack.c.l.b16 %v51
  %v161 = vunpack.c.l.b16 %v52
  %v162 = vunpack.c.l.b16 %v53
  %v163 = vunpack.c.l.b16 %v54
  %v164 = vunpack.c.l.b16 %v55
  %v165 = vunpack.c.l.b16 %v56
  %v166 = vunpack.c.l.b16 %v57
  %v167 = vunpack.c.l.b16 %v58
  %v168 = vunpack.c.l.b16 %v59
  %v169 = vunpack.c.l.b16 %v60
  %v170 = vunpack.c.l.b16 %v61
  %v171 = vunpack.c.l.b16 %v62
  %v172 = vunpack.c.l.b16 %v63
  %v173 = vunpack.c.l.b16 %v64
  %v174 = vunpack.c.l.b16 %v65
  %v175 = vunpack.c.l.b16 %v66
  %v176 = vpack.c.b16 %v141, %v140
  %v177 = vpack.c.b16 %v143, %v142
  %v178 = vpack.c.b16 %v145, %v144
  %v179 = vpack.c.b16 %v147, %v146
  %v180 = vpack.c.b16 %v149, %v148
  %v181 = vpack.c.b16 %v151, %v150
  %v182 = vpack.c.b16 %v153, %v152
  %v183 = vpack.c.b16 %v155, %v154
  %v184 = vpack.c.b16 %v157, %v156
  %v185 = vpack.c.b16 %v159, %v158
  %v186 = vpack.c.b16 %v161, %v160
  %v187 = vpack.c.b16 %v163, %v162
  %v188 = vpack.c.b16 %v165, %v164
  %v189 = vpack.c.b16 %v167, %v166
  %v190 = vpack.c.b16 %v169, %v168
  %v191 = vpack.c.b16 %v171, %v170
  %v192 = vpack.c.b16 %v173, %v172
  %v193 = vpack.c.b16 %v175, %v174
  %vm212 = vcmask 261120
  %v214 = vsel %vm212, %v96, 0
  %v217 = vsel %vm212, %v99, 0
  %219 = vmatprep.subr.bf16.mxu0 0
  %220 = vmatpush1.bf16.msra.mxu0 %v176
  %221 = vmatprep.subr.bf16.mxu0 0
  %222 = vmatpush1.bf16.msra.mxu0 %v177
  %223 = vmatprep.subr.bf16.mxu0 0
  %224 = vmatpush1.bf16.msra.mxu0 %v178
  %225 = vmatprep.subr.bf16.mxu0 0
  %226 = vmatpush1.bf16.msra.mxu0 %v179
  %227 = vmatprep.subr.bf16.mxu0 0
  %228 = vmatpush1.bf16.msra.mxu0 %v180
  %229 = vmatprep.subr.bf16.mxu0 0
  %230 = vmatpush1.bf16.msra.mxu0 %v181
  %231 = vmatprep.subr.bf16.mxu0 0
  %232 = vmatpush1.bf16.msra.mxu0 %v182
  %233 = vmatprep.subr.bf16.mxu0 0
  %234 = vmatpush1.bf16.msra.mxu0 %v183
  %235 = vmatprep.subr.bf16.mxu0 0
  %236 = vmatpush1.bf16.msra.mxu0 %v184
  %237 = vmatprep.subr.bf16.mxu0 0
  %238 = vmatpush1.bf16.msra.mxu0 %v185
  %239 = vmatprep.subr.bf16.mxu0 0
  %240 = vmatpush1.bf16.msra.mxu0 %v186
  %241 = vmatprep.subr.bf16.mxu0 0
  %242 = vmatpush1.bf16.msra.mxu0 %v187
  %243 = vmatprep.subr.bf16.mxu0 0
  %244 = vmatpush1.bf16.msra.mxu0 %v188
  %245 = vmatprep.subr.bf16.mxu0 0
  %246 = vmatpush1.bf16.msra.mxu0 %v189
  %247 = vmatprep.subr.bf16.mxu0 0
  %248 = vmatpush1.bf16.msra.mxu0 %v190
  %249 = vmatprep.subr.bf16.mxu0 0
  %250 = vmatpush1.bf16.msra.mxu0 %v191
  %251 = vmatprep.mubr.bf16.mxu0 %v95
  %252 = vmatmul.mubr.bf16.gmra.mrb[0].mxu0 %v94
  %v253 = vpop.f32.mrb[0].mxu0
  %v254 = vadd.f32 %v72, %v253
  %v255 = vpop.f32.mrb[0].mxu0
  %v256 = vpop.f32.mrb[0].mxu0
  %v257 = vadd.f32 %v72, %v256
  %v258 = vpop.f32.mrb[0].mxu0
  %259 = vmatprep.mubr.bf16.mxu0 %v98
  %260 = vmatmul.mubr.bf16.gmra.mrb[0].mxu0 %v97
  %v261 = vpop.f32.mrb[0].mxu0
  %v262 = vadd.f32 %v72, %v261
  %v263 = vpop.f32.mrb[0].mxu0
  %v264 = vpop.f32.mrb[0].mxu0
  %v265 = vadd.f32 %v72, %v264
  %v266 = vpop.f32.mrb[0].mxu0
  %267 = vdwg.mxu0
  %268 = vmatprep.subr.bf16.mxu0 0
  %269 = vmatpush1.bf16.msra.mxu0 %v192
  %270 = vmatprep.subr.bf16.mxu0 0
  %271 = vmatpush1.bf16.msra.mxu0 %v193
  %272 = vmatprep.subr.bf16.mxu0 0
  %273 = vmatpush1.bf16.msra.mxu0 0
  %274 = vmatprep.subr.bf16.mxu0 0
  %275 = vmatpush1.bf16.msra.mxu0 0
  %276 = vmatprep.subr.bf16.mxu0 0
  %277 = vmatpush1.bf16.msra.mxu0 0
  %278 = vmatprep.subr.bf16.mxu0 0
  %279 = vmatpush1.bf16.msra.mxu0 0
  %280 = vmatprep.subr.bf16.mxu0 0
  %281 = vmatpush1.bf16.msra.mxu0 0
  %282 = vmatprep.subr.bf16.mxu0 0
  %283 = vmatpush1.bf16.msra.mxu0 0
  %284 = vmatprep.subr.bf16.mxu0 0
  %285 = vmatpush1.bf16.msra.mxu0 0
  %286 = vmatprep.subr.bf16.mxu0 0
  %287 = vmatpush1.bf16.msra.mxu0 0
  %288 = vmatprep.subr.bf16.mxu0 0
  %289 = vmatpush1.bf16.msra.mxu0 0
  %290 = vmatprep.subr.bf16.mxu0 0
  %291 = vmatpush1.bf16.msra.mxu0 0
  %292 = vmatprep.subr.bf16.mxu0 0
  %293 = vmatpush1.bf16.msra.mxu0 0
  %294 = vmatprep.subr.bf16.mxu0 0
  %295 = vmatpush1.bf16.msra.mxu0 0
  %296 = vmatprep.subr.bf16.mxu0 0
  %297 = vmatpush1.bf16.msra.mxu0 0
  %298 = vmatprep.subr.bf16.mxu0 0
  %299 = vmatpush1.bf16.msra.mxu0 0
  %300 = vmatprep.mubr.bf16.mxu0 0
  %301 = vmatmul.mubr.bf16.gmra.mrb[0].mxu0 %v214
  %v302 = vpop.f32.mrb[0].mxu0
  %v303 = vadd.f32 %v254, %v302
  %v304 = vpop.f32.mrb[0].mxu0
  %v305 = vpop.f32.mrb[0].mxu0
  %v306 = vadd.f32 %v257, %v305
  %v307 = vpop.f32.mrb[0].mxu0
  %308 = vmatprep.mubr.bf16.mxu0 0
  %309 = vmatmul.mubr.bf16.gmra.mrb[0].mxu0 %v217
  %v310 = vpop.f32.mrb[0].mxu0
  %v311 = vadd.f32 %v262, %v310
  %v312 = vpop.f32.mrb[0].mxu0
  %v313 = vpop.f32.mrb[0].mxu0
  %v314 = vadd.f32 %v265, %v313
  %v315 = vpop.f32.mrb[0].mxu0
  %316 = vdwg.mxu0
  %v317 = vmul.f32 %v303, 0.5
  %v318 = vmul.f32 %v306, 0.5
  %v319 = vmul.f32 %v311, 0.5
  %v320 = vmul.f32 %v314, 0.5
  %v321 = vmul.f32 %v303, 0.70710677
  %v322 = vmul.f32 %v306, 0.70710677
  %v323 = vmul.f32 %v311, 0.70710677
  %v324 = vmul.f32 %v314, 0.70710677
  %v325 = verf.f32.pop %v321
  %v326 = verf.f32.pop %v322
  %v327 = verf.f32.pop %v323
  %v328 = verf.f32.pop %v324
  %v329 = vadd.f32 %v325, 1.0
  %v330 = vadd.f32 %v326, 1.0
  %v331 = vadd.f32 %v327, 1.0
  %v332 = vadd.f32 %v328, 1.0
  %v333 = vmul.f32 %v317, %v329
  %v334 = vmul.f32 %v318, %v330
  %v335 = vmul.f32 %v319, %v331
  %v336 = vmul.f32 %v320, %v332
  %v337 = vpack.c.bf16 %v334, %v333
  %v338 = vpack.c.bf16 %v336, %v335
  %v341 = vunpack.c.l.b16 %v337
  %v342 = vunpack.c.h.b16 %v337
  %v343 = vunpack.c.l.b16 %v338
  %v344 = vunpack.c.h.b16 %v338
  %v345 = vpack.c.b16 %v341, %v341
  %v346 = vpack.c.b16 %v342, %v342
  %v347 = vpack.c.b16 %v343, %v343
  %v348 = vpack.c.b16 %v344, %v344
  %vm353 = vcmask 257024
  %354 = vst.msk [vmem:[%s5] sm:$0xf] %vm353, %v345
  %355 = vst.msk [vmem:[%s5 + $0x4] sm:$0xf] %vm353, %v346
  %356 = vst.msk [vmem:[%s5 + $0x8] sm:$0xf] %vm353, %v347
  %357 = vst.msk [vmem:[%s5 + $0xc] sm:$0xf] %vm353, %v348
  %v358 = vld [vmem:[%s3] sm:$0xf]
  %v359 = vld [vmem:[%s3 + $0x4] sm:$0xf]
  %v360 = vld [vmem:[%s3 + $0x8] sm:$0xf]
  %v361 = vld [vmem:[%s3 + $0xc] sm:$0xf]
  %v362 = vld [vmem:[%s3 + $0x10] sm:$0xf]
  %v363 = vld [vmem:[%s3 + $0x14] sm:$0xf]
  %v364 = vld [vmem:[%s3 + $0x18] sm:$0xf]
  %v365 = vld [vmem:[%s3 + $0x1c] sm:$0xf]
  %v366 = vld [vmem:[%s3 + $0x20] sm:$0xf]
  %v367 = vld [vmem:[%s3 + $0x24] sm:$0xf]
  %v368 = vld [vmem:[%s3 + $0x28] sm:$0xf]
  %v369 = vld [vmem:[%s3 + $0x2c] sm:$0xf]
  %v370 = vld [vmem:[%s3 + $0x30] sm:$0xf]
  %v371 = vld [vmem:[%s3 + $0x34] sm:$0xf]
  %v372 = vld [vmem:[%s3 + $0x38] sm:$0xf]
  %v373 = vld [vmem:[%s3 + $0x3c] sm:$0xf]
  %v374 = vld [vmem:[%s3 + $0x40] sm:$0xf]
  %v375 = vld [vmem:[%s3 + $0x44] sm:$0xf]
  %v376 = vld [vmem:[%s3 + $0x48] sm:$0xf]
  %v377 = vld [vmem:[%s3 + $0x4c] sm:$0xf]
  %v378 = vld [vmem:[%s3 + $0x50] sm:$0xf]
  %v379 = vld [vmem:[%s3 + $0x54] sm:$0xf]
  %v380 = vld [vmem:[%s3 + $0x58] sm:$0xf]
  %v381 = vld [vmem:[%s3 + $0x5c] sm:$0xf]
  %v382 = vld [vmem:[%s3 + $0x60] sm:$0xf]
  %v383 = vld [vmem:[%s3 + $0x64] sm:$0xf]
  %v384 = vld [vmem:[%s3 + $0x68] sm:$0xf]
  %v385 = vld [vmem:[%s3 + $0x6c] sm:$0xf]
  %v386 = vld [vmem:[%s3 + $0x70] sm:$0xf]
  %v387 = vld [vmem:[%s3 + $0x74] sm:$0xf]
  %v388 = vld [vmem:[%s3 + $0x78] sm:$0xf]
  %v389 = vld [vmem:[%s3 + $0x7c] sm:$0xf]
  %v390 = vld [vmem:[%s3 + $0x80] sm:$0xf]
  %v391 = vld [vmem:[%s3 + $0x84] sm:$0xf]
  %v392 = vld [vmem:[%s3 + $0x88] sm:$0xf]
  %v393 = vld [vmem:[%s3 + $0x8c] sm:$0xf]
  %v394 = vld [vmem:[%s4] sm:$0x1]
  %v396 = vlaneseq
  %v397 = vshrl.u32 %v396, 7
  %v398 = vsub.s32 0, %v397
  %v399 = vrot.slane %v394, %v398
  %v437 = vunpack.c.l.b16 %v358
  %v438 = vunpack.c.l.b16 %v359
  %v439 = vunpack.c.l.b16 %v360
  %v440 = vunpack.c.l.b16 %v361
  %v441 = vunpack.c.l.b16 %v362
  %v442 = vunpack.c.l.b16 %v363
  %v443 = vunpack.c.l.b16 %v364
  %v444 = vunpack.c.l.b16 %v365
  %v445 = vunpack.c.l.b16 %v366
  %v446 = vunpack.c.l.b16 %v367
  %v447 = vunpack.c.l.b16 %v368
  %v448 = vunpack.c.l.b16 %v369
  %v449 = vunpack.c.l.b16 %v370
  %v450 = vunpack.c.l.b16 %v371
  %v451 = vunpack.c.l.b16 %v372
  %v452 = vunpack.c.l.b16 %v373
  %v453 = vunpack.c.l.b16 %v374
  %v454 = vunpack.c.l.b16 %v375
  %v455 = vunpack.c.l.b16 %v376
  %v456 = vunpack.c.l.b16 %v377
  %v457 = vunpack.c.l.b16 %v378
  %v458 = vunpack.c.l.b16 %v379
  %v459 = vunpack.c.l.b16 %v380
  %v460 = vunpack.c.l.b16 %v381
  %v461 = vunpack.c.l.b16 %v382
  %v462 = vunpack.c.l.b16 %v383
  %v463 = vunpack.c.l.b16 %v384
  %v464 = vunpack.c.l.b16 %v385
  %v465 = vunpack.c.l.b16 %v386
  %v466 = vunpack.c.l.b16 %v387
  %v467 = vunpack.c.l.b16 %v388
  %v468 = vunpack.c.l.b16 %v389
  %v469 = vunpack.c.l.b16 %v390
  %v470 = vunpack.c.l.b16 %v391
  %v471 = vunpack.c.l.b16 %v392
  %v472 = vunpack.c.l.b16 %v393
  %v473 = vpack.c.b16 %v438, %v437
  %v474 = vpack.c.b16 %v440, %v439
  %v475 = vpack.c.b16 %v442, %v441
  %v476 = vpack.c.b16 %v444, %v443
  %v477 = vpack.c.b16 %v446, %v445
  %v478 = vpack.c.b16 %v448, %v447
  %v479 = vpack.c.b16 %v450, %v449
  %v480 = vpack.c.b16 %v452, %v451
  %v481 = vpack.c.b16 %v454, %v453
  %v482 = vpack.c.b16 %v456, %v455
  %v483 = vpack.c.b16 %v458, %v457
  %v484 = vpack.c.b16 %v460, %v459
  %v485 = vpack.c.b16 %v462, %v461
  %v486 = vpack.c.b16 %v464, %v463
  %v487 = vpack.c.b16 %v466, %v465
  %v488 = vpack.c.b16 %v468, %v467
  %v489 = vpack.c.b16 %v470, %v469
  %v490 = vpack.c.b16 %v472, %v471
  %509 = vmatprep.subr.bf16.mxu0 0
  %510 = vmatpush1.bf16.msra.mxu0 %v473
  %511 = vmatprep.subr.bf16.mxu0 0
  %512 = vmatpush1.bf16.msra.mxu0 %v474
  %513 = vmatprep.subr.bf16.mxu0 0
  %514 = vmatpush1.bf16.msra.mxu0 %v475
  %515 = vmatprep.subr.bf16.mxu0 0
  %516 = vmatpush1.bf16.msra.mxu0 %v476
  %517 = vmatprep.subr.bf16.mxu0 0
  %518 = vmatpush1.bf16.msra.mxu0 %v477
  %519 = vmatprep.subr.bf16.mxu0 0
  %520 = vmatpush1.bf16.msra.mxu0 %v478
  %521 = vmatprep.subr.bf16.mxu0 0
  %522 = vmatpush1.bf16.msra.mxu0 %v479
  %523 = vmatprep.subr.bf16.mxu0 0
  %524 = vmatpush1.bf16.msra.mxu0 %v480
  %525 = vmatprep.subr.bf16.mxu0 0
  %526 = vmatpush1.bf16.msra.mxu0 %v481
  %527 = vmatprep.subr.bf16.mxu0 0
  %528 = vmatpush1.bf16.msra.mxu0 %v482
  %529 = vmatprep.subr.bf16.mxu0 0
  %530 = vmatpush1.bf16.msra.mxu0 %v483
  %531 = vmatprep.subr.bf16.mxu0 0
  %532 = vmatpush1.bf16.msra.mxu0 %v484
  %533 = vmatprep.subr.bf16.mxu0 0
  %534 = vmatpush1.bf16.msra.mxu0 %v485
  %535 = vmatprep.subr.bf16.mxu0 0
  %536 = vmatpush1.bf16.msra.mxu0 %v486
  %537 = vmatprep.subr.bf16.mxu0 0
  %538 = vmatpush1.bf16.msra.mxu0 %v487
  %539 = vmatprep.subr.bf16.mxu0 0
  %540 = vmatpush1.bf16.msra.mxu0 %v488
  %541 = vmatprep.mubr.bf16.mxu0 %v95
  %542 = vmatmul.mubr.bf16.gmra.mrb[0].mxu0 %v94
  %v543 = vpop.f32.mrb[0].mxu0
  %v544 = vadd.f32 %v399, %v543
  %v545 = vpop.f32.mrb[0].mxu0
  %v546 = vpop.f32.mrb[0].mxu0
  %v547 = vadd.f32 %v399, %v546
  %v548 = vpop.f32.mrb[0].mxu0
  %549 = vmatprep.mubr.bf16.mxu0 %v98
  %550 = vmatmul.mubr.bf16.gmra.mrb[0].mxu0 %v97
  %v551 = vpop.f32.mrb[0].mxu0
  %v552 = vadd.f32 %v399, %v551
  %v553 = vpop.f32.mrb[0].mxu0
  %v554 = vpop.f32.mrb[0].mxu0
  %v555 = vadd.f32 %v399, %v554
  %v556 = vpop.f32.mrb[0].mxu0
  %557 = vdwg.mxu0
  %558 = vmatprep.subr.bf16.mxu0 0
  %559 = vmatpush1.bf16.msra.mxu0 %v489
  %560 = vmatprep.subr.bf16.mxu0 0
  %561 = vmatpush1.bf16.msra.mxu0 %v490
  %562 = vmatprep.subr.bf16.mxu0 0
  %563 = vmatpush1.bf16.msra.mxu0 0
  %564 = vmatprep.subr.bf16.mxu0 0
  %565 = vmatpush1.bf16.msra.mxu0 0
  %566 = vmatprep.subr.bf16.mxu0 0
  %567 = vmatpush1.bf16.msra.mxu0 0
  %568 = vmatprep.subr.bf16.mxu0 0
  %569 = vmatpush1.bf16.msra.mxu0 0
  %570 = vmatprep.subr.bf16.mxu0 0
  %571 = vmatpush1.bf16.msra.mxu0 0
  %572 = vmatprep.subr.bf16.mxu0 0
  %573 = vmatpush1.bf16.msra.mxu0 0
  %574 = vmatprep.subr.bf16.mxu0 0
  %575 = vmatpush1.bf16.msra.mxu0 0
  %576 = vmatprep.subr.bf16.mxu0 0
  %577 = vmatpush1.bf16.msra.mxu0 0
  %578 = vmatprep.subr.bf16.mxu0 0
  %579 = vmatpush1.bf16.msra.mxu0 0
  %580 = vmatprep.subr.bf16.mxu0 0
  %581 = vmatpush1.bf16.msra.mxu0 0
  %582 = vmatprep.subr.bf16.mxu0 0
  %583 = vmatpush1.bf16.msra.mxu0 0
  %584 = vmatprep.subr.bf16.mxu0 0
  %585 = vmatpush1.bf16.msra.mxu0 0
  %586 = vmatprep.subr.bf16.mxu0 0
  %587 = vmatpush1.bf16.msra.mxu0 0
  %588 = vmatprep.subr.bf16.mxu0 0
  %589 = vmatpush1.bf16.msra.mxu0 0
  %590 = vmatprep.mubr.bf16.mxu0 0
  %591 = vmatmul.mubr.bf16.gmra.mrb[0].mxu0 %v214
  %v592 = vpop.f32.mrb[0].mxu0
  %v593 = vadd.f32 %v544, %v592
  %v594 = vpop.f32.mrb[0].mxu0
  %v595 = vpop.f32.mrb[0].mxu0
  %v596 = vadd.f32 %v547, %v595
  %v597 = vpop.f32.mrb[0].mxu0
  %598 = vmatprep.mubr.bf16.mxu0 0
  %599 = vmatmul.mubr.bf16.gmra.mrb[0].mxu0 %v217
  %v600 = vpop.f32.mrb[0].mxu0
  %v601 = vadd.f32 %v552, %v600
  %v602 = vpop.f32.mrb[0].mxu0
  %v603 = vpop.f32.mrb[0].mxu0
  %v604 = vadd.f32 %v555, %v603
  %v605 = vpop.f32.mrb[0].mxu0
  %606 = vdwg.mxu0
  %v607 = vpack.c.bf16 %v596, %v593
  %v608 = vpack.c.bf16 %v604, %v601
  %v611 = vunpack.c.l.b16 %v607
  %v612 = vunpack.c.h.b16 %v607
  %v613 = vunpack.c.l.b16 %v608
  %v614 = vunpack.c.h.b16 %v608
  %v615 = vpack.c.b16 %v611, %v611
  %v616 = vpack.c.b16 %v612, %v612
  %v617 = vpack.c.b16 %v613, %v613
  %v618 = vpack.c.b16 %v614, %v614
  %623 = vst.msk [vmem:[%s6] sm:$0xf] %vm353, %v615
  %624 = vst.msk [vmem:[%s6 + $0x4] sm:$0xf] %vm353, %v616
  %625 = vst.msk [vmem:[%s6 + $0x8] sm:$0xf] %vm353, %v617
  %626 = vst.msk [vmem:[%s6 + $0xc] sm:$0xf] %vm353, %v618
  // Predicated region
  $region22: #{_lambda_.12} parent=0 // pred_check
    _
  $region23: #{_lambda_.12} parent=0 // pred_check_branch
    %628 = sbr.rel (0) target = $region25
  $region24: #{_lambda_.12} parent=0 // pred_region
    _
  $region25: #{_lambda_.12} parent=0 // pred_fallthru
    _
  // Predicated region
  $region26: #{_lambda_.12} parent=0 // pred_check
    _
  $region27: #{_lambda_.12} parent=0 // pred_check_branch
    %630 = sbr.rel (0) target = $region29
  $region28: #{_lambda_.12} parent=0 // pred_region
    _
  $region29: #{_lambda_.12} parent=0 // pred_fallthru
    _
  // Predicated region
  $region30: #{_lambda_.12} parent=0 // pred_check
    _
  $region31: #{_lambda_.12} parent=0 // pred_check_branch
    %632 = sbr.rel (0) target = $region33
  $region32: #{_lambda_.12} parent=0 // pred_region
    _
  $region33: #{_lambda_.12} parent=0 // pred_fallthru
    _
  // Predicated region
  $region34: #{_lambda_.12} parent=0 // pred_check
    _
  $region35: #{_lambda_.12} parent=0 // pred_check_branch
    %634 = sbr.rel (0) target = $region37
  $region36: #{_lambda_.12} parent=0 // pred_region
    _
  $region37: #{_lambda_.12} parent=0 // pred_fallthru
    _

// kernel: _lambda_.13
$region0: #{_lambda_.13}
  #allocation0 [shape = 'u32[]', space=smem, size = 0x4, offset = 0x4, fixed_abs, tag = 'smem constant byte address 0x4 - core index']
  #allocation1 [shape = 'u32[144,128]{1,0:T(1,128)}', space=vmem, size = 0x12000, scoped, tag = 'internal scratch']
  %s0 = inlined_call_operand.vmem [shape: bf16[32,288], index: 0, kind: input, shape index: {}]
  %s1 = inlined_call_operand.vmem [shape: bf16[288,32], index: 1, kind: input, shape index: {}]
  %s2 = inlined_call_operand.vmem [shape: f32[1,32], index: 2, kind: input, shape index: {}]
  %s3 = inlined_call_operand.vmem [shape: bf16[32,32], index: 3, kind: input, shape index: {}]
  %s4 = inlined_call_operand.vmem [shape: bf16[32,32], index: 4, kind: output, shape index: {}]
  %s5 = sld [smem:[#allocation0]]
  $region26: #{_lambda_.13} parent=0
    _
  %s7 = ssub.s32 1, %s5
  %s8 = scalar_select 0, %s7, %s5
  // Predicated region
  $region2: #{_lambda_.13} parent=0 // pred_check
    _
  $region3: #{_lambda_.13} parent=0 // pred_check_branch
    %10 = sbr.rel (0) target = $region5
  $region4: #{_lambda_.13} parent=0 // pred_region
    _
  $region5: #{_lambda_.13} parent=0 // pred_fallthru
    _
  // Predicated region
  $region6: #{_lambda_.13} parent=0 // pred_check
    _
  $region7: #{_lambda_.13} parent=0 // pred_check_branch
    %12 = sbr.rel (0) target = $region9
  $region8: #{_lambda_.13} parent=0 // pred_region
    _
  $region9: #{_lambda_.13} parent=0 // pred_fallthru
    _
  // Predicated region
  $region10: #{_lambda_.13} parent=0 // pred_check
    _
  $region11: #{_lambda_.13} parent=0 // pred_check_branch
    %14 = sbr.rel (0) target = $region13
  $region12: #{_lambda_.13} parent=0 // pred_region
    _
  $region13: #{_lambda_.13} parent=0 // pred_fallthru
    _
  // Predicated region
  $region14: #{_lambda_.13} parent=0 // pred_check
    _
  $region15: #{_lambda_.13} parent=0 // pred_check_branch
    %16 = sbr.rel (0) target = $region17
  $region16: #{_lambda_.13} parent=0 // pred_region
    _
  $region17: #{_lambda_.13} parent=0 // pred_fallthru
    _
  %v18 = vld [vmem:[%s0] sm:$0xff]
  %v19 = vld [vmem:[%s0 + $0x8] sm:$0xf]
  %v20 = vld [vmem:[%s0 + $0xc] sm:$0xff]
  %v21 = vld [vmem:[%s0 + $0x14] sm:$0xf]
  %v22 = vld [vmem:[%s0 + $0x18] sm:$0xff]
  %v23 = vld [vmem:[%s0 + $0x20] sm:$0xf]
  %v24 = vld [vmem:[%s0 + $0x24] sm:$0xff]
  %v25 = vld [vmem:[%s0 + $0x2c] sm:$0xf]
  %v26 = vld [vmem:[%s1] sm:$0xf]
  %v27 = vld [vmem:[%s1 + $0x4] sm:$0xf]
  %v28 = vld [vmem:[%s1 + $0x8] sm:$0xf]
  %v29 = vld [vmem:[%s1 + $0xc] sm:$0xf]
  %v30 = vld [vmem:[%s1 + $0x10] sm:$0xf]
  %v31 = vld [vmem:[%s1 + $0x14] sm:$0xf]
  %v32 = vld [vmem:[%s1 + $0x18] sm:$0xf]
  %v33 = vld [vmem:[%s1 + $0x1c] sm:$0xf]
  %v34 = vld [vmem:[%s1 + $0x20] sm:$0xf]
  %v35 = vld [vmem:[%s1 + $0x24] sm:$0xf]
  %v36 = vld [vmem:[%s1 + $0x28] sm:$0xf]
  %v37 = vld [vmem:[%s1 + $0x2c] sm:$0xf]
  %v38 = vld [vmem:[%s1 + $0x30] sm:$0xf]
  %v39 = vld [vmem:[%s1 + $0x34] sm:$0xf]
  %v40 = vld [vmem:[%s1 + $0x38] sm:$0xf]
  %v41 = vld [vmem:[%s1 + $0x3c] sm:$0xf]
  %v42 = vld [vmem:[%s1 + $0x40] sm:$0xf]
  %v43 = vld [vmem:[%s1 + $0x44] sm:$0xf]
  %v44 = vld [vmem:[%s1 + $0x48] sm:$0xf]
  %v45 = vld [vmem:[%s1 + $0x4c] sm:$0xf]
  %v46 = vld [vmem:[%s1 + $0x50] sm:$0xf]
  %v47 = vld [vmem:[%s1 + $0x54] sm:$0xf]
  %v48 = vld [vmem:[%s1 + $0x58] sm:$0xf]
  %v49 = vld [vmem:[%s1 + $0x5c] sm:$0xf]
  %v50 = vld [vmem:[%s1 + $0x60] sm:$0xf]
  %v51 = vld [vmem:[%s1 + $0x64] sm:$0xf]
  %v52 = vld [vmem:[%s1 + $0x68] sm:$0xf]
  %v53 = vld [vmem:[%s1 + $0x6c] sm:$0xf]
  %v54 = vld [vmem:[%s1 + $0x70] sm:$0xf]
  %v55 = vld [vmem:[%s1 + $0x74] sm:$0xf]
  %v56 = vld [vmem:[%s1 + $0x78] sm:$0xf]
  %v57 = vld [vmem:[%s1 + $0x7c] sm:$0xf]
  %v58 = vld [vmem:[%s1 + $0x80] sm:$0xf]
  %v59 = vld [vmem:[%s1 + $0x84] sm:$0xf]
  %v60 = vld [vmem:[%s1 + $0x88] sm:$0xf]
  %v61 = vld [vmem:[%s1 + $0x8c] sm:$0xf]
  %v62 = vld [vmem:[%s2] sm:$0x1]
  %v64 = vlaneseq
  %v65 = vshrl.u32 %v64, 7
  %v66 = vsub.s32 0, %v65
  %v67 = vrot.slane %v62, %v66
  %v77 = vunpack.c.l.b16 %v18
  %v78 = vunpack.c.h.b16 %v18
  %v79 = vunpack.c.l.b16 %v19
  %v80 = vunpack.c.l.b16 %v20
  %v81 = vunpack.c.h.b16 %v20
  %v82 = vunpack.c.l.b16 %v21
  %v83 = vunpack.c.l.b16 %v22
  %v84 = vunpack.c.h.b16 %v22
  %v85 = vunpack.c.l.b16 %v23
  %v86 = vunpack.c.l.b16 %v24
  %v87 = vunpack.c.h.b16 %v24
  %v88 = vunpack.c.l.b16 %v25
  %v89 = vpack.c.b16 %v80, %v77
  %v90 = vpack.c.b16 %v81, %v78
  %v91 = vpack.c.b16 %v82, %v79
  %v92 = vpack.c.b16 %v86, %v83
  %v93 = vpack.c.b16 %v87, %v84
  %v94 = vpack.c.b16 %v88, %v85
  %v135 = vunpack.c.l.b16 %v26
  %v136 = vunpack.c.l.b16 %v27
  %v137 = vunpack.c.l.b16 %v28
  %v138 = vunpack.c.l.b16 %v29
  %v139 = vunpack.c.l.b16 %v30
  %v140 = vunpack.c.l.b16 %v31
  %v141 = vunpack.c.l.b16 %v32
  %v142 = vunpack.c.l.b16 %v33
  %v143 = vunpack.c.l.b16 %v34
  %v144 = vunpack.c.l.b16 %v35
  %v145 = vunpack.c.l.b16 %v36
  %v146 = vunpack.c.l.b16 %v37
  %v147 = vunpack.c.l.b16 %v38
  %v148 = vunpack.c.l.b16 %v39
  %v149 = vunpack.c.l.b16 %v40
  %v150 = vunpack.c.l.b16 %v41
  %v151 = vunpack.c.l.b16 %v42
  %v152 = vunpack.c.l.b16 %v43
  %v153 = vunpack.c.l.b16 %v44
  %v154 = vunpack.c.l.b16 %v45
  %v155 = vunpack.c.l.b16 %v46
  %v156 = vunpack.c.l.b16 %v47
  %v157 = vunpack.c.l.b16 %v48
  %v158 = vunpack.c.l.b16 %v49
  %v159 = vunpack.c.l.b16 %v50
  %v160 = vunpack.c.l.b16 %v51
  %v161 = vunpack.c.l.b16 %v52
  %v162 = vunpack.c.l.b16 %v53
  %v163 = vunpack.c.l.b16 %v54
  %v164 = vunpack.c.l.b16 %v55
  %v165 = vunpack.c.l.b16 %v56
  %v166 = vunpack.c.l.b16 %v57
  %v167 = vunpack.c.l.b16 %v58
  %v168 = vunpack.c.l.b16 %v59
  %v169 = vunpack.c.l.b16 %v60
  %v170 = vunpack.c.l.b16 %v61
  %v171 = vpack.c.b16 %v136, %v135
  %v172 = vpack.c.b16 %v138, %v137
  %v173 = vpack.c.b16 %v140, %v139
  %v174 = vpack.c.b16 %v142, %v141
  %v175 = vpack.c.b16 %v144, %v143
  %v176 = vpack.c.b16 %v146, %v145
  %v177 = vpack.c.b16 %v148, %v147
  %v178 = vpack.c.b16 %v150, %v149
  %v179 = vpack.c.b16 %v152, %v151
  %v180 = vpack.c.b16 %v154, %v153
  %v181 = vpack.c.b16 %v156, %v155
  %v182 = vpack.c.b16 %v158, %v157
  %v183 = vpack.c.b16 %v160, %v159
  %v184 = vpack.c.b16 %v162, %v161
  %v185 = vpack.c.b16 %v164, %v163
  %v186 = vpack.c.b16 %v166, %v165
  %v187 = vpack.c.b16 %v168, %v167
  %v188 = vpack.c.b16 %v170, %v169
  %vm207 = vcmask 261120
  %v209 = vsel %vm207, %v91, 0
  %v212 = vsel %vm207, %v94, 0
  %214 = vmatprep.subr.bf16.mxu0 0
  %215 = vmatpush1.bf16.msra.mxu0 %v171
  %216 = vmatprep.subr.bf16.mxu0 0
  %217 = vmatpush1.bf16.msra.mxu0 %v172
  %218 = vmatprep.subr.bf16.mxu0 0
  %219 = vmatpush1.bf16.msra.mxu0 %v173
  %220 = vmatprep.subr.bf16.mxu0 0
  %221 = vmatpush1.bf16.msra.mxu0 %v174
  %222 = vmatprep.subr.bf16.mxu0 0
  %223 = vmatpush1.bf16.msra.mxu0 %v175
  %224 = vmatprep.subr.bf16.mxu0 0
  %225 = vmatpush1.bf16.msra.mxu0 %v176
  %226 = vmatprep.subr.bf16.mxu0 0
  %227 = vmatpush1.bf16.msra.mxu0 %v177
  %228 = vmatprep.subr.bf16.mxu0 0
  %229 = vmatpush1.bf16.msra.mxu0 %v178
  %230 = vmatprep.subr.bf16.mxu0 0
  %231 = vmatpush1.bf16.msra.mxu0 %v179
  %232 = vmatprep.subr.bf16.mxu0 0
  %233 = vmatpush1.bf16.msra.mxu0 %v180
  %234 = vmatprep.subr.bf16.mxu0 0
  %235 = vmatpush1.bf16.msra.mxu0 %v181
  %236 = vmatprep.subr.bf16.mxu0 0
  %237 = vmatpush1.bf16.msra.mxu0 %v182
  %238 = vmatprep.subr.bf16.mxu0 0
  %239 = vmatpush1.bf16.msra.mxu0 %v183
  %240 = vmatprep.subr.bf16.mxu0 0
  %241 = vmatpush1.bf16.msra.mxu0 %v184
  %242 = vmatprep.subr.bf16.mxu0 0
  %243 = vmatpush1.bf16.msra.mxu0 %v185
  %244 = vmatprep.subr.bf16.mxu0 0
  %245 = vmatpush1.bf16.msra.mxu0 %v186
  %246 = vmatprep.mubr.bf16.mxu0 %v90
  %247 = vmatmul.mubr.bf16.gmra.mrb[0].mxu0 %v89
  %v248 = vpop.f32.mrb[0].mxu0
  %v249 = vadd.f32 %v67, %v248
  %v250 = vpop.f32.mrb[0].mxu0
  %v251 = vpop.f32.mrb[0].mxu0
  %v252 = vadd.f32 %v67, %v251
  %v253 = vpop.f32.mrb[0].mxu0
  %254 = vmatprep.mubr.bf16.mxu0 %v93
  %255 = vmatmul.mubr.bf16.gmra.mrb[0].mxu0 %v92
  %v256 = vpop.f32.mrb[0].mxu0
  %v257 = vadd.f32 %v67, %v256
  %v258 = vpop.f32.mrb[0].mxu0
  %v259 = vpop.f32.mrb[0].mxu0
  %v260 = vadd.f32 %v67, %v259
  %v261 = vpop.f32.mrb[0].mxu0
  %262 = vdwg.mxu0
  %263 = vmatprep.subr.bf16.mxu0 0
  %264 = vmatpush1.bf16.msra.mxu0 %v187
  %265 = vmatprep.subr.bf16.mxu0 0
  %266 = vmatpush1.bf16.msra.mxu0 %v188
  %267 = vmatprep.subr.bf16.mxu0 0
  %268 = vmatpush1.bf16.msra.mxu0 0
  %269 = vmatprep.subr.bf16.mxu0 0
  %270 = vmatpush1.bf16.msra.mxu0 0
  %271 = vmatprep.subr.bf16.mxu0 0
  %272 = vmatpush1.bf16.msra.mxu0 0
  %273 = vmatprep.subr.bf16.mxu0 0
  %274 = vmatpush1.bf16.msra.mxu0 0
  %275 = vmatprep.subr.bf16.mxu0 0
  %276 = vmatpush1.bf16.msra.mxu0 0
  %277 = vmatprep.subr.bf16.mxu0 0
  %278 = vmatpush1.bf16.msra.mxu0 0
  %279 = vmatprep.subr.bf16.mxu0 0
  %280 = vmatpush1.bf16.msra.mxu0 0
  %281 = vmatprep.subr.bf16.mxu0 0
  %282 = vmatpush1.bf16.msra.mxu0 0
  %283 = vmatprep.subr.bf16.mxu0 0
  %284 = vmatpush1.bf16.msra.mxu0 0
  %285 = vmatprep.subr.bf16.mxu0 0
  %286 = vmatpush1.bf16.msra.mxu0 0
  %287 = vmatprep.subr.bf16.mxu0 0
  %288 = vmatpush1.bf16.msra.mxu0 0
  %289 = vmatprep.subr.bf16.mxu0 0
  %290 = vmatpush1.bf16.msra.mxu0 0
  %291 = vmatprep.subr.bf16.mxu0 0
  %292 = vmatpush1.bf16.msra.mxu0 0
  %293 = vmatprep.subr.bf16.mxu0 0
  %294 = vmatpush1.bf16.msra.mxu0 0
  %295 = vmatprep.mubr.bf16.mxu0 0
  %296 = vmatmul.mubr.bf16.gmra.mrb[0].mxu0 %v209
  %v297 = vpop.f32.mrb[0].mxu0
  %v298 = vadd.f32 %v249, %v297
  %v299 = vpop.f32.mrb[0].mxu0
  %v300 = vpop.f32.mrb[0].mxu0
  %v301 = vadd.f32 %v252, %v300
  %v302 = vpop.f32.mrb[0].mxu0
  %303 = vmatprep.mubr.bf16.mxu0 0
  %304 = vmatmul.mubr.bf16.gmra.mrb[0].mxu0 %v212
  %v305 = vpop.f32.mrb[0].mxu0
  %v306 = vadd.f32 %v257, %v305
  %v307 = vpop.f32.mrb[0].mxu0
  %v308 = vpop.f32.mrb[0].mxu0
  %v309 = vadd.f32 %v260, %v308
  %v310 = vpop.f32.mrb[0].mxu0
  %311 = vdwg.mxu0
  %v312 = vld [vmem:[%s3] sm:$0xf]
  %v313 = vld [vmem:[%s3 + $0x4] sm:$0xf]
  %v314 = vld [vmem:[%s3 + $0x8] sm:$0xf]
  %v315 = vld [vmem:[%s3 + $0xc] sm:$0xf]
  %v316 = vunpack.c.l.bf16 %v312
  %v317 = vunpack.c.l.bf16 %v313
  %v318 = vunpack.c.l.bf16 %v314
  %v319 = vunpack.c.l.bf16 %v315
  %v320 = vadd.f32 %v298, %v316
  %v321 = vadd.f32 %v301, %v317
  %v322 = vadd.f32 %v306, %v318
  %v323 = vadd.f32 %v309, %v319
  %v324 = vmul.f32 %v320, 0.5
  %v325 = vmul.f32 %v321, 0.5
  %v326 = vmul.f32 %v322, 0.5
  %v327 = vmul.f32 %v323, 0.5
  %v328 = vmul.f32 %v320, 0.70710677
  %v329 = vmul.f32 %v321, 0.70710677
  %v330 = vmul.f32 %v322, 0.70710677
  %v331 = vmul.f32 %v323, 0.70710677
  %v332 = verf.f32.pop %v328
  %v333 = verf.f32.pop %v329
  %v334 = verf.f32.pop %v330
  %v335 = verf.f32.pop %v331
  %v336 = vadd.f32 %v332, 1.0
  %v337 = vadd.f32 %v333, 1.0
  %v338 = vadd.f32 %v334, 1.0
  %v339 = vadd.f32 %v335, 1.0
  %v340 = vmul.f32 %v324, %v336
  %v341 = vmul.f32 %v325, %v337
  %v342 = vmul.f32 %v326, %v338
  %v343 = vmul.f32 %v327, %v339
  %v344 = vpack.c.bf16 %v341, %v340
  %v345 = vpack.c.bf16 %v343, %v342
  %v348 = vunpack.c.l.b16 %v344
  %v349 = vunpack.c.h.b16 %v344
  %v350 = vunpack.c.l.b16 %v345
  %v351 = vunpack.c.h.b16 %v345
  %v352 = vpack.c.b16 %v348, %v348
  %v353 = vpack.c.b16 %v349, %v349
  %v354 = vpack.c.b16 %v350, %v350
  %v355 = vpack.c.b16 %v351, %v351
  %vm360 = vcmask 257024
  %361 = vst.msk [vmem:[%s4] sm:$0xf] %vm360, %v352
  %362 = vst.msk [vmem:[%s4 + $0x4] sm:$0xf] %vm360, %v353
  %363 = vst.msk [vmem:[%s4 + $0x8] sm:$0xf] %vm360, %v354
  %364 = vst.msk [vmem:[%s4 + $0xc] sm:$0xf] %vm360, %v355
  // Predicated region
  $region18: #{_lambda_.13} parent=0 // pred_check
    _
  $region19: #{_lambda_.13} parent=0 // pred_check_branch
    %366 = sbr.rel (0) target = $region21
  $region20: #{_lambda_.13} parent=0 // pred_region
    _
  $region21: #{_lambda_.13} parent=0 // pred_fallthru
    _
  // Predicated region
  $region22: #{_lambda_.13} parent=0 // pred_check
    _
  $region23: #{_lambda_.13} parent=0 // pred_check_branch
    %368 = sbr.rel (0) target = $region25
  $region24: #{_lambda_.13} parent=0 // pred_region
    _
  $region25: #{_lambda_.13} parent=0 // pred_fallthru
    _

// kernel: _lambda_.14
$region0: #{_lambda_.14}
  #allocation0 [shape = 'u32[]', space=smem, size = 0x4, offset = 0x4, fixed_abs, tag = 'smem constant byte address 0x4 - core index']
  #allocation1 [shape = 'u32[144,128]{1,0:T(1,128)}', space=vmem, size = 0x12000, scoped, tag = 'internal scratch']
  %s0 = inlined_call_operand.vmem [shape: bf16[16,288], index: 0, kind: input, shape index: {}]
  %s1 = inlined_call_operand.vmem [shape: bf16[288,64], index: 1, kind: input, shape index: {}]
  %s2 = inlined_call_operand.vmem [shape: f32[1,64], index: 2, kind: input, shape index: {}]
  %s3 = inlined_call_operand.vmem [shape: bf16[288,64], index: 3, kind: input, shape index: {}]
  %s4 = inlined_call_operand.vmem [shape: f32[1,64], index: 4, kind: input, shape index: {}]
  %s5 = inlined_call_operand.vmem [shape: bf16[16,64], index: 5, kind: output, shape index: {0}]
  %s6 = inlined_call_operand.vmem [shape: bf16[16,64], index: 6, kind: output, shape index: {1}]
  %7 = xla_tuple %s5, %s6
  %s8 = sld [smem:[#allocation0]]
  $region38: #{_lambda_.14} parent=0
    _
  %s10 = ssub.s32 1, %s8
  %s11 = scalar_select 0, %s10, %s8
  // Predicated region
  $region2: #{_lambda_.14} parent=0 // pred_check
    _
  $region3: #{_lambda_.14} parent=0 // pred_check_branch
    %13 = sbr.rel (0) target = $region5
  $region4: #{_lambda_.14} parent=0 // pred_region
    _
  $region5: #{_lambda_.14} parent=0 // pred_fallthru
    _
  // Predicated region
  $region6: #{_lambda_.14} parent=0 // pred_check
    _
  $region7: #{_lambda_.14} parent=0 // pred_check_branch
    %15 = sbr.rel (0) target = $region9
  $region8: #{_lambda_.14} parent=0 // pred_region
    _
  $region9: #{_lambda_.14} parent=0 // pred_fallthru
    _
  // Predicated region
  $region10: #{_lambda_.14} parent=0 // pred_check
    _
  $region11: #{_lambda_.14} parent=0 // pred_check_branch
    %17 = sbr.rel (0) target = $region13
  $region12: #{_lambda_.14} parent=0 // pred_region
    _
  $region13: #{_lambda_.14} parent=0 // pred_fallthru
    _
  // Predicated region
  $region14: #{_lambda_.14} parent=0 // pred_check
    _
  $region15: #{_lambda_.14} parent=0 // pred_check_branch
    %19 = sbr.rel (0) target = $region17
  $region16: #{_lambda_.14} parent=0 // pred_region
    _
  $region17: #{_lambda_.14} parent=0 // pred_fallthru
    _
  // Predicated region
  $region18: #{_lambda_.14} parent=0 // pred_check
    _
  $region19: #{_lambda_.14} parent=0 // pred_check_branch
    %21 = sbr.rel (0) target = $region21
  $region20: #{_lambda_.14} parent=0 // pred_region
    _
  $region21: #{_lambda_.14} parent=0 // pred_fallthru
    _
  %v23 = vld [vmem:[%s0] sm:$0xff]
  %v24 = vld [vmem:[%s0 + $0x8] sm:$0xf]
  %v25 = vld [vmem:[%s0 + $0xc] sm:$0xff]
  %v26 = vld [vmem:[%s0 + $0x14] sm:$0xf]
  %v27 = vld [vmem:[%s1] sm:$0xf]
  %v28 = vld [vmem:[%s1 + $0x4] sm:$0xf]
  %v29 = vld [vmem:[%s1 + $0x8] sm:$0xf]
  %v30 = vld [vmem:[%s1 + $0xc] sm:$0xf]
  %v31 = vld [vmem:[%s1 + $0x10] sm:$0xf]
  %v32 = vld [vmem:[%s1 + $0x14] sm:$0xf]
  %v33 = vld [vmem:[%s1 + $0x18] sm:$0xf]
  %v34 = vld [vmem:[%s1 + $0x1c] sm:$0xf]
  %v35 = vld [vmem:[%s1 + $0x20] sm:$0xf]
  %v36 = vld [vmem:[%s1 + $0x24] sm:$0xf]
  %v37 = vld [vmem:[%s1 + $0x28] sm:$0xf]
  %v38 = vld [vmem:[%s1 + $0x2c] sm:$0xf]
  %v39 = vld [vmem:[%s1 + $0x30] sm:$0xf]
  %v40 = vld [vmem:[%s1 + $0x34] sm:$0xf]
  %v41 = vld [vmem:[%s1 + $0x38] sm:$0xf]
  %v42 = vld [vmem:[%s1 + $0x3c] sm:$0xf]
  %v43 = vld [vmem:[%s1 + $0x40] sm:$0xf]
  %v44 = vld [vmem:[%s1 + $0x44] sm:$0xf]
  %v45 = vld [vmem:[%s1 + $0x48] sm:$0xf]
  %v46 = vld [vmem:[%s1 + $0x4c] sm:$0xf]
  %v47 = vld [vmem:[%s1 + $0x50] sm:$0xf]
  %v48 = vld [vmem:[%s1 + $0x54] sm:$0xf]
  %v49 = vld [vmem:[%s1 + $0x58] sm:$0xf]
  %v50 = vld [vmem:[%s1 + $0x5c] sm:$0xf]
  %v51 = vld [vmem:[%s1 + $0x60] sm:$0xf]
  %v52 = vld [vmem:[%s1 + $0x64] sm:$0xf]
  %v53 = vld [vmem:[%s1 + $0x68] sm:$0xf]
  %v54 = vld [vmem:[%s1 + $0x6c] sm:$0xf]
  %v55 = vld [vmem:[%s1 + $0x70] sm:$0xf]
  %v56 = vld [vmem:[%s1 + $0x74] sm:$0xf]
  %v57 = vld [vmem:[%s1 + $0x78] sm:$0xf]
  %v58 = vld [vmem:[%s1 + $0x7c] sm:$0xf]
  %v59 = vld [vmem:[%s1 + $0x80] sm:$0xf]
  %v60 = vld [vmem:[%s1 + $0x84] sm:$0xf]
  %v61 = vld [vmem:[%s1 + $0x88] sm:$0xf]
  %v62 = vld [vmem:[%s1 + $0x8c] sm:$0xf]
  %v63 = vld [vmem:[%s2] sm:$0x1]
  %v65 = vlaneseq
  %v66 = vshrl.u32 %v65, 7
  %v67 = vsub.s32 0, %v66
  %v68 = vrot.slane %v63, %v67
  %v74 = vunpack.c.l.b16 %v23
  %v75 = vunpack.c.h.b16 %v23
  %v76 = vunpack.c.l.b16 %v24
  %v77 = vunpack.c.l.b16 %v25
  %v78 = vunpack.c.h.b16 %v25
  %v79 = vunpack.c.l.b16 %v26
  %v80 = vpack.c.b16 %v77, %v74
  %v81 = vpack.c.b16 %v78, %v75
  %v82 = vpack.c.b16 %v79, %v76
  %v121 = vunpack.c.l.b16 %v27
  %v122 = vunpack.c.l.b16 %v28
  %v123 = vunpack.c.l.b16 %v29
  %v124 = vunpack.c.l.b16 %v30
  %v125 = vunpack.c.l.b16 %v31
  %v126 = vunpack.c.l.b16 %v32
  %v127 = vunpack.c.l.b16 %v33
  %v128 = vunpack.c.l.b16 %v34
  %v129 = vunpack.c.l.b16 %v35
  %v130 = vunpack.c.l.b16 %v36
  %v131 = vunpack.c.l.b16 %v37
  %v132 = vunpack.c.l.b16 %v38
  %v133 = vunpack.c.l.b16 %v39
  %v134 = vunpack.c.l.b16 %v40
  %v135 = vunpack.c.l.b16 %v41
  %v136 = vunpack.c.l.b16 %v42
  %v137 = vunpack.c.l.b16 %v43
  %v138 = vunpack.c.l.b16 %v44
  %v139 = vunpack.c.l.b16 %v45
  %v140 = vunpack.c.l.b16 %v46
  %v141 = vunpack.c.l.b16 %v47
  %v142 = vunpack.c.l.b16 %v48
  %v143 = vunpack.c.l.b16 %v49
  %v144 = vunpack.c.l.b16 %v50
  %v145 = vunpack.c.l.b16 %v51
  %v146 = vunpack.c.l.b16 %v52
  %v147 = vunpack.c.l.b16 %v53
  %v148 = vunpack.c.l.b16 %v54
  %v149 = vunpack.c.l.b16 %v55
  %v150 = vunpack.c.l.b16 %v56
  %v151 = vunpack.c.l.b16 %v57
  %v152 = vunpack.c.l.b16 %v58
  %v153 = vunpack.c.l.b16 %v59
  %v154 = vunpack.c.l.b16 %v60
  %v155 = vunpack.c.l.b16 %v61
  %v156 = vunpack.c.l.b16 %v62
  %v157 = vpack.c.b16 %v122, %v121
  %v158 = vpack.c.b16 %v124, %v123
  %v159 = vpack.c.b16 %v126, %v125
  %v160 = vpack.c.b16 %v128, %v127
  %v161 = vpack.c.b16 %v130, %v129
  %v162 = vpack.c.b16 %v132, %v131
  %v163 = vpack.c.b16 %v134, %v133
  %v164 = vpack.c.b16 %v136, %v135
  %v165 = vpack.c.b16 %v138, %v137
  %v166 = vpack.c.b16 %v140, %v139
  %v167 = vpack.c.b16 %v142, %v141
  %v168 = vpack.c.b16 %v144, %v143
  %v169 = vpack.c.b16 %v146, %v145
  %v170 = vpack.c.b16 %v148, %v147
  %v171 = vpack.c.b16 %v150, %v149
  %v172 = vpack.c.b16 %v152, %v151
  %v173 = vpack.c.b16 %v154, %v153
  %v174 = vpack.c.b16 %v156, %v155
  %vm193 = vcmask 261120
  %v195 = vsel %vm193, %v82, 0
  %197 = vmatprep.subr.bf16.mxu0 0
  %198 = vmatpush1.bf16.msra.mxu0 %v157
  %199 = vmatprep.subr.bf16.mxu0 0
  %200 = vmatpush1.bf16.msra.mxu0 %v158
  %201 = vmatprep.subr.bf16.mxu0 0
  %202 = vmatpush1.bf16.msra.mxu0 %v159
  %203 = vmatprep.subr.bf16.mxu0 0
  %204 = vmatpush1.bf16.msra.mxu0 %v160
  %205 = vmatprep.subr.bf16.mxu0 0
  %206 = vmatpush1.bf16.msra.mxu0 %v161
  %207 = vmatprep.subr.bf16.mxu0 0
  %208 = vmatpush1.bf16.msra.mxu0 %v162
  %209 = vmatprep.subr.bf16.mxu0 0
  %210 = vmatpush1.bf16.msra.mxu0 %v163
  %211 = vmatprep.subr.bf16.mxu0 0
  %212 = vmatpush1.bf16.msra.mxu0 %v164
  %213 = vmatprep.subr.bf16.mxu0 0
  %214 = vmatpush1.bf16.msra.mxu0 %v165
  %215 = vmatprep.subr.bf16.mxu0 0
  %216 = vmatpush1.bf16.msra.mxu0 %v166
  %217 = vmatprep.subr.bf16.mxu0 0
  %218 = vmatpush1.bf16.msra.mxu0 %v167
  %219 = vmatprep.subr.bf16.mxu0 0
  %220 = vmatpush1.bf16.msra.mxu0 %v168
  %221 = vmatprep.subr.bf16.mxu0 0
  %222 = vmatpush1.bf16.msra.mxu0 %v169
  %223 = vmatprep.subr.bf16.mxu0 0
  %224 = vmatpush1.bf16.msra.mxu0 %v170
  %225 = vmatprep.subr.bf16.mxu0 0
  %226 = vmatpush1.bf16.msra.mxu0 %v171
  %227 = vmatprep.subr.bf16.mxu0 0
  %228 = vmatpush1.bf16.msra.mxu0 %v172
  %229 = vmatprep.mubr.bf16.mxu0 %v81
  %230 = vmatmul.mubr.bf16.gmra.mrb[0].mxu0 %v80
  %v231 = vpop.f32.mrb[0].mxu0
  %v232 = vadd.f32 %v68, %v231
  %v233 = vpop.f32.mrb[0].mxu0
  %v234 = vpop.f32.mrb[0].mxu0
  %v235 = vadd.f32 %v68, %v234
  %v236 = vpop.f32.mrb[0].mxu0
  %237 = vdwg.mxu0
  %238 = vmatprep.subr.bf16.mxu0 0
  %239 = vmatpush1.bf16.msra.mxu0 %v173
  %240 = vmatprep.subr.bf16.mxu0 0
  %241 = vmatpush1.bf16.msra.mxu0 %v174
  %242 = vmatprep.subr.bf16.mxu0 0
  %243 = vmatpush1.bf16.msra.mxu0 0
  %244 = vmatprep.subr.bf16.mxu0 0
  %245 = vmatpush1.bf16.msra.mxu0 0
  %246 = vmatprep.subr.bf16.mxu0 0
  %247 = vmatpush1.bf16.msra.mxu0 0
  %248 = vmatprep.subr.bf16.mxu0 0
  %249 = vmatpush1.bf16.msra.mxu0 0
  %250 = vmatprep.subr.bf16.mxu0 0
  %251 = vmatpush1.bf16.msra.mxu0 0
  %252 = vmatprep.subr.bf16.mxu0 0
  %253 = vmatpush1.bf16.msra.mxu0 0
  %254 = vmatprep.subr.bf16.mxu0 0
  %255 = vmatpush1.bf16.msra.mxu0 0
  %256 = vmatprep.subr.bf16.mxu0 0
  %257 = vmatpush1.bf16.msra.mxu0 0
  %258 = vmatprep.subr.bf16.mxu0 0
  %259 = vmatpush1.bf16.msra.mxu0 0
  %260 = vmatprep.subr.bf16.mxu0 0
  %261 = vmatpush1.bf16.msra.mxu0 0
  %262 = vmatprep.subr.bf16.mxu0 0
  %263 = vmatpush1.bf16.msra.mxu0 0
  %264 = vmatprep.subr.bf16.mxu0 0
  %265 = vmatpush1.bf16.msra.mxu0 0
  %266 = vmatprep.subr.bf16.mxu0 0
  %267 = vmatpush1.bf16.msra.mxu0 0
  %268 = vmatprep.subr.bf16.mxu0 0
  %269 = vmatpush1.bf16.msra.mxu0 0
  %270 = vmatprep.mubr.bf16.mxu0 0
  %271 = vmatmul.mubr.bf16.gmra.mrb[0].mxu0 %v195
  %v272 = vpop.f32.mrb[0].mxu0
  %v273 = vadd.f32 %v232, %v272
  %v274 = vpop.f32.mrb[0].mxu0
  %v275 = vpop.f32.mrb[0].mxu0
  %v276 = vadd.f32 %v235, %v275
  %v277 = vpop.f32.mrb[0].mxu0
  %278 = vdwg.mxu0
  %v279 = vmul.f32 %v273, 0.5
  %v280 = vmul.f32 %v276, 0.5
  %v281 = vmul.f32 %v273, 0.70710677
  %v282 = vmul.f32 %v276, 0.70710677
  %v283 = verf.f32.pop %v281
  %v284 = verf.f32.pop %v282
  %v285 = vadd.f32 %v283, 1.0
  %v286 = vadd.f32 %v284, 1.0
  %v287 = vmul.f32 %v279, %v285
  %v288 = vmul.f32 %v280, %v286
  %v289 = vpack.c.bf16 %v288, %v287
  %v291 = vunpack.c.l.b16 %v289
  %v292 = vunpack.c.h.b16 %v289
  %v293 = vpack.c.b16 %v291, %v291
  %v294 = vpack.c.b16 %v292, %v292
  %vm297 = vcmask 519168
  %298 = vst.msk [vmem:[%s5] sm:$0xf] %vm297, %v293
  %299 = vst.msk [vmem:[%s5 + $0x4] sm:$0xf] %vm297, %v294
  %v300 = vld [vmem:[%s3] sm:$0xf]
  %v301 = vld [vmem:[%s3 + $0x4] sm:$0xf]
  %v302 = vld [vmem:[%s3 + $0x8] sm:$0xf]
  %v303 = vld [vmem:[%s3 + $0xc] sm:$0xf]
  %v304 = vld [vmem:[%s3 + $0x10] sm:$0xf]
  %v305 = vld [vmem:[%s3 + $0x14] sm:$0xf]
  %v306 = vld [vmem:[%s3 + $0x18] sm:$0xf]
  %v307 = vld [vmem:[%s3 + $0x1c] sm:$0xf]
  %v308 = vld [vmem:[%s3 + $0x20] sm:$0xf]
  %v309 = vld [vmem:[%s3 + $0x24] sm:$0xf]
  %v310 = vld [vmem:[%s3 + $0x28] sm:$0xf]
  %v311 = vld [vmem:[%s3 + $0x2c] sm:$0xf]
  %v312 = vld [vmem:[%s3 + $0x30] sm:$0xf]
  %v313 = vld [vmem:[%s3 + $0x34] sm:$0xf]
  %v314 = vld [vmem:[%s3 + $0x38] sm:$0xf]
  %v315 = vld [vmem:[%s3 + $0x3c] sm:$0xf]
  %v316 = vld [vmem:[%s3 + $0x40] sm:$0xf]
  %v317 = vld [vmem:[%s3 + $0x44] sm:$0xf]
  %v318 = vld [vmem:[%s3 + $0x48] sm:$0xf]
  %v319 = vld [vmem:[%s3 + $0x4c] sm:$0xf]
  %v320 = vld [vmem:[%s3 + $0x50] sm:$0xf]
  %v321 = vld [vmem:[%s3 + $0x54] sm:$0xf]
  %v322 = vld [vmem:[%s3 + $0x58] sm:$0xf]
  %v323 = vld [vmem:[%s3 + $0x5c] sm:$0xf]
  %v324 = vld [vmem:[%s3 + $0x60] sm:$0xf]
  %v325 = vld [vmem:[%s3 + $0x64] sm:$0xf]
  %v326 = vld [vmem:[%s3 + $0x68] sm:$0xf]
  %v327 = vld [vmem:[%s3 + $0x6c] sm:$0xf]
  %v328 = vld [vmem:[%s3 + $0x70] sm:$0xf]
  %v329 = vld [vmem:[%s3 + $0x74] sm:$0xf]
  %v330 = vld [vmem:[%s3 + $0x78] sm:$0xf]
  %v331 = vld [vmem:[%s3 + $0x7c] sm:$0xf]
  %v332 = vld [vmem:[%s3 + $0x80] sm:$0xf]
  %v333 = vld [vmem:[%s3 + $0x84] sm:$0xf]
  %v334 = vld [vmem:[%s3 + $0x88] sm:$0xf]
  %v335 = vld [vmem:[%s3 + $0x8c] sm:$0xf]
  %v336 = vld [vmem:[%s4] sm:$0x1]
  %v338 = vlaneseq
  %v339 = vshrl.u32 %v338, 7
  %v340 = vsub.s32 0, %v339
  %v341 = vrot.slane %v336, %v340
  %v379 = vunpack.c.l.b16 %v300
  %v380 = vunpack.c.l.b16 %v301
  %v381 = vunpack.c.l.b16 %v302
  %v382 = vunpack.c.l.b16 %v303
  %v383 = vunpack.c.l.b16 %v304
  %v384 = vunpack.c.l.b16 %v305
  %v385 = vunpack.c.l.b16 %v306
  %v386 = vunpack.c.l.b16 %v307
  %v387 = vunpack.c.l.b16 %v308
  %v388 = vunpack.c.l.b16 %v309
  %v389 = vunpack.c.l.b16 %v310
  %v390 = vunpack.c.l.b16 %v311
  %v391 = vunpack.c.l.b16 %v312
  %v392 = vunpack.c.l.b16 %v313
  %v393 = vunpack.c.l.b16 %v314
  %v394 = vunpack.c.l.b16 %v315
  %v395 = vunpack.c.l.b16 %v316
  %v396 = vunpack.c.l.b16 %v317
  %v397 = vunpack.c.l.b16 %v318
  %v398 = vunpack.c.l.b16 %v319
  %v399 = vunpack.c.l.b16 %v320
  %v400 = vunpack.c.l.b16 %v321
  %v401 = vunpack.c.l.b16 %v322
  %v402 = vunpack.c.l.b16 %v323
  %v403 = vunpack.c.l.b16 %v324
  %v404 = vunpack.c.l.b16 %v325
  %v405 = vunpack.c.l.b16 %v326
  %v406 = vunpack.c.l.b16 %v327
  %v407 = vunpack.c.l.b16 %v328
  %v408 = vunpack.c.l.b16 %v329
  %v409 = vunpack.c.l.b16 %v330
  %v410 = vunpack.c.l.b16 %v331
  %v411 = vunpack.c.l.b16 %v332
  %v412 = vunpack.c.l.b16 %v333
  %v413 = vunpack.c.l.b16 %v334
  %v414 = vunpack.c.l.b16 %v335
  %v415 = vpack.c.b16 %v380, %v379
  %v416 = vpack.c.b16 %v382, %v381
  %v417 = vpack.c.b16 %v384, %v383
  %v418 = vpack.c.b16 %v386, %v385
  %v419 = vpack.c.b16 %v388, %v387
  %v420 = vpack.c.b16 %v390, %v389
  %v421 = vpack.c.b16 %v392, %v391
  %v422 = vpack.c.b16 %v394, %v393
  %v423 = vpack.c.b16 %v396, %v395
  %v424 = vpack.c.b16 %v398, %v397
  %v425 = vpack.c.b16 %v400, %v399
  %v426 = vpack.c.b16 %v402, %v401
  %v427 = vpack.c.b16 %v404, %v403
  %v428 = vpack.c.b16 %v406, %v405
  %v429 = vpack.c.b16 %v408, %v407
  %v430 = vpack.c.b16 %v410, %v409
  %v431 = vpack.c.b16 %v412, %v411
  %v432 = vpack.c.b16 %v414, %v413
  %451 = vmatprep.subr.bf16.mxu0 0
  %452 = vmatpush1.bf16.msra.mxu0 %v415
  %453 = vmatprep.subr.bf16.mxu0 0
  %454 = vmatpush1.bf16.msra.mxu0 %v416
  %455 = vmatprep.subr.bf16.mxu0 0
  %456 = vmatpush1.bf16.msra.mxu0 %v417
  %457 = vmatprep.subr.bf16.mxu0 0
  %458 = vmatpush1.bf16.msra.mxu0 %v418
  %459 = vmatprep.subr.bf16.mxu0 0
  %460 = vmatpush1.bf16.msra.mxu0 %v419
  %461 = vmatprep.subr.bf16.mxu0 0
  %462 = vmatpush1.bf16.msra.mxu0 %v420
  %463 = vmatprep.subr.bf16.mxu0 0
  %464 = vmatpush1.bf16.msra.mxu0 %v421
  %465 = vmatprep.subr.bf16.mxu0 0
  %466 = vmatpush1.bf16.msra.mxu0 %v422
  %467 = vmatprep.subr.bf16.mxu0 0
  %468 = vmatpush1.bf16.msra.mxu0 %v423
  %469 = vmatprep.subr.bf16.mxu0 0
  %470 = vmatpush1.bf16.msra.mxu0 %v424
  %471 = vmatprep.subr.bf16.mxu0 0
  %472 = vmatpush1.bf16.msra.mxu0 %v425
  %473 = vmatprep.subr.bf16.mxu0 0
  %474 = vmatpush1.bf16.msra.mxu0 %v426
  %475 = vmatprep.subr.bf16.mxu0 0
  %476 = vmatpush1.bf16.msra.mxu0 %v427
  %477 = vmatprep.subr.bf16.mxu0 0
  %478 = vmatpush1.bf16.msra.mxu0 %v428
  %479 = vmatprep.subr.bf16.mxu0 0
  %480 = vmatpush1.bf16.msra.mxu0 %v429
  %481 = vmatprep.subr.bf16.mxu0 0
  %482 = vmatpush1.bf16.msra.mxu0 %v430
  %483 = vmatprep.mubr.bf16.mxu0 %v81
  %484 = vmatmul.mubr.bf16.gmra.mrb[0].mxu0 %v80
  %v485 = vpop.f32.mrb[0].mxu0
  %v486 = vadd.f32 %v341, %v485
  %v487 = vpop.f32.mrb[0].mxu0
  %v488 = vpop.f32.mrb[0].mxu0
  %v489 = vadd.f32 %v341, %v488
  %v490 = vpop.f32.mrb[0].mxu0
  %491 = vdwg.mxu0
  %492 = vmatprep.subr.bf16.mxu0 0
  %493 = vmatpush1.bf16.msra.mxu0 %v431
  %494 = vmatprep.subr.bf16.mxu0 0
  %495 = vmatpush1.bf16.msra.mxu0 %v432
  %496 = vmatprep.subr.bf16.mxu0 0
  %497 = vmatpush1.bf16.msra.mxu0 0
  %498 = vmatprep.subr.bf16.mxu0 0
  %499 = vmatpush1.bf16.msra.mxu0 0
  %500 = vmatprep.subr.bf16.mxu0 0
  %501 = vmatpush1.bf16.msra.mxu0 0
  %502 = vmatprep.subr.bf16.mxu0 0
  %503 = vmatpush1.bf16.msra.mxu0 0
  %504 = vmatprep.subr.bf16.mxu0 0
  %505 = vmatpush1.bf16.msra.mxu0 0
  %506 = vmatprep.subr.bf16.mxu0 0
  %507 = vmatpush1.bf16.msra.mxu0 0
  %508 = vmatprep.subr.bf16.mxu0 0
  %509 = vmatpush1.bf16.msra.mxu0 0
  %510 = vmatprep.subr.bf16.mxu0 0
  %511 = vmatpush1.bf16.msra.mxu0 0
  %512 = vmatprep.subr.bf16.mxu0 0
  %513 = vmatpush1.bf16.msra.mxu0 0
  %514 = vmatprep.subr.bf16.mxu0 0
  %515 = vmatpush1.bf16.msra.mxu0 0
  %516 = vmatprep.subr.bf16.mxu0 0
  %517 = vmatpush1.bf16.msra.mxu0 0
  %518 = vmatprep.subr.bf16.mxu0 0
  %519 = vmatpush1.bf16.msra.mxu0 0
  %520 = vmatprep.subr.bf16.mxu0 0
  %521 = vmatpush1.bf16.msra.mxu0 0
  %522 = vmatprep.subr.bf16.mxu0 0
  %523 = vmatpush1.bf16.msra.mxu0 0
  %524 = vmatprep.mubr.bf16.mxu0 0
  %525 = vmatmul.mubr.bf16.gmra.mrb[0].mxu0 %v195
  %v526 = vpop.f32.mrb[0].mxu0
  %v527 = vadd.f32 %v486, %v526
  %v528 = vpop.f32.mrb[0].mxu0
  %v529 = vpop.f32.mrb[0].mxu0
  %v530 = vadd.f32 %v489, %v529
  %v531 = vpop.f32.mrb[0].mxu0
  %532 = vdwg.mxu0
  %v533 = vpack.c.bf16 %v530, %v527
  %v535 = vunpack.c.l.b16 %v533
  %v536 = vunpack.c.h.b16 %v533
  %v537 = vpack.c.b16 %v535, %v535
  %v538 = vpack.c.b16 %v536, %v536
  %541 = vst.msk [vmem:[%s6] sm:$0xf] %vm297, %v537
  %542 = vst.msk [vmem:[%s6 + $0x4] sm:$0xf] %vm297, %v538
  // Predicated region
  $region22: #{_lambda_.14} parent=0 // pred_check
    _
  $region23: #{_lambda_.14} parent=0 // pred_check_branch
    %544 = sbr.rel (0) target = $region25
  $region24: #{_lambda_.14} parent=0 // pred_region
    _
  $region25: #{_lambda_.14} parent=0 // pred_fallthru
    _
  // Predicated region
  $region26: #{_lambda_.14} parent=0 // pred_check
    _
  $region27: #{_lambda_.14} parent=0 // pred_check_branch
    %546 = sbr.rel (0) target = $region29
  $region28: #{_lambda_.14} parent=0 // pred_region
    _
  $region29: #{_lambda_.14} parent=0 // pred_fallthru
    _
  // Predicated region
  $region30: #{_lambda_.14} parent=0 // pred_check
    _
  $region31: #{_lambda_.14} parent=0 // pred_check_branch
    %548 = sbr.rel (0) target = $region33
  $region32: #{_lambda_.14} parent=0 // pred_region
    _
  $region33: #{_lambda_.14} parent=0 // pred_fallthru
    _
  // Predicated region
  $region34: #{_lambda_.14} parent=0 // pred_check
    _
  $region35: #{_lambda_.14} parent=0 // pred_check_branch
    %550 = sbr.rel (0) target = $region37
  $region36: #{_lambda_.14} parent=0 // pred_region
    _
  $region37: #{_lambda_.14} parent=0 // pred_fallthru
    _

// kernel: _lambda_.15
$region0: #{_lambda_.15}
  #allocation0 [shape = 'u32[]', space=smem, size = 0x4, offset = 0x4, fixed_abs, tag = 'smem constant byte address 0x4 - core index']
  #allocation1 [shape = 'u32[144,128]{1,0:T(1,128)}', space=vmem, size = 0x12000, scoped, tag = 'internal scratch']
  %s0 = inlined_call_operand.vmem [shape: bf16[16,576], index: 0, kind: input, shape index: {}]
  %s1 = inlined_call_operand.vmem [shape: bf16[576,64], index: 1, kind: input, shape index: {}]
  %s2 = inlined_call_operand.vmem [shape: f32[1,64], index: 2, kind: input, shape index: {}]
  %s3 = inlined_call_operand.vmem [shape: bf16[16,64], index: 3, kind: input, shape index: {}]
  %s4 = inlined_call_operand.vmem [shape: bf16[16,64], index: 4, kind: output, shape index: {}]
  %s5 = sld [smem:[#allocation0]]
  $region26: #{_lambda_.15} parent=0
    _
  %s7 = ssub.s32 1, %s5
  %s8 = scalar_select 0, %s7, %s5
  // Predicated region
  $region2: #{_lambda_.15} parent=0 // pred_check
    _
  $region3: #{_lambda_.15} parent=0 // pred_check_branch
    %10 = sbr.rel (0) target = $region5
  $region4: #{_lambda_.15} parent=0 // pred_region
    _
  $region5: #{_lambda_.15} parent=0 // pred_fallthru
    _
  // Predicated region
  $region6: #{_lambda_.15} parent=0 // pred_check
    _
  $region7: #{_lambda_.15} parent=0 // pred_check_branch
    %12 = sbr.rel (0) target = $region9
  $region8: #{_lambda_.15} parent=0 // pred_region
    _
  $region9: #{_lambda_.15} parent=0 // pred_fallthru
    _
  // Predicated region
  $region10: #{_lambda_.15} parent=0 // pred_check
    _
  $region11: #{_lambda_.15} parent=0 // pred_check_branch
    %14 = sbr.rel (0) target = $region13
  $region12: #{_lambda_.15} parent=0 // pred_region
    _
  $region13: #{_lambda_.15} parent=0 // pred_fallthru
    _
  // Predicated region
  $region14: #{_lambda_.15} parent=0 // pred_check
    _
  $region15: #{_lambda_.15} parent=0 // pred_check_branch
    %16 = sbr.rel (0) target = $region17
  $region16: #{_lambda_.15} parent=0 // pred_region
    _
  $region17: #{_lambda_.15} parent=0 // pred_fallthru
    _
  %v18 = vld [vmem:[%s0] sm:$0xff]
  %v19 = vld [vmem:[%s0 + $0x8] sm:$0xff]
  %v20 = vld [vmem:[%s0 + $0x10] sm:$0xf]
  %v21 = vld [vmem:[%s0 + $0x14] sm:$0xff]
  %v22 = vld [vmem:[%s0 + $0x1c] sm:$0xff]
  %v23 = vld [vmem:[%s0 + $0x24] sm:$0xf]
  %v24 = vld [vmem:[%s1] sm:$0xf]
  %v25 = vld [vmem:[%s1 + $0x4] sm:$0xf]
  %v26 = vld [vmem:[%s1 + $0x8] sm:$0xf]
  %v27 = vld [vmem:[%s1 + $0xc] sm:$0xf]
  %v28 = vld [vmem:[%s1 + $0x10] sm:$0xf]
  %v29 = vld [vmem:[%s1 + $0x14] sm:$0xf]
  %v30 = vld [vmem:[%s1 + $0x18] sm:$0xf]
  %v31 = vld [vmem:[%s1 + $0x1c] sm:$0xf]
  %v32 = vld [vmem:[%s1 + $0x20] sm:$0xf]
  %v33 = vld [vmem:[%s1 + $0x24] sm:$0xf]
  %v34 = vld [vmem:[%s1 + $0x28] sm:$0xf]
  %v35 = vld [vmem:[%s1 + $0x2c] sm:$0xf]
  %v36 = vld [vmem:[%s1 + $0x30] sm:$0xf]
  %v37 = vld [vmem:[%s1 + $0x34] sm:$0xf]
  %v38 = vld [vmem:[%s1 + $0x38] sm:$0xf]
  %v39 = vld [vmem:[%s1 + $0x3c] sm:$0xf]
  %v40 = vld [vmem:[%s1 + $0x40] sm:$0xf]
  %v41 = vld [vmem:[%s1 + $0x44] sm:$0xf]
  %v42 = vld [vmem:[%s1 + $0x48] sm:$0xf]
  %v43 = vld [vmem:[%s1 + $0x4c] sm:$0xf]
  %v44 = vld [vmem:[%s1 + $0x50] sm:$0xf]
  %v45 = vld [vmem:[%s1 + $0x54] sm:$0xf]
  %v46 = vld [vmem:[%s1 + $0x58] sm:$0xf]
  %v47 = vld [vmem:[%s1 + $0x5c] sm:$0xf]
  %v48 = vld [vmem:[%s1 + $0x60] sm:$0xf]
  %v49 = vld [vmem:[%s1 + $0x64] sm:$0xf]
  %v50 = vld [vmem:[%s1 + $0x68] sm:$0xf]
  %v51 = vld [vmem:[%s1 + $0x6c] sm:$0xf]
  %v52 = vld [vmem:[%s1 + $0x70] sm:$0xf]
  %v53 = vld [vmem:[%s1 + $0x74] sm:$0xf]
  %v54 = vld [vmem:[%s1 + $0x78] sm:$0xf]
  %v55 = vld [vmem:[%s1 + $0x7c] sm:$0xf]
  %v56 = vld [vmem:[%s1 + $0x80] sm:$0xf]
  %v57 = vld [vmem:[%s1 + $0x84] sm:$0xf]
  %v58 = vld [vmem:[%s1 + $0x88] sm:$0xf]
  %v59 = vld [vmem:[%s1 + $0x8c] sm:$0xf]
  %v60 = vld [vmem:[%s1 + $0x90] sm:$0xf]
  %v61 = vld [vmem:[%s1 + $0x94] sm:$0xf]
  %v62 = vld [vmem:[%s1 + $0x98] sm:$0xf]
  %v63 = vld [vmem:[%s1 + $0x9c] sm:$0xf]
  %v64 = vld [vmem:[%s1 + $0xa0] sm:$0xf]
  %v65 = vld [vmem:[%s1 + $0xa4] sm:$0xf]
  %v66 = vld [vmem:[%s1 + $0xa8] sm:$0xf]
  %v67 = vld [vmem:[%s1 + $0xac] sm:$0xf]
  %v68 = vld [vmem:[%s1 + $0xb0] sm:$0xf]
  %v69 = vld [vmem:[%s1 + $0xb4] sm:$0xf]
  %v70 = vld [vmem:[%s1 + $0xb8] sm:$0xf]
  %v71 = vld [vmem:[%s1 + $0xbc] sm:$0xf]
  %v72 = vld [vmem:[%s1 + $0xc0] sm:$0xf]
  %v73 = vld [vmem:[%s1 + $0xc4] sm:$0xf]
  %v74 = vld [vmem:[%s1 + $0xc8] sm:$0xf]
  %v75 = vld [vmem:[%s1 + $0xcc] sm:$0xf]
  %v76 = vld [vmem:[%s1 + $0xd0] sm:$0xf]
  %v77 = vld [vmem:[%s1 + $0xd4] sm:$0xf]
  %v78 = vld [vmem:[%s1 + $0xd8] sm:$0xf]
  %v79 = vld [vmem:[%s1 + $0xdc] sm:$0xf]
  %v80 = vld [vmem:[%s1 + $0xe0] sm:$0xf]
  %v81 = vld [vmem:[%s1 + $0xe4] sm:$0xf]
  %v82 = vld [vmem:[%s1 + $0xe8] sm:$0xf]
  %v83 = vld [vmem:[%s1 + $0xec] sm:$0xf]
  %v84 = vld [vmem:[%s1 + $0xf0] sm:$0xf]
  %v85 = vld [vmem:[%s1 + $0xf4] sm:$0xf]
  %v86 = vld [vmem:[%s1 + $0xf8] sm:$0xf]
  %v87 = vld [vmem:[%s1 + $0xfc] sm:$0xf]
  %v88 = vld [vmem:[%s1 + $0x100] sm:$0xf]
  %v89 = vld [vmem:[%s1 + $0x104] sm:$0xf]
  %v90 = vld [vmem:[%s1 + $0x108] sm:$0xf]
  %v91 = vld [vmem:[%s1 + $0x10c] sm:$0xf]
  %v92 = vld [vmem:[%s1 + $0x110] sm:$0xf]
  %v93 = vld [vmem:[%s1 + $0x114] sm:$0xf]
  %v94 = vld [vmem:[%s1 + $0x118] sm:$0xf]
  %v95 = vld [vmem:[%s1 + $0x11c] sm:$0xf]
  %v96 = vld [vmem:[%s2] sm:$0x1]
  %v98 = vlaneseq
  %v99 = vshrl.u32 %v98, 7
  %v100 = vsub.s32 0, %v99
  %v101 = vrot.slane %v96, %v100
  %v109 = vunpack.c.l.b16 %v18
  %v110 = vunpack.c.h.b16 %v18
  %v111 = vunpack.c.l.b16 %v19
  %v112 = vunpack.c.h.b16 %v19
  %v113 = vunpack.c.l.b16 %v20
  %v114 = vunpack.c.l.b16 %v21
  %v115 = vunpack.c.h.b16 %v21
  %v116 = vunpack.c.l.b16 %v22
  %v117 = vunpack.c.h.b16 %v22
  %v118 = vunpack.c.l.b16 %v23
  %v119 = vpack.c.b16 %v114, %v109
  %v120 = vpack.c.b16 %v115, %v110
  %v121 = vpack.c.b16 %v116, %v111
  %v122 = vpack.c.b16 %v117, %v112
  %v123 = vpack.c.b16 %v118, %v113
  %v200 = vunpack.c.l.b16 %v24
  %v201 = vunpack.c.l.b16 %v25
  %v202 = vunpack.c.l.b16 %v26
  %v203 = vunpack.c.l.b16 %v27
  %v204 = vunpack.c.l.b16 %v28
  %v205 = vunpack.c.l.b16 %v29
  %v206 = vunpack.c.l.b16 %v30
  %v207 = vunpack.c.l.b16 %v31
  %v208 = vunpack.c.l.b16 %v32
  %v209 = vunpack.c.l.b16 %v33
  %v210 = vunpack.c.l.b16 %v34
  %v211 = vunpack.c.l.b16 %v35
  %v212 = vunpack.c.l.b16 %v36
  %v213 = vunpack.c.l.b16 %v37
  %v214 = vunpack.c.l.b16 %v38
  %v215 = vunpack.c.l.b16 %v39
  %v216 = vunpack.c.l.b16 %v40
  %v217 = vunpack.c.l.b16 %v41
  %v218 = vunpack.c.l.b16 %v42
  %v219 = vunpack.c.l.b16 %v43
  %v220 = vunpack.c.l.b16 %v44
  %v221 = vunpack.c.l.b16 %v45
  %v222 = vunpack.c.l.b16 %v46
  %v223 = vunpack.c.l.b16 %v47
  %v224 = vunpack.c.l.b16 %v48
  %v225 = vunpack.c.l.b16 %v49
  %v226 = vunpack.c.l.b16 %v50
  %v227 = vunpack.c.l.b16 %v51
  %v228 = vunpack.c.l.b16 %v52
  %v229 = vunpack.c.l.b16 %v53
  %v230 = vunpack.c.l.b16 %v54
  %v231 = vunpack.c.l.b16 %v55
  %v232 = vunpack.c.l.b16 %v56
  %v233 = vunpack.c.l.b16 %v57
  %v234 = vunpack.c.l.b16 %v58
  %v235 = vunpack.c.l.b16 %v59
  %v236 = vunpack.c.l.b16 %v60
  %v237 = vunpack.c.l.b16 %v61
  %v238 = vunpack.c.l.b16 %v62
  %v239 = vunpack.c.l.b16 %v63
  %v240 = vunpack.c.l.b16 %v64
  %v241 = vunpack.c.l.b16 %v65
  %v242 = vunpack.c.l.b16 %v66
  %v243 = vunpack.c.l.b16 %v67
  %v244 = vunpack.c.l.b16 %v68
  %v245 = vunpack.c.l.b16 %v69
  %v246 = vunpack.c.l.b16 %v70
  %v247 = vunpack.c.l.b16 %v71
  %v248 = vunpack.c.l.b16 %v72
  %v249 = vunpack.c.l.b16 %v73
  %v250 = vunpack.c.l.b16 %v74
  %v251 = vunpack.c.l.b16 %v75
  %v252 = vunpack.c.l.b16 %v76
  %v253 = vunpack.c.l.b16 %v77
  %v254 = vunpack.c.l.b16 %v78
  %v255 = vunpack.c.l.b16 %v79
  %v256 = vunpack.c.l.b16 %v80
  %v257 = vunpack.c.l.b16 %v81
  %v258 = vunpack.c.l.b16 %v82
  %v259 = vunpack.c.l.b16 %v83
  %v260 = vunpack.c.l.b16 %v84
  %v261 = vunpack.c.l.b16 %v85
  %v262 = vunpack.c.l.b16 %v86
  %v263 = vunpack.c.l.b16 %v87
  %v264 = vunpack.c.l.b16 %v88
  %v265 = vunpack.c.l.b16 %v89
  %v266 = vunpack.c.l.b16 %v90
  %v267 = vunpack.c.l.b16 %v91
  %v268 = vunpack.c.l.b16 %v92
  %v269 = vunpack.c.l.b16 %v93
  %v270 = vunpack.c.l.b16 %v94
  %v271 = vunpack.c.l.b16 %v95
  %v272 = vpack.c.b16 %v201, %v200
  %v273 = vpack.c.b16 %v203, %v202
  %v274 = vpack.c.b16 %v205, %v204
  %v275 = vpack.c.b16 %v207, %v206
  %v276 = vpack.c.b16 %v209, %v208
  %v277 = vpack.c.b16 %v211, %v210
  %v278 = vpack.c.b16 %v213, %v212
  %v279 = vpack.c.b16 %v215, %v214
  %v280 = vpack.c.b16 %v217, %v216
  %v281 = vpack.c.b16 %v219, %v218
  %v282 = vpack.c.b16 %v221, %v220
  %v283 = vpack.c.b16 %v223, %v222
  %v284 = vpack.c.b16 %v225, %v224
  %v285 = vpack.c.b16 %v227, %v226
  %v286 = vpack.c.b16 %v229, %v228
  %v287 = vpack.c.b16 %v231, %v230
  %v288 = vpack.c.b16 %v233, %v232
  %v289 = vpack.c.b16 %v235, %v234
  %v290 = vpack.c.b16 %v237, %v236
  %v291 = vpack.c.b16 %v239, %v238
  %v292 = vpack.c.b16 %v241, %v240
  %v293 = vpack.c.b16 %v243, %v242
  %v294 = vpack.c.b16 %v245, %v244
  %v295 = vpack.c.b16 %v247, %v246
  %v296 = vpack.c.b16 %v249, %v248
  %v297 = vpack.c.b16 %v251, %v250
  %v298 = vpack.c.b16 %v253, %v252
  %v299 = vpack.c.b16 %v255, %v254
  %v300 = vpack.c.b16 %v257, %v256
  %v301 = vpack.c.b16 %v259, %v258
  %v302 = vpack.c.b16 %v261, %v260
  %v303 = vpack.c.b16 %v263, %v262
  %v304 = vpack.c.b16 %v265, %v264
  %v305 = vpack.c.b16 %v267, %v266
  %v306 = vpack.c.b16 %v269, %v268
  %v307 = vpack.c.b16 %v271, %v270
  %vm344 = vcmask 523264
  %v346 = vsel %vm344, %v123, 0
  %348 = vmatprep.subr.bf16.mxu0 0
  %349 = vmatpush1.bf16.msra.mxu0 %v272
  %350 = vmatprep.subr.bf16.mxu0 0
  %351 = vmatpush1.bf16.msra.mxu0 %v273
  %352 = vmatprep.subr.bf16.mxu0 0
  %353 = vmatpush1.bf16.msra.mxu0 %v274
  %354 = vmatprep.subr.bf16.mxu0 0
  %355 = vmatpush1.bf16.msra.mxu0 %v275
  %356 = vmatprep.subr.bf16.mxu0 0
  %357 = vmatpush1.bf16.msra.mxu0 %v276
  %358 = vmatprep.subr.bf16.mxu0 0
  %359 = vmatpush1.bf16.msra.mxu0 %v277
  %360 = vmatprep.subr.bf16.mxu0 0
  %361 = vmatpush1.bf16.msra.mxu0 %v278
  %362 = vmatprep.subr.bf16.mxu0 0
  %363 = vmatpush1.bf16.msra.mxu0 %v279
  %364 = vmatprep.subr.bf16.mxu0 0
  %365 = vmatpush1.bf16.msra.mxu0 %v280
  %366 = vmatprep.subr.bf16.mxu0 0
  %367 = vmatpush1.bf16.msra.mxu0 %v281
  %368 = vmatprep.subr.bf16.mxu0 0
  %369 = vmatpush1.bf16.msra.mxu0 %v282
  %370 = vmatprep.subr.bf16.mxu0 0
  %371 = vmatpush1.bf16.msra.mxu0 %v283
  %372 = vmatprep.subr.bf16.mxu0 0
  %373 = vmatpush1.bf16.msra.mxu0 %v284
  %374 = vmatprep.subr.bf16.mxu0 0
  %375 = vmatpush1.bf16.msra.mxu0 %v285
  %376 = vmatprep.subr.bf16.mxu0 0
  %377 = vmatpush1.bf16.msra.mxu0 %v286
  %378 = vmatprep.subr.bf16.mxu0 0
  %379 = vmatpush1.bf16.msra.mxu0 %v287
  %380 = vmatprep.mubr.bf16.mxu0 %v120
  %381 = vmatmul.mubr.bf16.gmra.mrb[0].mxu0 %v119
  %v382 = vpop.f32.mrb[0].mxu0
  %v383 = vadd.f32 %v101, %v382
  %v384 = vpop.f32.mrb[0].mxu0
  %v385 = vpop.f32.mrb[0].mxu0
  %v386 = vadd.f32 %v101, %v385
  %v387 = vpop.f32.mrb[0].mxu0
  %388 = vdwg.mxu0
  %389 = vmatprep.subr.bf16.mxu0 0
  %390 = vmatpush1.bf16.msra.mxu0 %v288
  %391 = vmatprep.subr.bf16.mxu0 0
  %392 = vmatpush1.bf16.msra.mxu0 %v289
  %393 = vmatprep.subr.bf16.mxu0 0
  %394 = vmatpush1.bf16.msra.mxu0 %v290
  %395 = vmatprep.subr.bf16.mxu0 0
  %396 = vmatpush1.bf16.msra.mxu0 %v291
  %397 = vmatprep.subr.bf16.mxu0 0
  %398 = vmatpush1.bf16.msra.mxu0 %v292
  %399 = vmatprep.subr.bf16.mxu0 0
  %400 = vmatpush1.bf16.msra.mxu0 %v293
  %401 = vmatprep.subr.bf16.mxu0 0
  %402 = vmatpush1.bf16.msra.mxu0 %v294
  %403 = vmatprep.subr.bf16.mxu0 0
  %404 = vmatpush1.bf16.msra.mxu0 %v295
  %405 = vmatprep.subr.bf16.mxu0 0
  %406 = vmatpush1.bf16.msra.mxu0 %v296
  %407 = vmatprep.subr.bf16.mxu0 0
  %408 = vmatpush1.bf16.msra.mxu0 %v297
  %409 = vmatprep.subr.bf16.mxu0 0
  %410 = vmatpush1.bf16.msra.mxu0 %v298
  %411 = vmatprep.subr.bf16.mxu0 0
  %412 = vmatpush1.bf16.msra.mxu0 %v299
  %413 = vmatprep.subr.bf16.mxu0 0
  %414 = vmatpush1.bf16.msra.mxu0 %v300
  %415 = vmatprep.subr.bf16.mxu0 0
  %416 = vmatpush1.bf16.msra.mxu0 %v301
  %417 = vmatprep.subr.bf16.mxu0 0
  %418 = vmatpush1.bf16.msra.mxu0 %v302
  %419 = vmatprep.subr.bf16.mxu0 0
  %420 = vmatpush1.bf16.msra.mxu0 %v303
  %421 = vmatprep.mubr.bf16.mxu0 %v122
  %422 = vmatmul.mubr.bf16.gmra.mrb[0].mxu0 %v121
  %v423 = vpop.f32.mrb[0].mxu0
  %v424 = vadd.f32 %v383, %v423
  %v425 = vpop.f32.mrb[0].mxu0
  %v426 = vpop.f32.mrb[0].mxu0
  %v427 = vadd.f32 %v386, %v426
  %v428 = vpop.f32.mrb[0].mxu0
  %429 = vdwg.mxu0
  %430 = vmatprep.subr.bf16.mxu0 0
  %431 = vmatpush1.bf16.msra.mxu0 %v304
  %432 = vmatprep.subr.bf16.mxu0 0
  %433 = vmatpush1.bf16.msra.mxu0 %v305
  %434 = vmatprep.subr.bf16.mxu0 0
  %435 = vmatpush1.bf16.msra.mxu0 %v306
  %436 = vmatprep.subr.bf16.mxu0 0
  %437 = vmatpush1.bf16.msra.mxu0 %v307
  %438 = vmatprep.subr.bf16.mxu0 0
  %439 = vmatpush1.bf16.msra.mxu0 0
  %440 = vmatprep.subr.bf16.mxu0 0
  %441 = vmatpush1.bf16.msra.mxu0 0
  %442 = vmatprep.subr.bf16.mxu0 0
  %443 = vmatpush1.bf16.msra.mxu0 0
  %444 = vmatprep.subr.bf16.mxu0 0
  %445 = vmatpush1.bf16.msra.mxu0 0
  %446 = vmatprep.subr.bf16.mxu0 0
  %447 = vmatpush1.bf16.msra.mxu0 0
  %448 = vmatprep.subr.bf16.mxu0 0
  %449 = vmatpush1.bf16.msra.mxu0 0
  %450 = vmatprep.subr.bf16.mxu0 0
  %451 = vmatpush1.bf16.msra.mxu0 0
  %452 = vmatprep.subr.bf16.mxu0 0
  %453 = vmatpush1.bf16.msra.mxu0 0
  %454 = vmatprep.subr.bf16.mxu0 0
  %455 = vmatpush1.bf16.msra.mxu0 0
  %456 = vmatprep.subr.bf16.mxu0 0
  %457 = vmatpush1.bf16.msra.mxu0 0
  %458 = vmatprep.subr.bf16.mxu0 0
  %459 = vmatpush1.bf16.msra.mxu0 0
  %460 = vmatprep.subr.bf16.mxu0 0
  %461 = vmatpush1.bf16.msra.mxu0 0
  %462 = vmatprep.mubr.bf16.mxu0 0
  %463 = vmatmul.mubr.bf16.gmra.mrb[0].mxu0 %v346
  %v464 = vpop.f32.mrb[0].mxu0
  %v465 = vadd.f32 %v424, %v464
  %v466 = vpop.f32.mrb[0].mxu0
  %v467 = vpop.f32.mrb[0].mxu0
  %v468 = vadd.f32 %v427, %v467
  %v469 = vpop.f32.mrb[0].mxu0
  %470 = vdwg.mxu0
  %v471 = vld [vmem:[%s3] sm:$0xf]
  %v472 = vld [vmem:[%s3 + $0x4] sm:$0xf]
  %v473 = vunpack.c.l.bf16 %v471
  %v474 = vunpack.c.l.bf16 %v472
  %v475 = vadd.f32 %v465, %v473
  %v476 = vadd.f32 %v468, %v474
  %v477 = vmul.f32 %v475, 0.5
  %v478 = vmul.f32 %v476, 0.5
  %v479 = vmul.f32 %v475, 0.70710677
  %v480 = vmul.f32 %v476, 0.70710677
  %v481 = verf.f32.pop %v479
  %v482 = verf.f32.pop %v480
  %v483 = vadd.f32 %v481, 1.0
  %v484 = vadd.f32 %v482, 1.0
  %v485 = vmul.f32 %v477, %v483
  %v486 = vmul.f32 %v478, %v484
  %v487 = vpack.c.bf16 %v486, %v485
  %v489 = vunpack.c.l.b16 %v487
  %v490 = vunpack.c.h.b16 %v487
  %v491 = vpack.c.b16 %v489, %v489
  %v492 = vpack.c.b16 %v490, %v490
  %vm495 = vcmask 519168
  %496 = vst.msk [vmem:[%s4] sm:$0xf] %vm495, %v491
  %497 = vst.msk [vmem:[%s4 + $0x4] sm:$0xf] %vm495, %v492
  // Predicated region
  $region18: #{_lambda_.15} parent=0 // pred_check
    _
  $region19: #{_lambda_.15} parent=0 // pred_check_branch
    %499 = sbr.rel (0) target = $region21
  $region20: #{_lambda_.15} parent=0 // pred_region
    _
  $region21: #{_lambda_.15} parent=0 // pred_fallthru
    _
  // Predicated region
  $region22: #{_lambda_.15} parent=0 // pred_check
    _
  $region23: #{_lambda_.15} parent=0 // pred_check_branch
    %501 = sbr.rel (0) target = $region25
  $region24: #{_lambda_.15} parent=0 // pred_region
    _
  $region25: #{_lambda_.15} parent=0 // pred_fallthru
    _

// kernel: _lambda_.16
$region0: #{_lambda_.16}
  #allocation0 [shape = 'u32[]', space=smem, size = 0x4, offset = 0x4, fixed_abs, tag = 'smem constant byte address 0x4 - core index']
  #allocation1 [shape = 'u32[144,128]{1,0:T(1,128)}', space=vmem, size = 0x12000, scoped, tag = 'internal scratch']
  %s0 = inlined_call_operand.vmem [shape: bf16[16,576], index: 0, kind: input, shape index: {}]
  %s1 = inlined_call_operand.vmem [shape: bf16[576,64], index: 1, kind: input, shape index: {}]
  %s2 = inlined_call_operand.vmem [shape: f32[1,64], index: 2, kind: input, shape index: {}]
  %s3 = inlined_call_operand.vmem [shape: bf16[576,64], index: 3, kind: input, shape index: {}]
  %s4 = inlined_call_operand.vmem [shape: f32[1,64], index: 4, kind: input, shape index: {}]
  %s5 = inlined_call_operand.vmem [shape: bf16[16,64], index: 5, kind: output, shape index: {0}]
  %s6 = inlined_call_operand.vmem [shape: bf16[16,64], index: 6, kind: output, shape index: {1}]
  %7 = xla_tuple %s5, %s6
  %s8 = sld [smem:[#allocation0]]
  $region38: #{_lambda_.16} parent=0
    _
  %s10 = ssub.s32 1, %s8
  %s11 = scalar_select 0, %s10, %s8
  // Predicated region
  $region2: #{_lambda_.16} parent=0 // pred_check
    _
  $region3: #{_lambda_.16} parent=0 // pred_check_branch
    %13 = sbr.rel (0) target = $region5
  $region4: #{_lambda_.16} parent=0 // pred_region
    _
  $region5: #{_lambda_.16} parent=0 // pred_fallthru
    _
  // Predicated region
  $region6: #{_lambda_.16} parent=0 // pred_check
    _
  $region7: #{_lambda_.16} parent=0 // pred_check_branch
    %15 = sbr.rel (0) target = $region9
  $region8: #{_lambda_.16} parent=0 // pred_region
    _
  $region9: #{_lambda_.16} parent=0 // pred_fallthru
    _
  // Predicated region
  $region10: #{_lambda_.16} parent=0 // pred_check
    _
  $region11: #{_lambda_.16} parent=0 // pred_check_branch
    %17 = sbr.rel (0) target = $region13
  $region12: #{_lambda_.16} parent=0 // pred_region
    _
  $region13: #{_lambda_.16} parent=0 // pred_fallthru
    _
  // Predicated region
  $region14: #{_lambda_.16} parent=0 // pred_check
    _
  $region15: #{_lambda_.16} parent=0 // pred_check_branch
    %19 = sbr.rel (0) target = $region17
  $region16: #{_lambda_.16} parent=0 // pred_region
    _
  $region17: #{_lambda_.16} parent=0 // pred_fallthru
    _
  // Predicated region
  $region18: #{_lambda_.16} parent=0 // pred_check
    _
  $region19: #{_lambda_.16} parent=0 // pred_check_branch
    %21 = sbr.rel (0) target = $region21
  $region20: #{_lambda_.16} parent=0 // pred_region
    _
  $region21: #{_lambda_.16} parent=0 // pred_fallthru
    _
  %v23 = vld [vmem:[%s0] sm:$0xff]
  %v24 = vld [vmem:[%s0 + $0x8] sm:$0xff]
  %v25 = vld [vmem:[%s0 + $0x10] sm:$0xf]
  %v26 = vld [vmem:[%s0 + $0x14] sm:$0xff]
  %v27 = vld [vmem:[%s0 + $0x1c] sm:$0xff]
  %v28 = vld [vmem:[%s0 + $0x24] sm:$0xf]
  %v29 = vld [vmem:[%s1] sm:$0xf]
  %v30 = vld [vmem:[%s1 + $0x4] sm:$0xf]
  %v31 = vld [vmem:[%s1 + $0x8] sm:$0xf]
  %v32 = vld [vmem:[%s1 + $0xc] sm:$0xf]
  %v33 = vld [vmem:[%s1 + $0x10] sm:$0xf]
  %v34 = vld [vmem:[%s1 + $0x14] sm:$0xf]
  %v35 = vld [vmem:[%s1 + $0x18] sm:$0xf]
  %v36 = vld [vmem:[%s1 + $0x1c] sm:$0xf]
  %v37 = vld [vmem:[%s1 + $0x20] sm:$0xf]
  %v38 = vld [vmem:[%s1 + $0x24] sm:$0xf]
  %v39 = vld [vmem:[%s1 + $0x28] sm:$0xf]
  %v40 = vld [vmem:[%s1 + $0x2c] sm:$0xf]
  %v41 = vld [vmem:[%s1 + $0x30] sm:$0xf]
  %v42 = vld [vmem:[%s1 + $0x34] sm:$0xf]
  %v43 = vld [vmem:[%s1 + $0x38] sm:$0xf]
  %v44 = vld [vmem:[%s1 + $0x3c] sm:$0xf]
  %v45 = vld [vmem:[%s1 + $0x40] sm:$0xf]
  %v46 = vld [vmem:[%s1 + $0x44] sm:$0xf]
  %v47 = vld [vmem:[%s1 + $0x48] sm:$0xf]
  %v48 = vld [vmem:[%s1 + $0x4c] sm:$0xf]
  %v49 = vld [vmem:[%s1 + $0x50] sm:$0xf]
  %v50 = vld [vmem:[%s1 + $0x54] sm:$0xf]
  %v51 = vld [vmem:[%s1 + $0x58] sm:$0xf]
  %v52 = vld [vmem:[%s1 + $0x5c] sm:$0xf]
  %v53 = vld [vmem:[%s1 + $0x60] sm:$0xf]
  %v54 = vld [vmem:[%s1 + $0x64] sm:$0xf]
  %v55 = vld [vmem:[%s1 + $0x68] sm:$0xf]
  %v56 = vld [vmem:[%s1 + $0x6c] sm:$0xf]
  %v57 = vld [vmem:[%s1 + $0x70] sm:$0xf]
  %v58 = vld [vmem:[%s1 + $0x74] sm:$0xf]
  %v59 = vld [vmem:[%s1 + $0x78] sm:$0xf]
  %v60 = vld [vmem:[%s1 + $0x7c] sm:$0xf]
  %v61 = vld [vmem:[%s1 + $0x80] sm:$0xf]
  %v62 = vld [vmem:[%s1 + $0x84] sm:$0xf]
  %v63 = vld [vmem:[%s1 + $0x88] sm:$0xf]
  %v64 = vld [vmem:[%s1 + $0x8c] sm:$0xf]
  %v65 = vld [vmem:[%s1 + $0x90] sm:$0xf]
  %v66 = vld [vmem:[%s1 + $0x94] sm:$0xf]
  %v67 = vld [vmem:[%s1 + $0x98] sm:$0xf]
  %v68 = vld [vmem:[%s1 + $0x9c] sm:$0xf]
  %v69 = vld [vmem:[%s1 + $0xa0] sm:$0xf]
  %v70 = vld [vmem:[%s1 + $0xa4] sm:$0xf]
  %v71 = vld [vmem:[%s1 + $0xa8] sm:$0xf]
  %v72 = vld [vmem:[%s1 + $0xac] sm:$0xf]
  %v73 = vld [vmem:[%s1 + $0xb0] sm:$0xf]
  %v74 = vld [vmem:[%s1 + $0xb4] sm:$0xf]
  %v75 = vld [vmem:[%s1 + $0xb8] sm:$0xf]
  %v76 = vld [vmem:[%s1 + $0xbc] sm:$0xf]
  %v77 = vld [vmem:[%s1 + $0xc0] sm:$0xf]
  %v78 = vld [vmem:[%s1 + $0xc4] sm:$0xf]
  %v79 = vld [vmem:[%s1 + $0xc8] sm:$0xf]
  %v80 = vld [vmem:[%s1 + $0xcc] sm:$0xf]
  %v81 = vld [vmem:[%s1 + $0xd0] sm:$0xf]
  %v82 = vld [vmem:[%s1 + $0xd4] sm:$0xf]
  %v83 = vld [vmem:[%s1 + $0xd8] sm:$0xf]
  %v84 = vld [vmem:[%s1 + $0xdc] sm:$0xf]
  %v85 = vld [vmem:[%s1 + $0xe0] sm:$0xf]
  %v86 = vld [vmem:[%s1 + $0xe4] sm:$0xf]
  %v87 = vld [vmem:[%s1 + $0xe8] sm:$0xf]
  %v88 = vld [vmem:[%s1 + $0xec] sm:$0xf]
  %v89 = vld [vmem:[%s1 + $0xf0] sm:$0xf]
  %v90 = vld [vmem:[%s1 + $0xf4] sm:$0xf]
  %v91 = vld [vmem:[%s1 + $0xf8] sm:$0xf]
  %v92 = vld [vmem:[%s1 + $0xfc] sm:$0xf]
  %v93 = vld [vmem:[%s1 + $0x100] sm:$0xf]
  %v94 = vld [vmem:[%s1 + $0x104] sm:$0xf]
  %v95 = vld [vmem:[%s1 + $0x108] sm:$0xf]
  %v96 = vld [vmem:[%s1 + $0x10c] sm:$0xf]
  %v97 = vld [vmem:[%s1 + $0x110] sm:$0xf]
  %v98 = vld [vmem:[%s1 + $0x114] sm:$0xf]
  %v99 = vld [vmem:[%s1 + $0x118] sm:$0xf]
  %v100 = vld [vmem:[%s1 + $0x11c] sm:$0xf]
  %v101 = vld [vmem:[%s2] sm:$0x1]
  %v103 = vlaneseq
  %v104 = vshrl.u32 %v103, 7
  %v105 = vsub.s32 0, %v104
  %v106 = vrot.slane %v101, %v105
  %v114 = vunpack.c.l.b16 %v23
  %v115 = vunpack.c.h.b16 %v23
  %v116 = vunpack.c.l.b16 %v24
  %v117 = vunpack.c.h.b16 %v24
  %v118 = vunpack.c.l.b16 %v25
  %v119 = vunpack.c.l.b16 %v26
  %v120 = vunpack.c.h.b16 %v26
  %v121 = vunpack.c.l.b16 %v27
  %v122 = vunpack.c.h.b16 %v27
  %v123 = vunpack.c.l.b16 %v28
  %v124 = vpack.c.b16 %v119, %v114
  %v125 = vpack.c.b16 %v120, %v115
  %v126 = vpack.c.b16 %v121, %v116
  %v127 = vpack.c.b16 %v122, %v117
  %v128 = vpack.c.b16 %v123, %v118
  %v205 = vunpack.c.l.b16 %v29
  %v206 = vunpack.c.l.b16 %v30
  %v207 = vunpack.c.l.b16 %v31
  %v208 = vunpack.c.l.b16 %v32
  %v209 = vunpack.c.l.b16 %v33
  %v210 = vunpack.c.l.b16 %v34
  %v211 = vunpack.c.l.b16 %v35
  %v212 = vunpack.c.l.b16 %v36
  %v213 = vunpack.c.l.b16 %v37
  %v214 = vunpack.c.l.b16 %v38
  %v215 = vunpack.c.l.b16 %v39
  %v216 = vunpack.c.l.b16 %v40
  %v217 = vunpack.c.l.b16 %v41
  %v218 = vunpack.c.l.b16 %v42
  %v219 = vunpack.c.l.b16 %v43
  %v220 = vunpack.c.l.b16 %v44
  %v221 = vunpack.c.l.b16 %v45
  %v222 = vunpack.c.l.b16 %v46
  %v223 = vunpack.c.l.b16 %v47
  %v224 = vunpack.c.l.b16 %v48
  %v225 = vunpack.c.l.b16 %v49
  %v226 = vunpack.c.l.b16 %v50
  %v227 = vunpack.c.l.b16 %v51
  %v228 = vunpack.c.l.b16 %v52
  %v229 = vunpack.c.l.b16 %v53
  %v230 = vunpack.c.l.b16 %v54
  %v231 = vunpack.c.l.b16 %v55
  %v232 = vunpack.c.l.b16 %v56
  %v233 = vunpack.c.l.b16 %v57
  %v234 = vunpack.c.l.b16 %v58
  %v235 = vunpack.c.l.b16 %v59
  %v236 = vunpack.c.l.b16 %v60
  %v237 = vunpack.c.l.b16 %v61
  %v238 = vunpack.c.l.b16 %v62
  %v239 = vunpack.c.l.b16 %v63
  %v240 = vunpack.c.l.b16 %v64
  %v241 = vunpack.c.l.b16 %v65
  %v242 = vunpack.c.l.b16 %v66
  %v243 = vunpack.c.l.b16 %v67
  %v244 = vunpack.c.l.b16 %v68
  %v245 = vunpack.c.l.b16 %v69
  %v246 = vunpack.c.l.b16 %v70
  %v247 = vunpack.c.l.b16 %v71
  %v248 = vunpack.c.l.b16 %v72
  %v249 = vunpack.c.l.b16 %v73
  %v250 = vunpack.c.l.b16 %v74
  %v251 = vunpack.c.l.b16 %v75
  %v252 = vunpack.c.l.b16 %v76
  %v253 = vunpack.c.l.b16 %v77
  %v254 = vunpack.c.l.b16 %v78
  %v255 = vunpack.c.l.b16 %v79
  %v256 = vunpack.c.l.b16 %v80
  %v257 = vunpack.c.l.b16 %v81
  %v258 = vunpack.c.l.b16 %v82
  %v259 = vunpack.c.l.b16 %v83
  %v260 = vunpack.c.l.b16 %v84
  %v261 = vunpack.c.l.b16 %v85
  %v262 = vunpack.c.l.b16 %v86
  %v263 = vunpack.c.l.b16 %v87
  %v264 = vunpack.c.l.b16 %v88
  %v265 = vunpack.c.l.b16 %v89
  %v266 = vunpack.c.l.b16 %v90
  %v267 = vunpack.c.l.b16 %v91
  %v268 = vunpack.c.l.b16 %v92
  %v269 = vunpack.c.l.b16 %v93
  %v270 = vunpack.c.l.b16 %v94
  %v271 = vunpack.c.l.b16 %v95
  %v272 = vunpack.c.l.b16 %v96
  %v273 = vunpack.c.l.b16 %v97
  %v274 = vunpack.c.l.b16 %v98
  %v275 = vunpack.c.l.b16 %v99
  %v276 = vunpack.c.l.b16 %v100
  %v277 = vpack.c.b16 %v206, %v205
  %v278 = vpack.c.b16 %v208, %v207
  %v279 = vpack.c.b16 %v210, %v209
  %v280 = vpack.c.b16 %v212, %v211
  %v281 = vpack.c.b16 %v214, %v213
  %v282 = vpack.c.b16 %v216, %v215
  %v283 = vpack.c.b16 %v218, %v217
  %v284 = vpack.c.b16 %v220, %v219
  %v285 = vpack.c.b16 %v222, %v221
  %v286 = vpack.c.b16 %v224, %v223
  %v287 = vpack.c.b16 %v226, %v225
  %v288 = vpack.c.b16 %v228, %v227
  %v289 = vpack.c.b16 %v230, %v229
  %v290 = vpack.c.b16 %v232, %v231
  %v291 = vpack.c.b16 %v234, %v233
  %v292 = vpack.c.b16 %v236, %v235
  %v293 = vpack.c.b16 %v238, %v237
  %v294 = vpack.c.b16 %v240, %v239
  %v295 = vpack.c.b16 %v242, %v241
  %v296 = vpack.c.b16 %v244, %v243
  %v297 = vpack.c.b16 %v246, %v245
  %v298 = vpack.c.b16 %v248, %v247
  %v299 = vpack.c.b16 %v250, %v249
  %v300 = vpack.c.b16 %v252, %v251
  %v301 = vpack.c.b16 %v254, %v253
  %v302 = vpack.c.b16 %v256, %v255
  %v303 = vpack.c.b16 %v258, %v257
  %v304 = vpack.c.b16 %v260, %v259
  %v305 = vpack.c.b16 %v262, %v261
  %v306 = vpack.c.b16 %v264, %v263
  %v307 = vpack.c.b16 %v266, %v265
  %v308 = vpack.c.b16 %v268, %v267
  %v309 = vpack.c.b16 %v270, %v269
  %v310 = vpack.c.b16 %v272, %v271
  %v311 = vpack.c.b16 %v274, %v273
  %v312 = vpack.c.b16 %v276, %v275
  %vm349 = vcmask 523264
  %v351 = vsel %vm349, %v128, 0
  %353 = vmatprep.subr.bf16.mxu0 0
  %354 = vmatpush1.bf16.msra.mxu0 %v277
  %355 = vmatprep.subr.bf16.mxu0 0
  %356 = vmatpush1.bf16.msra.mxu0 %v278
  %357 = vmatprep.subr.bf16.mxu0 0
  %358 = vmatpush1.bf16.msra.mxu0 %v279
  %359 = vmatprep.subr.bf16.mxu0 0
  %360 = vmatpush1.bf16.msra.mxu0 %v280
  %361 = vmatprep.subr.bf16.mxu0 0
  %362 = vmatpush1.bf16.msra.mxu0 %v281
  %363 = vmatprep.subr.bf16.mxu0 0
  %364 = vmatpush1.bf16.msra.mxu0 %v282
  %365 = vmatprep.subr.bf16.mxu0 0
  %366 = vmatpush1.bf16.msra.mxu0 %v283
  %367 = vmatprep.subr.bf16.mxu0 0
  %368 = vmatpush1.bf16.msra.mxu0 %v284
  %369 = vmatprep.subr.bf16.mxu0 0
  %370 = vmatpush1.bf16.msra.mxu0 %v285
  %371 = vmatprep.subr.bf16.mxu0 0
  %372 = vmatpush1.bf16.msra.mxu0 %v286
  %373 = vmatprep.subr.bf16.mxu0 0
  %374 = vmatpush1.bf16.msra.mxu0 %v287
  %375 = vmatprep.subr.bf16.mxu0 0
  %376 = vmatpush1.bf16.msra.mxu0 %v288
  %377 = vmatprep.subr.bf16.mxu0 0
  %378 = vmatpush1.bf16.msra.mxu0 %v289
  %379 = vmatprep.subr.bf16.mxu0 0
  %380 = vmatpush1.bf16.msra.mxu0 %v290
  %381 = vmatprep.subr.bf16.mxu0 0
  %382 = vmatpush1.bf16.msra.mxu0 %v291
  %383 = vmatprep.subr.bf16.mxu0 0
  %384 = vmatpush1.bf16.msra.mxu0 %v292
  %385 = vmatprep.mubr.bf16.mxu0 %v125
  %386 = vmatmul.mubr.bf16.gmra.mrb[0].mxu0 %v124
  %v387 = vpop.f32.mrb[0].mxu0
  %v388 = vadd.f32 %v106, %v387
  %v389 = vpop.f32.mrb[0].mxu0
  %v390 = vpop.f32.mrb[0].mxu0
  %v391 = vadd.f32 %v106, %v390
  %v392 = vpop.f32.mrb[0].mxu0
  %393 = vdwg.mxu0
  %394 = vmatprep.subr.bf16.mxu0 0
  %395 = vmatpush1.bf16.msra.mxu0 %v293
  %396 = vmatprep.subr.bf16.mxu0 0
  %397 = vmatpush1.bf16.msra.mxu0 %v294
  %398 = vmatprep.subr.bf16.mxu0 0
  %399 = vmatpush1.bf16.msra.mxu0 %v295
  %400 = vmatprep.subr.bf16.mxu0 0
  %401 = vmatpush1.bf16.msra.mxu0 %v296
  %402 = vmatprep.subr.bf16.mxu0 0
  %403 = vmatpush1.bf16.msra.mxu0 %v297
  %404 = vmatprep.subr.bf16.mxu0 0
  %405 = vmatpush1.bf16.msra.mxu0 %v298
  %406 = vmatprep.subr.bf16.mxu0 0
  %407 = vmatpush1.bf16.msra.mxu0 %v299
  %408 = vmatprep.subr.bf16.mxu0 0
  %409 = vmatpush1.bf16.msra.mxu0 %v300
  %410 = vmatprep.subr.bf16.mxu0 0
  %411 = vmatpush1.bf16.msra.mxu0 %v301
  %412 = vmatprep.subr.bf16.mxu0 0
  %413 = vmatpush1.bf16.msra.mxu0 %v302
  %414 = vmatprep.subr.bf16.mxu0 0
  %415 = vmatpush1.bf16.msra.mxu0 %v303
  %416 = vmatprep.subr.bf16.mxu0 0
  %417 = vmatpush1.bf16.msra.mxu0 %v304
  %418 = vmatprep.subr.bf16.mxu0 0
  %419 = vmatpush1.bf16.msra.mxu0 %v305
  %420 = vmatprep.subr.bf16.mxu0 0
  %421 = vmatpush1.bf16.msra.mxu0 %v306
  %422 = vmatprep.subr.bf16.mxu0 0
  %423 = vmatpush1.bf16.msra.mxu0 %v307
  %424 = vmatprep.subr.bf16.mxu0 0
  %425 = vmatpush1.bf16.msra.mxu0 %v308
  %426 = vmatprep.mubr.bf16.mxu0 %v127
  %427 = vmatmul.mubr.bf16.gmra.mrb[0].mxu0 %v126
  %v428 = vpop.f32.mrb[0].mxu0
  %v429 = vadd.f32 %v388, %v428
  %v430 = vpop.f32.mrb[0].mxu0
  %v431 = vpop.f32.mrb[0].mxu0
  %v432 = vadd.f32 %v391, %v431
  %v433 = vpop.f32.mrb[0].mxu0
  %434 = vdwg.mxu0
  %435 = vmatprep.subr.bf16.mxu0 0
  %436 = vmatpush1.bf16.msra.mxu0 %v309
  %437 = vmatprep.subr.bf16.mxu0 0
  %438 = vmatpush1.bf16.msra.mxu0 %v310
  %439 = vmatprep.subr.bf16.mxu0 0
  %440 = vmatpush1.bf16.msra.mxu0 %v311
  %441 = vmatprep.subr.bf16.mxu0 0
  %442 = vmatpush1.bf16.msra.mxu0 %v312
  %443 = vmatprep.subr.bf16.mxu0 0
  %444 = vmatpush1.bf16.msra.mxu0 0
  %445 = vmatprep.subr.bf16.mxu0 0
  %446 = vmatpush1.bf16.msra.mxu0 0
  %447 = vmatprep.subr.bf16.mxu0 0
  %448 = vmatpush1.bf16.msra.mxu0 0
  %449 = vmatprep.subr.bf16.mxu0 0
  %450 = vmatpush1.bf16.msra.mxu0 0
  %451 = vmatprep.subr.bf16.mxu0 0
  %452 = vmatpush1.bf16.msra.mxu0 0
  %453 = vmatprep.subr.bf16.mxu0 0
  %454 = vmatpush1.bf16.msra.mxu0 0
  %455 = vmatprep.subr.bf16.mxu0 0
  %456 = vmatpush1.bf16.msra.mxu0 0
  %457 = vmatprep.subr.bf16.mxu0 0
  %458 = vmatpush1.bf16.msra.mxu0 0
  %459 = vmatprep.subr.bf16.mxu0 0
  %460 = vmatpush1.bf16.msra.mxu0 0
  %461 = vmatprep.subr.bf16.mxu0 0
  %462 = vmatpush1.bf16.msra.mxu0 0
  %463 = vmatprep.subr.bf16.mxu0 0
  %464 = vmatpush1.bf16.msra.mxu0 0
  %465 = vmatprep.subr.bf16.mxu0 0
  %466 = vmatpush1.bf16.msra.mxu0 0
  %467 = vmatprep.mubr.bf16.mxu0 0
  %468 = vmatmul.mubr.bf16.gmra.mrb[0].mxu0 %v351
  %v469 = vpop.f32.mrb[0].mxu0
  %v470 = vadd.f32 %v429, %v469
  %v471 = vpop.f32.mrb[0].mxu0
  %v472 = vpop.f32.mrb[0].mxu0
  %v473 = vadd.f32 %v432, %v472
  %v474 = vpop.f32.mrb[0].mxu0
  %475 = vdwg.mxu0
  %v476 = vmul.f32 %v470, 0.5
  %v477 = vmul.f32 %v473, 0.5
  %v478 = vmul.f32 %v470, 0.70710677
  %v479 = vmul.f32 %v473, 0.70710677
  %v480 = verf.f32.pop %v478
  %v481 = verf.f32.pop %v479
  %v482 = vadd.f32 %v480, 1.0
  %v483 = vadd.f32 %v481, 1.0
  %v484 = vmul.f32 %v476, %v482
  %v485 = vmul.f32 %v477, %v483
  %v486 = vpack.c.bf16 %v485, %v484
  %v488 = vunpack.c.l.b16 %v486
  %v489 = vunpack.c.h.b16 %v486
  %v490 = vpack.c.b16 %v488, %v488
  %v491 = vpack.c.b16 %v489, %v489
  %vm494 = vcmask 519168
  %495 = vst.msk [vmem:[%s5] sm:$0xf] %vm494, %v490
  %496 = vst.msk [vmem:[%s5 + $0x4] sm:$0xf] %vm494, %v491
  %v497 = vld [vmem:[%s3] sm:$0xf]
  %v498 = vld [vmem:[%s3 + $0x4] sm:$0xf]
  %v499 = vld [vmem:[%s3 + $0x8] sm:$0xf]
  %v500 = vld [vmem:[%s3 + $0xc] sm:$0xf]
  %v501 = vld [vmem:[%s3 + $0x10] sm:$0xf]
  %v502 = vld [vmem:[%s3 + $0x14] sm:$0xf]
  %v503 = vld [vmem:[%s3 + $0x18] sm:$0xf]
  %v504 = vld [vmem:[%s3 + $0x1c] sm:$0xf]
  %v505 = vld [vmem:[%s3 + $0x20] sm:$0xf]
  %v506 = vld [vmem:[%s3 + $0x24] sm:$0xf]
  %v507 = vld [vmem:[%s3 + $0x28] sm:$0xf]
  %v508 = vld [vmem:[%s3 + $0x2c] sm:$0xf]
  %v509 = vld [vmem:[%s3 + $0x30] sm:$0xf]
  %v510 = vld [vmem:[%s3 + $0x34] sm:$0xf]
  %v511 = vld [vmem:[%s3 + $0x38] sm:$0xf]
  %v512 = vld [vmem:[%s3 + $0x3c] sm:$0xf]
  %v513 = vld [vmem:[%s3 + $0x40] sm:$0xf]
  %v514 = vld [vmem:[%s3 + $0x44] sm:$0xf]
  %v515 = vld [vmem:[%s3 + $0x48] sm:$0xf]
  %v516 = vld [vmem:[%s3 + $0x4c] sm:$0xf]
  %v517 = vld [vmem:[%s3 + $0x50] sm:$0xf]
  %v518 = vld [vmem:[%s3 + $0x54] sm:$0xf]
  %v519 = vld [vmem:[%s3 + $0x58] sm:$0xf]
  %v520 = vld [vmem:[%s3 + $0x5c] sm:$0xf]
  %v521 = vld [vmem:[%s3 + $0x60] sm:$0xf]
  %v522 = vld [vmem:[%s3 + $0x64] sm:$0xf]
  %v523 = vld [vmem:[%s3 + $0x68] sm:$0xf]
  %v524 = vld [vmem:[%s3 + $0x6c] sm:$0xf]
  %v525 = vld [vmem:[%s3 + $0x70] sm:$0xf]
  %v526 = vld [vmem:[%s3 + $0x74] sm:$0xf]
  %v527 = vld [vmem:[%s3 + $0x78] sm:$0xf]
  %v528 = vld [vmem:[%s3 + $0x7c] sm:$0xf]
  %v529 = vld [vmem:[%s3 + $0x80] sm:$0xf]
  %v530 = vld [vmem:[%s3 + $0x84] sm:$0xf]
  %v531 = vld [vmem:[%s3 + $0x88] sm:$0xf]
  %v532 = vld [vmem:[%s3 + $0x8c] sm:$0xf]
  %v533 = vld [vmem:[%s3 + $0x90] sm:$0xf]
  %v534 = vld [vmem:[%s3 + $0x94] sm:$0xf]
  %v535 = vld [vmem:[%s3 + $0x98] sm:$0xf]
  %v536 = vld [vmem:[%s3 + $0x9c] sm:$0xf]
  %v537 = vld [vmem:[%s3 + $0xa0] sm:$0xf]
  %v538 = vld [vmem:[%s3 + $0xa4] sm:$0xf]
  %v539 = vld [vmem:[%s3 + $0xa8] sm:$0xf]
  %v540 = vld [vmem:[%s3 + $0xac] sm:$0xf]
  %v541 = vld [vmem:[%s3 + $0xb0] sm:$0xf]
  %v542 = vld [vmem:[%s3 + $0xb4] sm:$0xf]
  %v543 = vld [vmem:[%s3 + $0xb8] sm:$0xf]
  %v544 = vld [vmem:[%s3 + $0xbc] sm:$0xf]
  %v545 = vld [vmem:[%s3 + $0xc0] sm:$0xf]
  %v546 = vld [vmem:[%s3 + $0xc4] sm:$0xf]
  %v547 = vld [vmem:[%s3 + $0xc8] sm:$0xf]
  %v548 = vld [vmem:[%s3 + $0xcc] sm:$0xf]
  %v549 = vld [vmem:[%s3 + $0xd0] sm:$0xf]
  %v550 = vld [vmem:[%s3 + $0xd4] sm:$0xf]
  %v551 = vld [vmem:[%s3 + $0xd8] sm:$0xf]
  %v552 = vld [vmem:[%s3 + $0xdc] sm:$0xf]
  %v553 = vld [vmem:[%s3 + $0xe0] sm:$0xf]
  %v554 = vld [vmem:[%s3 + $0xe4] sm:$0xf]
  %v555 = vld [vmem:[%s3 + $0xe8] sm:$0xf]
  %v556 = vld [vmem:[%s3 + $0xec] sm:$0xf]
  %v557 = vld [vmem:[%s3 + $0xf0] sm:$0xf]
  %v558 = vld [vmem:[%s3 + $0xf4] sm:$0xf]
  %v559 = vld [vmem:[%s3 + $0xf8] sm:$0xf]
  %v560 = vld [vmem:[%s3 + $0xfc] sm:$0xf]
  %v561 = vld [vmem:[%s3 + $0x100] sm:$0xf]
  %v562 = vld [vmem:[%s3 + $0x104] sm:$0xf]
  %v563 = vld [vmem:[%s3 + $0x108] sm:$0xf]
  %v564 = vld [vmem:[%s3 + $0x10c] sm:$0xf]
  %v565 = vld [vmem:[%s3 + $0x110] sm:$0xf]
  %v566 = vld [vmem:[%s3 + $0x114] sm:$0xf]
  %v567 = vld [vmem:[%s3 + $0x118] sm:$0xf]
  %v568 = vld [vmem:[%s3 + $0x11c] sm:$0xf]
  %v569 = vld [vmem:[%s4] sm:$0x1]
  %v571 = vlaneseq
  %v572 = vshrl.u32 %v571, 7
  %v573 = vsub.s32 0, %v572
  %v574 = vrot.slane %v569, %v573
  %v648 = vunpack.c.l.b16 %v497
  %v649 = vunpack.c.l.b16 %v498
  %v650 = vunpack.c.l.b16 %v499
  %v651 = vunpack.c.l.b16 %v500
  %v652 = vunpack.c.l.b16 %v501
  %v653 = vunpack.c.l.b16 %v502
  %v654 = vunpack.c.l.b16 %v503
  %v655 = vunpack.c.l.b16 %v504
  %v656 = vunpack.c.l.b16 %v505
  %v657 = vunpack.c.l.b16 %v506
  %v658 = vunpack.c.l.b16 %v507
  %v659 = vunpack.c.l.b16 %v508
  %v660 = vunpack.c.l.b16 %v509
  %v661 = vunpack.c.l.b16 %v510
  %v662 = vunpack.c.l.b16 %v511
  %v663 = vunpack.c.l.b16 %v512
  %v664 = vunpack.c.l.b16 %v513
  %v665 = vunpack.c.l.b16 %v514
  %v666 = vunpack.c.l.b16 %v515
  %v667 = vunpack.c.l.b16 %v516
  %v668 = vunpack.c.l.b16 %v517
  %v669 = vunpack.c.l.b16 %v518
  %v670 = vunpack.c.l.b16 %v519
  %v671 = vunpack.c.l.b16 %v520
  %v672 = vunpack.c.l.b16 %v521
  %v673 = vunpack.c.l.b16 %v522
  %v674 = vunpack.c.l.b16 %v523
  %v675 = vunpack.c.l.b16 %v524
  %v676 = vunpack.c.l.b16 %v525
  %v677 = vunpack.c.l.b16 %v526
  %v678 = vunpack.c.l.b16 %v527
  %v679 = vunpack.c.l.b16 %v528
  %v680 = vunpack.c.l.b16 %v529
  %v681 = vunpack.c.l.b16 %v530
  %v682 = vunpack.c.l.b16 %v531
  %v683 = vunpack.c.l.b16 %v532
  %v684 = vunpack.c.l.b16 %v533
  %v685 = vunpack.c.l.b16 %v534
  %v686 = vunpack.c.l.b16 %v535
  %v687 = vunpack.c.l.b16 %v536
  %v688 = vunpack.c.l.b16 %v537
  %v689 = vunpack.c.l.b16 %v538
  %v690 = vunpack.c.l.b16 %v539
  %v691 = vunpack.c.l.b16 %v540
  %v692 = vunpack.c.l.b16 %v541
  %v693 = vunpack.c.l.b16 %v542
  %v694 = vunpack.c.l.b16 %v543
  %v695 = vunpack.c.l.b16 %v544
  %v696 = vunpack.c.l.b16 %v545
  %v697 = vunpack.c.l.b16 %v546
  %v698 = vunpack.c.l.b16 %v547
  %v699 = vunpack.c.l.b16 %v548
  %v700 = vunpack.c.l.b16 %v549
  %v701 = vunpack.c.l.b16 %v550
  %v702 = vunpack.c.l.b16 %v551
  %v703 = vunpack.c.l.b16 %v552
  %v704 = vunpack.c.l.b16 %v553
  %v705 = vunpack.c.l.b16 %v554
  %v706 = vunpack.c.l.b16 %v555
  %v707 = vunpack.c.l.b16 %v556
  %v708 = vunpack.c.l.b16 %v557
  %v709 = vunpack.c.l.b16 %v558
  %v710 = vunpack.c.l.b16 %v559
  %v711 = vunpack.c.l.b16 %v560
  %v712 = vunpack.c.l.b16 %v561
  %v713 = vunpack.c.l.b16 %v562
  %v714 = vunpack.c.l.b16 %v563
  %v715 = vunpack.c.l.b16 %v564
  %v716 = vunpack.c.l.b16 %v565
  %v717 = vunpack.c.l.b16 %v566
  %v718 = vunpack.c.l.b16 %v567
  %v719 = vunpack.c.l.b16 %v568
  %v720 = vpack.c.b16 %v649, %v648
  %v721 = vpack.c.b16 %v651, %v650
  %v722 = vpack.c.b16 %v653, %v652
  %v723 = vpack.c.b16 %v655, %v654
  %v724 = vpack.c.b16 %v657, %v656
  %v725 = vpack.c.b16 %v659, %v658
  %v726 = vpack.c.b16 %v661, %v660
  %v727 = vpack.c.b16 %v663, %v662
  %v728 = vpack.c.b16 %v665, %v664
  %v729 = vpack.c.b16 %v667, %v666
  %v730 = vpack.c.b16 %v669, %v668
  %v731 = vpack.c.b16 %v671, %v670
  %v732 = vpack.c.b16 %v673, %v672
  %v733 = vpack.c.b16 %v675, %v674
  %v734 = vpack.c.b16 %v677, %v676
  %v735 = vpack.c.b16 %v679, %v678
  %v736 = vpack.c.b16 %v681, %v680
  %v737 = vpack.c.b16 %v683, %v682
  %v738 = vpack.c.b16 %v685, %v684
  %v739 = vpack.c.b16 %v687, %v686
  %v740 = vpack.c.b16 %v689, %v688
  %v741 = vpack.c.b16 %v691, %v690
  %v742 = vpack.c.b16 %v693, %v692
  %v743 = vpack.c.b16 %v695, %v694
  %v744 = vpack.c.b16 %v697, %v696
  %v745 = vpack.c.b16 %v699, %v698
  %v746 = vpack.c.b16 %v701, %v700
  %v747 = vpack.c.b16 %v703, %v702
  %v748 = vpack.c.b16 %v705, %v704
  %v749 = vpack.c.b16 %v707, %v706
  %v750 = vpack.c.b16 %v709, %v708
  %v751 = vpack.c.b16 %v711, %v710
  %v752 = vpack.c.b16 %v713, %v712
  %v753 = vpack.c.b16 %v715, %v714
  %v754 = vpack.c.b16 %v717, %v716
  %v755 = vpack.c.b16 %v719, %v718
  %792 = vmatprep.subr.bf16.mxu0 0
  %793 = vmatpush1.bf16.msra.mxu0 %v720
  %794 = vmatprep.subr.bf16.mxu0 0
  %795 = vmatpush1.bf16.msra.mxu0 %v721
  %796 = vmatprep.subr.bf16.mxu0 0
  %797 = vmatpush1.bf16.msra.mxu0 %v722
  %798 = vmatprep.subr.bf16.mxu0 0
  %799 = vmatpush1.bf16.msra.mxu0 %v723
  %800 = vmatprep.subr.bf16.mxu0 0
  %801 = vmatpush1.bf16.msra.mxu0 %v724
  %802 = vmatprep.subr.bf16.mxu0 0
  %803 = vmatpush1.bf16.msra.mxu0 %v725
  %804 = vmatprep.subr.bf16.mxu0 0
  %805 = vmatpush1.bf16.msra.mxu0 %v726
  %806 = vmatprep.subr.bf16.mxu0 0
  %807 = vmatpush1.bf16.msra.mxu0 %v727
  %808 = vmatprep.subr.bf16.mxu0 0
  %809 = vmatpush1.bf16.msra.mxu0 %v728
  %810 = vmatprep.subr.bf16.mxu0 0
  %811 = vmatpush1.bf16.msra.mxu0 %v729
  %812 = vmatprep.subr.bf16.mxu0 0
  %813 = vmatpush1.bf16.msra.mxu0 %v730
  %814 = vmatprep.subr.bf16.mxu0 0
  %815 = vmatpush1.bf16.msra.mxu0 %v731
  %816 = vmatprep.subr.bf16.mxu0 0
  %817 = vmatpush1.bf16.msra.mxu0 %v732
  %818 = vmatprep.subr.bf16.mxu0 0
  %819 = vmatpush1.bf16.msra.mxu0 %v733
  %820 = vmatprep.subr.bf16.mxu0 0
  %821 = vmatpush1.bf16.msra.mxu0 %v734
  %822 = vmatprep.subr.bf16.mxu0 0
  %823 = vmatpush1.bf16.msra.mxu0 %v735
  %824 = vmatprep.mubr.bf16.mxu0 %v125
  %825 = vmatmul.mubr.bf16.gmra.mrb[0].mxu0 %v124
  %v826 = vpop.f32.mrb[0].mxu0
  %v827 = vadd.f32 %v574, %v826
  %v828 = vpop.f32.mrb[0].mxu0
  %v829 = vpop.f32.mrb[0].mxu0
  %v830 = vadd.f32 %v574, %v829
  %v831 = vpop.f32.mrb[0].mxu0
  %832 = vdwg.mxu0
  %833 = vmatprep.subr.bf16.mxu0 0
  %834 = vmatpush1.bf16.msra.mxu0 %v736
  %835 = vmatprep.subr.bf16.mxu0 0
  %836 = vmatpush1.bf16.msra.mxu0 %v737
  %837 = vmatprep.subr.bf16.mxu0 0
  %838 = vmatpush1.bf16.msra.mxu0 %v738
  %839 = vmatprep.subr.bf16.mxu0 0
  %840 = vmatpush1.bf16.msra.mxu0 %v739
  %841 = vmatprep.subr.bf16.mxu0 0
  %842 = vmatpush1.bf16.msra.mxu0 %v740
  %843 = vmatprep.subr.bf16.mxu0 0
  %844 = vmatpush1.bf16.msra.mxu0 %v741
  %845 = vmatprep.subr.bf16.mxu0 0
  %846 = vmatpush1.bf16.msra.mxu0 %v742
  %847 = vmatprep.subr.bf16.mxu0 0
  %848 = vmatpush1.bf16.msra.mxu0 %v743
  %849 = vmatprep.subr.bf16.mxu0 0
  %850 = vmatpush1.bf16.msra.mxu0 %v744
  %851 = vmatprep.subr.bf16.mxu0 0
  %852 = vmatpush1.bf16.msra.mxu0 %v745
  %853 = vmatprep.subr.bf16.mxu0 0
  %854 = vmatpush1.bf16.msra.mxu0 %v746
  %855 = vmatprep.subr.bf16.mxu0 0
  %856 = vmatpush1.bf16.msra.mxu0 %v747
  %857 = vmatprep.subr.bf16.mxu0 0
  %858 = vmatpush1.bf16.msra.mxu0 %v748
  %859 = vmatprep.subr.bf16.mxu0 0
  %860 = vmatpush1.bf16.msra.mxu0 %v749
  %861 = vmatprep.subr.bf16.mxu0 0
  %862 = vmatpush1.bf16.msra.mxu0 %v750
  %863 = vmatprep.subr.bf16.mxu0 0
  %864 = vmatpush1.bf16.msra.mxu0 %v751
  %865 = vmatprep.mubr.bf16.mxu0 %v127
  %866 = vmatmul.mubr.bf16.gmra.mrb[0].mxu0 %v126
  %v867 = vpop.f32.mrb[0].mxu0
  %v868 = vadd.f32 %v827, %v867
  %v869 = vpop.f32.mrb[0].mxu0
  %v870 = vpop.f32.mrb[0].mxu0
  %v871 = vadd.f32 %v830, %v870
  %v872 = vpop.f32.mrb[0].mxu0
  %873 = vdwg.mxu0
  %874 = vmatprep.subr.bf16.mxu0 0
  %875 = vmatpush1.bf16.msra.mxu0 %v752
  %876 = vmatprep.subr.bf16.mxu0 0
  %877 = vmatpush1.bf16.msra.mxu0 %v753
  %878 = vmatprep.subr.bf16.mxu0 0
  %879 = vmatpush1.bf16.msra.mxu0 %v754
  %880 = vmatprep.subr.bf16.mxu0 0
  %881 = vmatpush1.bf16.msra.mxu0 %v755
  %882 = vmatprep.subr.bf16.mxu0 0
  %883 = vmatpush1.bf16.msra.mxu0 0
  %884 = vmatprep.subr.bf16.mxu0 0
  %885 = vmatpush1.bf16.msra.mxu0 0
  %886 = vmatprep.subr.bf16.mxu0 0
  %887 = vmatpush1.bf16.msra.mxu0 0
  %888 = vmatprep.subr.bf16.mxu0 0
  %889 = vmatpush1.bf16.msra.mxu0 0
  %890 = vmatprep.subr.bf16.mxu0 0
  %891 = vmatpush1.bf16.msra.mxu0 0
  %892 = vmatprep.subr.bf16.mxu0 0
  %893 = vmatpush1.bf16.msra.mxu0 0
  %894 = vmatprep.subr.bf16.mxu0 0
  %895 = vmatpush1.bf16.msra.mxu0 0
  %896 = vmatprep.subr.bf16.mxu0 0
  %897 = vmatpush1.bf16.msra.mxu0 0
  %898 = vmatprep.subr.bf16.mxu0 0
  %899 = vmatpush1.bf16.msra.mxu0 0
  %900 = vmatprep.subr.bf16.mxu0 0
  %901 = vmatpush1.bf16.msra.mxu0 0
  %902 = vmatprep.subr.bf16.mxu0 0
  %903 = vmatpush1.bf16.msra.mxu0 0
  %904 = vmatprep.subr.bf16.mxu0 0
  %905 = vmatpush1.bf16.msra.mxu0 0
  %906 = vmatprep.mubr.bf16.mxu0 0
  %907 = vmatmul.mubr.bf16.gmra.mrb[0].mxu0 %v351
  %v908 = vpop.f32.mrb[0].mxu0
  %v909 = vadd.f32 %v868, %v908
  %v910 = vpop.f32.mrb[0].mxu0
  %v911 = vpop.f32.mrb[0].mxu0
  %v912 = vadd.f32 %v871, %v911
  %v913 = vpop.f32.mrb[0].mxu0
  %914 = vdwg.mxu0
  %v915 = vpack.c.bf16 %v912, %v909
  %v917 = vunpack.c.l.b16 %v915
  %v918 = vunpack.c.h.b16 %v915
  %v919 = vpack.c.b16 %v917, %v917
  %v920 = vpack.c.b16 %v918, %v918
  %923 = vst.msk [vmem:[%s6] sm:$0xf] %vm494, %v919
  %924 = vst.msk [vmem:[%s6 + $0x4] sm:$0xf] %vm494, %v920
  // Predicated region
  $region22: #{_lambda_.16} parent=0 // pred_check
    _
  $region23: #{_lambda_.16} parent=0 // pred_check_branch
    %926 = sbr.rel (0) target = $region25
  $region24: #{_lambda_.16} parent=0 // pred_region
    _
  $region25: #{_lambda_.16} parent=0 // pred_fallthru
    _
  // Predicated region
  $region26: #{_lambda_.16} parent=0 // pred_check
    _
  $region27: #{_lambda_.16} parent=0 // pred_check_branch
    %928 = sbr.rel (0) target = $region29
  $region28: #{_lambda_.16} parent=0 // pred_region
    _
  $region29: #{_lambda_.16} parent=0 // pred_fallthru
    _
  // Predicated region
  $region30: #{_lambda_.16} parent=0 // pred_check
    _
  $region31: #{_lambda_.16} parent=0 // pred_check_branch
    %930 = sbr.rel (0) target = $region33
  $region32: #{_lambda_.16} parent=0 // pred_region
    _
  $region33: #{_lambda_.16} parent=0 // pred_fallthru
    _
  // Predicated region
  $region34: #{_lambda_.16} parent=0 // pred_check
    _
  $region35: #{_lambda_.16} parent=0 // pred_check_branch
    %932 = sbr.rel (0) target = $region37
  $region36: #{_lambda_.16} parent=0 // pred_region
    _
  $region37: #{_lambda_.16} parent=0 // pred_fallthru
    _

</llo_original>
